<compile_context>
chip_gen: v5e
topology: v5e:2x2
jax: 0.10.0
libtpu: 0.0.40
codegen_flags: <defaults>
</compile_context>

<pallas_src>
import functools

import jax
import jax.numpy as jnp
from jax.experimental import pallas as pl
from jax.experimental.pallas import tpu as pltpu

VMEM = pltpu.MemorySpace.VMEM


def _vspecs(n):
    return [pl.BlockSpec(memory_space=VMEM) for _ in range(n)]


def _elu(x):
    return jnp.where(x > 0, x, jnp.exp(jnp.minimum(x, 0.0)) - 1.0)


def _semantic_attention(embeds, aw, ab, av):
    """HeCo inter-type attention, traced inside a kernel.

    beta_p = softmax_p( att_v . mean_rows(tanh(e_p @ W + b)) );  z = sum_p beta_p e_p
    Scalars kept as (1,1) arrays for Mosaic-friendly vector lowering.
    """
    scores = []
    for e in embeds:
        sp = jnp.tanh(jnp.dot(e, aw, preferred_element_type=jnp.float32) + ab)  # (N,H)
        m = jnp.mean(sp, axis=0, keepdims=True)                                  # (1,H)
        scores.append(jnp.sum(m * av, axis=-1, keepdims=True))                   # (1,1)
    mx = scores[0]
    for s in scores[1:]:
        mx = jnp.maximum(mx, s)
    exps = [jnp.exp(s - mx) for s in scores]
    den = exps[0]
    for e in exps[1:]:
        den = den + e
    inv = pl.reciprocal(den, approx=True)
    z = embeds[0] * (exps[0] * inv)
    for i in range(1, len(embeds)):
        z = z + embeds[i] * (exps[i] * inv)
    return z


# ------------------------- fused Linear + ELU (all types) -------------------------

def _fc_elu_kernel(*refs, num_types):
    xs = refs[:num_types]
    ws = refs[num_types:2 * num_types]
    bs = refs[2 * num_types:3 * num_types]
    outs = refs[3 * num_types:]
    for x_ref, w_ref, b_ref, o_ref in zip(xs, ws, bs, outs):
        y = jnp.dot(x_ref[...], w_ref[...], preferred_element_type=jnp.float32)
        o_ref[...] = _elu(y + b_ref[...])


def fc_elu_fused(xs, ws, bs):
    """All type-specific projections (different shapes) in ONE pallas_call."""
    num_types = len(xs)
    hidden = ws[0].shape[1]
    bs2 = [b.reshape(1, hidden) for b in bs]
    out_shapes = tuple(jax.ShapeDtypeStruct((x.shape[0], hidden), jnp.float32) for x in xs)
    outs = pl.pallas_call(
        functools.partial(_fc_elu_kernel, num_types=num_types),
        out_shape=out_shapes,
        in_specs=_vspecs(3 * num_types),
        out_specs=tuple(pl.BlockSpec(memory_space=VMEM) for _ in range(num_types)),
    )(*xs, *ws, *bs2)
    return list(outs)


# ------------------------------- Mp encoder ---------------------------------------

def _mp_kernel(adj_ref, h_ref, w_ref, b_ref, aw_ref, ab_ref, av_ref, o_ref,
               *, num_p, hidden, prelu_alpha):
    """All P GCNs + semantic attention.

    Output is row-stacked: rows [0:N]=z_mp, rows [(p+1)N:(p+2)N]=emb_p (z_mp_locs).
    """
    h = h_ref[...]
    n = h.shape[0]
    # one stacked (N, P*H) feature transform feeds every metapath; cast to bf16 ONCE
    hw = jnp.dot(h.astype(jnp.bfloat16), w_ref[...].astype(jnp.bfloat16),
                 preferred_element_type=jnp.float32).astype(jnp.bfloat16)
    b = b_ref[...]
    embeds = []
    for p in range(num_p):
        hw_p = hw[:, p * hidden:(p + 1) * hidden]
        out = jnp.dot(adj_ref[p], hw_p, preferred_element_type=jnp.float32)  # adj is bf16
        out = out + b[:, p * hidden:(p + 1) * hidden]
        # TODO(synk): PReLU slope is a baked constant (nn.PReLU default 0.25), not learnable.
        out = jnp.where(out > 0, out, prelu_alpha * out)
        embeds.append(out)
        o_ref[(p + 1) * n:(p + 2) * n, :] = out        # direct slice store (no concat)
    o_ref[0:n, :] = _semantic_attention(embeds, aw_ref[...], ab_ref[...], av_ref[...])


def mp_encoder_fused(adj_bf16, h, w_stack, b_stack, att_w, att_b, att_v,
                     prelu_alpha=0.25):
    num_p, n, _ = adj_bf16.shape
    hidden = h.shape[1]
    flops = (2 * n * hidden * (num_p * hidden)          # h @ W_stack
             + num_p * 2 * n * n * hidden               # adj matmuls
             + num_p * 2 * n * hidden * hidden)         # semantic-attention fc
    bytes_accessed = (adj_bf16.size * 2 + h.size * 4 + w_stack.size * 4
                      + b_stack.size * 4 + (num_p + 1) * n * hidden * 4)
    cost = pl.CostEstimate(flops=flops,
                           transcendentals=num_p * (n * hidden + 4),
                           bytes_accessed=bytes_accessed)
    return pl.pallas_call(
        functools.partial(_mp_kernel, num_p=num_p, hidden=hidden,
                          prelu_alpha=prelu_alpha),
        out_shape=jax.ShapeDtypeStruct(((num_p + 1) * n, hidden), jnp.float32),
        in_specs=_vspecs(7),
        out_specs=pl.BlockSpec(memory_space=VMEM),
        cost_estimate=cost,
    )(adj_bf16, h, w_stack, b_stack, att_w, att_b.reshape(1, hidden), att_v)


# ------------------------------- Sc encoder ---------------------------------------

def _sc_kernel(h_ref, *rest, samples, hidden, slope):
    """All intra-type neighbor attentions + semantic attention -> z_sc.

    Neighbor embeddings arrive lane-dense as (N, S_i*H); per-slot logits use a
    list-based softmax so no (N, S) lane concatenation is needed.
    """
    num_nei = len(samples)
    nei_refs = rest[:num_nei]
    a_self_ref, a_nei_ref, aw_ref, ab_ref, av_ref, o_ref = rest[num_nei:]
    h = h_ref[...]
    a_self = a_self_ref[...]
    a_nei = a_nei_ref[...]
    embeds = []
    for i in range(num_nei):
        nei = nei_refs[i][...]                                    # (N, S_i*H)
        s_i = samples[i]
        asi = a_self[i:i + 1, :]                                  # (1, H)
        ani = a_nei[i:i + 1, :]                                   # (1, H)
        # att = leakyrelu(cat([h_refer, nei]) @ a^T) == h.a_self + nei.a_nei
        logit_self = jnp.sum(h * asi, axis=-1, keepdims=True)     # (N, 1)
        logits = []
        for s in range(s_i):
            blk = nei[:, s * hidden:(s + 1) * hidden]
            l = logit_self + jnp.sum(blk * ani, axis=-1, keepdims=True)
            logits.append(jnp.where(l > 0, l, slope * l))         # LeakyReLU(0.01)
        mx = logits[0]
        for l in logits[1:]:
            mx = jnp.maximum(mx, l)
        exps = [jnp.exp(l - mx) for l in logits]
        den = exps[0]
        for e in exps[1:]:
            den = den + e
        inv = pl.reciprocal(den, approx=True)                     # softmax over slots
        out = (exps[0] * inv) * nei[:, 0:hidden]
        for s in range(1, s_i):
            out = out + (exps[s] * inv) * nei[:, s * hidden:(s + 1) * hidden]
        embeds.append(_elu(out))                                  # F.elu in Sc_encoder
    o_ref[...] = _semantic_attention(embeds, aw_ref[...], ab_ref[...], av_ref[...])


def sc_encoder_fused(h0, nei_flats, a_self, a_nei, att_w, att_b, att_v,
                     sample_rate, slope=0.01):
    n, hidden = h0.shape
    k = len(nei_flats)
    return pl.pallas_call(
        functools.partial(_sc_kernel, samples=tuple(sample_rate),
                          hidden=hidden, slope=slope),
        out_shape=jax.ShapeDtypeStruct((n, hidden), jnp.float32),
        in_specs=_vspecs(1 + k + 5),
        out_specs=pl.BlockSpec(memory_space=VMEM),
    )(h0, *nei_flats, a_self, a_nei, att_w, att_b.reshape(1, hidden), att_v)


# ------------------------------ MultiContrast -------------------------------------

def _contrast_kernel(mp_ref, zsc_ref, pos_ref, post_ref,
                     w1_ref, b1_ref, w2_ref, b2_ref, o_ref,
                     *, num_p, n, tau, lam, eps):
    """Projection MLP (run once on all rows) + dual-direction loss for all views."""
    # Row-stack [anchor | view_0..view_{P-1} | z_sc] and project ONCE (2 matmuls).
    x = jnp.concatenate([mp_ref[...], zsc_ref[...]], axis=0)        # ((P+2)*N, H)
    h1 = _elu(jnp.dot(x, w1_ref[...], preferred_element_type=jnp.float32) + b1_ref[...])
    z = jnp.dot(h1, w2_ref[...], preferred_element_type=jnp.float32) + b2_ref[...]
    z = z * jax.lax.rsqrt(jnp.sum(z * z, axis=-1, keepdims=True) + 1e-12)
    z = z.astype(jnp.bfloat16)                                      # rows pre-normalized
    za = z[0:n, :]                                                  # anchor = z_mp
    zv = z[n:, :]                                                   # all (P+1) views stacked
    # ONE MXU matmul gives cosine sims of the anchor vs every view (K=128 lane-padded).
    s_all = jax.lax.dot_general(za, zv, (((1,), (1,)), ((), ())),
                                preferred_element_type=jnp.float32)  # (N, (P+1)*N)
    s_all = jnp.exp(s_all * (1.0 / tau))
    pos = pos_ref[...].astype(jnp.float32)
    pos_t = post_ref[...].astype(jnp.float32)
    inv_n = 1.0 / n
    weights = [1.0 / num_p] * num_p + [1.0]        # mean over z_mp_locs views, + z_sc term
    total = jnp.zeros((1, 1), jnp.float32)
    for v, wgt in enumerate(weights):
        s = s_all[:, v * n:(v + 1) * n]
        row_num = jnp.sum(s * pos, axis=1, keepdims=True)            # (N, 1)
        row_den = jnp.sum(s, axis=1, keepdims=True)                  # (N, 1)
        col_num = jnp.sum(s * pos_t, axis=0, keepdims=True)          # (1, N)
        col_den = jnp.sum(s, axis=0, keepdims=True)                  # (1, N)
        l_a2v = -jnp.sum(jnp.log(row_num / (row_den + eps)),
                         axis=0, keepdims=True) * inv_n              # (1, 1)
        l_v2a = -jnp.sum(jnp.log(col_num / (col_den + eps)),
                         axis=1, keepdims=True) * inv_n              # (1, 1)
        total = total + wgt * (lam * l_a2v + (1.0 - lam) * l_v2a)
    o_ref[...] = total


def multicontrast_fused(mp_rows, z_sc, pos_b, pos_t_b, w1p, b1p, w2p, b2p,
                        tau, lam, eps=1e-8):
    # TODO(synk): NHGMI's MultiContrast extras (sim_mat / gamma / rank_ratio / num_pos
    # re-ranking) are not in the provided snippet; standard HeCo contrastive loss is
    # applied between the anchor and each view (both directions) and averaged.
    n, hidden = z_sc.shape
    num_p = mp_rows.shape[0] // n - 1
    d = w1p.shape[1]
    m = (num_p + 2) * n
    flops = 2 * m * hidden * d + 2 * m * d * d + 2 * n * ((num_p + 1) * n) * d
    transcendentals = (num_p + 1) * n * n + 4 * (num_p + 1) * n
    bytes_accessed = ((mp_rows.size + z_sc.size) * 4
                      + (pos_b.size + pos_t_b.size) * 2
                      + (w1p.size + w2p.size + b1p.size + b2p.size) * 4 + 4)
    cost = pl.CostEstimate(flops=flops, transcendentals=transcendentals,
                           bytes_accessed=bytes_accessed)
    out = pl.pallas_call(
        functools.partial(_contrast_kernel, num_p=num_p, n=n,
                          tau=tau, lam=lam, eps=eps),
        out_shape=jax.ShapeDtypeStruct((1, 1), jnp.float32),
        in_specs=_vspecs(8),
        out_specs=pl.BlockSpec(memory_space=VMEM),
        cost_estimate=cost,
    )(mp_rows, z_sc, pos_b, pos_t_b, w1p, b1p, w2p, b2p)
    return out[0, 0]


# ----------------------------- forward (glue) ------------------------------

def heco_forward(params, feats, pos, mps, nei_samples, tau, lam):
    # feat_drop = 0 and attn_drop = 0 -> dropout branches are identity.
    hidden = params["fc_w"][0].shape[1]

    # 1) all type-specific Linear+ELU projections in ONE pallas_call
    h_all = fc_elu_fused(feats, params["fc_w"], params["fc_b"])

    # 2) Sc encoder: gather neighbors (XLA take), flatten to lane-dense (N, S*H)
    # TODO(synk): at large N the gather could move in-kernel via PrefetchScalarGridSpec.
    nei_flats = []
    for i, idx in enumerate(nei_samples):
        g = jnp.take(h_all[i + 1], idx, axis=0)                 # (N, S, H)
        nei_flats.append(g.reshape(g.shape[0], -1))             # (N, S*H)
    sample_rate = [idx.shape[1] for idx in nei_samples]
    z_sc = sc_encoder_fused(
        h_all[0], nei_flats,
        jnp.concatenate(params["intra_a_self"], axis=0),
        jnp.concatenate(params["intra_a_nei"], axis=0),
        params["sc_att_w"], params["sc_att_b"], params["sc_att_v"], sample_rate)

    # 3) Mp encoder: adjacency pre-cast to bf16 (halves DMA of the largest input)
    # TODO(synk): NHGMI's Mp_encoder third argument (locs collector) is not in the provided
    # snippet; per-metapath GCN embeddings are returned (row-stacked) as z_mp_locs.
    adj_bf16 = jnp.stack(mps, axis=0).astype(jnp.bfloat16)      # (P, N, N) bf16
    w_stack = jnp.concatenate(params["gcn_w"], axis=1)          # (H, P*H)
    b_stack = jnp.concatenate([b.reshape(1, -1) for b in params["gcn_b"]], axis=1)
    mp_rows = mp_encoder_fused(adj_bf16, h_all[0], w_stack, b_stack,
                               params["mp_att_w"], params["mp_att_b"],
                               params["mp_att_v"])              # ((P+1)*N, H)

    # 4) MultiContrast: anchor projected once; all views + both directions, 1 kernel.
    # loss = multicontrast(z_mp, z_mp_locs, pos) + multicontrast(z_mp, [z_sc], pos)
    d = max(128, ((hidden + 127) // 128) * 128)                 # lane-pad MLP to 128
    w1p = jnp.pad(params["proj_w1"], ((0, 0), (0, d - hidden)))
    b1p = jnp.pad(params["proj_b1"].reshape(1, -1), ((0, 0), (0, d - hidden)))
    w2p = jnp.pad(params["proj_w2"], ((0, d - hidden), (0, d - hidden)))
    b2p = jnp.pad(params["proj_b2"].reshape(1, -1), ((0, 0), (0, d - hidden)))
    # masks passed as bf16 (exact for 0/1 values) -> half the mask DMA bytes.
    # TODO(synk): pos^T could be formed per-tile in-kernel once the kernel is grid-tiled.
    pos_b = pos.astype(jnp.bfloat16)
    pos_t_b = jnp.transpose(pos).astype(jnp.bfloat16)
    loss = multicontrast_fused(mp_rows, z_sc, pos_b, pos_t_b,
                               w1p, b1p, w2p, b2p, tau, lam)
    return loss


# ----------------------------- parameter init ------------------------------

def xavier_normal(key, shape, gain=1.414):
    fan_in, fan_out = shape[0], shape[1]
    std = gain * (2.0 / (fan_in + fan_out)) ** 0.5
    return std * jax.random.normal(key, shape, dtype=jnp.float32)


# ----------------------------- main -----------------------------------------

if __name__ == "__main__":
    H = 32                       # hidden_dim
    Ns = [64, 32, 16]            # nodes per type (target type first)
    feats_dims = [48, 40, 24]    # feats_dim_list
    P = 2                        # number of metapaths
    nei_num = 2
    sample_rate = [3, 4]
    tau, lam = 0.8, 0.5

    key = jax.random.PRNGKey(0)
    ks = iter(jax.random.split(key, 64))

    params = {
        "fc_w": [xavier_normal(next(ks), (feats_dims[t], H)) for t in range(3)],
        "fc_b": [jnp.zeros((H,), jnp.float32) for _ in range(3)],
        "gcn_w": [xavier_normal(next(ks), (H, H)) for _ in range(P)],
        "gcn_b": [jnp.zeros((H,), jnp.float32) for _ in range(P)],
        "mp_att_w": xavier_normal(next(ks), (H, H)),
        "mp_att_b": jnp.zeros((H,), jnp.float32),
        "mp_att_v": xavier_normal(next(ks), (1, H)),
        "intra_a_self": [xavier_normal(next(ks), (1, H)) for _ in range(nei_num)],
        "intra_a_nei": [xavier_normal(next(ks), (1, H)) for _ in range(nei_num)],
        "sc_att_w": xavier_normal(next(ks), (H, H)),
        "sc_att_b": jnp.zeros((H,), jnp.float32),
        "sc_att_v": xavier_normal(next(ks), (1, H)),
        "proj_w1": xavier_normal(next(ks), (H, H)),
        "proj_b1": jnp.zeros((H,), jnp.float32),
        "proj_w2": xavier_normal(next(ks), (H, H)),
        "proj_b2": jnp.zeros((H,), jnp.float32),
    }

    # inputs
    feats = [jax.random.normal(next(ks), (Ns[t], feats_dims[t]), jnp.float32)
             for t in range(3)]

    mps = []
    for _ in range(P):
        a = jax.random.uniform(next(ks), (Ns[0], Ns[0]), jnp.float32) + jnp.eye(Ns[0])
        mps.append(a / jnp.sum(a, axis=1, keepdims=True))     # row-normalized adj

    pos = ((jax.random.uniform(next(ks), (Ns[0], Ns[0])) < 0.05)
           .astype(jnp.float32))
    pos = jnp.maximum(pos, jnp.eye(Ns[0], dtype=jnp.float32))  # each row has a positive

    # Deterministic neighbor sampling (torch uses np.random.choice per node).
    nei_samples = [jax.random.randint(next(ks), (Ns[0], sample_rate[i]), 0, Ns[i + 1])
                   for i in range(nei_num)]

    fwd = jax.jit(functools.partial(heco_forward, tau=tau, lam=lam))
    loss = fwd(params, feats, pos, mps, nei_samples)
    jax.block_until_ready(loss)
    assert jnp.isfinite(loss)
    print("KERNEL_OK")
</pallas_src>

<mosaic_0001>
module attributes {stable_mosaic.version = 11 : i64} {
  func.func @_fc_elu_kernel(%arg0: memref<64x48xf32, #tpu.memory_space<vmem>>, %arg1: memref<32x40xf32, #tpu.memory_space<vmem>>, %arg2: memref<16x24xf32, #tpu.memory_space<vmem>>, %arg3: memref<48x32xf32, #tpu.memory_space<vmem>>, %arg4: memref<40x32xf32, #tpu.memory_space<vmem>>, %arg5: memref<24x32xf32, #tpu.memory_space<vmem>>, %arg6: memref<1x32xf32, #tpu.memory_space<vmem>>, %arg7: memref<1x32xf32, #tpu.memory_space<vmem>>, %arg8: memref<1x32xf32, #tpu.memory_space<vmem>>, %arg9: memref<64x32xf32, #tpu.memory_space<vmem>>, %arg10: memref<32x32xf32, #tpu.memory_space<vmem>>, %arg11: memref<16x32xf32, #tpu.memory_space<vmem>>) attributes {dimension_semantics = [], scalar_prefetch = 0 : i64, scratch_operands = 0 : i64, tpu.core_type = #tpu.core_type<tc>} {
    %c0 = arith.constant 0 : index
    %c0_0 = arith.constant 0 : index
    %0 = vector.load %arg0[%c0, %c0_0] : memref<64x48xf32, #tpu.memory_space<vmem>>, vector<64x48xf32>
    %c0_1 = arith.constant 0 : index
    %c0_2 = arith.constant 0 : index
    %1 = vector.load %arg3[%c0_1, %c0_2] : memref<48x32xf32, #tpu.memory_space<vmem>>, vector<48x32xf32>
    %cst = arith.constant dense<0.000000e+00> : vector<64x32xf32>
    %2 = tpu.matmul %0, %1, %cst {dimension_numbers = #tpu.dot_dimension_numbers<[1], [0], [0], [1], [0, 0, 1, 1], [], []>} : vector<64x48xf32>, vector<48x32xf32>, vector<64x32xf32> -> vector<64x32xf32>
    %c0_3 = arith.constant 0 : index
    %c0_4 = arith.constant 0 : index
    %3 = vector.load %arg6[%c0_3, %c0_4] : memref<1x32xf32, #tpu.memory_space<vmem>>, vector<1x32xf32>
    %4 = vector.broadcast %3 : vector<1x32xf32> to vector<64x32xf32>
    %5 = arith.addf %2, %4 : vector<64x32xf32>
    %cst_5 = arith.constant 0.000000e+00 : f32
    %6 = vector.broadcast %cst_5 : f32 to vector<64x32xf32>
    %7 = arith.cmpf ogt, %5, %6 : vector<64x32xf32>
    %cst_6 = arith.constant 0.000000e+00 : f32
    %8 = vector.broadcast %cst_6 : f32 to vector<64x32xf32>
    %9 = arith.minimumf %5, %8 : vector<64x32xf32>
    %10 = math.exp %9 : vector<64x32xf32>
    %cst_7 = arith.constant 1.000000e+00 : f32
    %11 = vector.broadcast %cst_7 : f32 to vector<64x32xf32>
    %12 = arith.subf %10, %11 : vector<64x32xf32>
    %13 = arith.select %7, %5, %12 : vector<64x32xi1>, vector<64x32xf32>
    %c0_8 = arith.constant 0 : index
    %c0_9 = arith.constant 0 : index
    %14 = vector.load %arg9[%c0_8, %c0_9] : memref<64x32xf32, #tpu.memory_space<vmem>>, vector<64x32xf32>
    tpu.vector_store %arg9[%c0_8, %c0_9], %13 {strides = array<i32>} : memref<64x32xf32, #tpu.memory_space<vmem>>, vector<64x32xf32>,
    %c0_10 = arith.constant 0 : index
    %c0_11 = arith.constant 0 : index
    %15 = vector.load %arg1[%c0_10, %c0_11] : memref<32x40xf32, #tpu.memory_space<vmem>>, vector<32x40xf32>
    %c0_12 = arith.constant 0 : index
    %c0_13 = arith.constant 0 : index
    %16 = vector.load %arg4[%c0_12, %c0_13] : memref<40x32xf32, #tpu.memory_space<vmem>>, vector<40x32xf32>
    %cst_14 = arith.constant dense<0.000000e+00> : vector<32x32xf32>
    %17 = tpu.matmul %15, %16, %cst_14 {dimension_numbers = #tpu.dot_dimension_numbers<[1], [0], [0], [1], [0, 0, 1, 1], [], []>} : vector<32x40xf32>, vector<40x32xf32>, vector<32x32xf32> -> vector<32x32xf32>
    %c0_15 = arith.constant 0 : index
    %c0_16 = arith.constant 0 : index
    %18 = vector.load %arg7[%c0_15, %c0_16] : memref<1x32xf32, #tpu.memory_space<vmem>>, vector<1x32xf32>
    %19 = vector.broadcast %18 : vector<1x32xf32> to vector<32x32xf32>
    %20 = arith.addf %17, %19 : vector<32x32xf32>
    %cst_17 = arith.constant 0.000000e+00 : f32
    %21 = vector.broadcast %cst_17 : f32 to vector<32x32xf32>
    %22 = arith.cmpf ogt, %20, %21 : vector<32x32xf32>
    %cst_18 = arith.constant 0.000000e+00 : f32
    %23 = vector.broadcast %cst_18 : f32 to vector<32x32xf32>
    %24 = arith.minimumf %20, %23 : vector<32x32xf32>
    %25 = math.exp %24 : vector<32x32xf32>
    %cst_19 = arith.constant 1.000000e+00 : f32
    %26 = vector.broadcast %cst_19 : f32 to vector<32x32xf32>
    %27 = arith.subf %25, %26 : vector<32x32xf32>
    %28 = arith.select %22, %20, %27 : vector<32x32xi1>, vector<32x32xf32>
    %c0_20 = arith.constant 0 : index
    %c0_21 = arith.constant 0 : index
    %29 = vector.load %arg10[%c0_20, %c0_21] : memref<32x32xf32, #tpu.memory_space<vmem>>, vector<32x32xf32>
    tpu.vector_store %arg10[%c0_20, %c0_21], %28 {strides = array<i32>} : memref<32x32xf32, #tpu.memory_space<vmem>>, vector<32x32xf32>,
    %c0_22 = arith.constant 0 : index
    %c0_23 = arith.constant 0 : index
    %30 = vector.load %arg2[%c0_22, %c0_23] : memref<16x24xf32, #tpu.memory_space<vmem>>, vector<16x24xf32>
    %c0_24 = arith.constant 0 : index
    %c0_25 = arith.constant 0 : index
    %31 = vector.load %arg5[%c0_24, %c0_25] : memref<24x32xf32, #tpu.memory_space<vmem>>, vector<24x32xf32>
    %cst_26 = arith.constant dense<0.000000e+00> : vector<16x32xf32>
    %32 = tpu.matmul %30, %31, %cst_26 {dimension_numbers = #tpu.dot_dimension_numbers<[1], [0], [0], [1], [0, 0, 1, 1], [], []>} : vector<16x24xf32>, vector<24x32xf32>, vector<16x32xf32> -> vector<16x32xf32>
    %c0_27 = arith.constant 0 : index
    %c0_28 = arith.constant 0 : index
    %33 = vector.load %arg8[%c0_27, %c0_28] : memref<1x32xf32, #tpu.memory_space<vmem>>, vector<1x32xf32>
    %34 = vector.broadcast %33 : vector<1x32xf32> to vector<16x32xf32>
    %35 = arith.addf %32, %34 : vector<16x32xf32>
    %cst_29 = arith.constant 0.000000e+00 : f32
    %36 = vector.broadcast %cst_29 : f32 to vector<16x32xf32>
    %37 = arith.cmpf ogt, %35, %36 : vector<16x32xf32>
    %cst_30 = arith.constant 0.000000e+00 : f32
    %38 = vector.broadcast %cst_30 : f32 to vector<16x32xf32>
    %39 = arith.minimumf %35, %38 : vector<16x32xf32>
    %40 = math.exp %39 : vector<16x32xf32>
    %cst_31 = arith.constant 1.000000e+00 : f32
    %41 = vector.broadcast %cst_31 : f32 to vector<16x32xf32>
    %42 = arith.subf %40, %41 : vector<16x32xf32>
    %43 = arith.select %37, %35, %42 : vector<16x32xi1>, vector<16x32xf32>
    %c0_32 = arith.constant 0 : index
    %c0_33 = arith.constant 0 : index
    %44 = vector.load %arg11[%c0_32, %c0_33] : memref<16x32xf32, #tpu.memory_space<vmem>>, vector<16x32xf32>
    tpu.vector_store %arg11[%c0_32, %c0_33], %43 {strides = array<i32>} : memref<16x32xf32, #tpu.memory_space<vmem>>, vector<16x32xf32>,
    return
  }
}

module attributes {stable_mosaic.version = 11 : i64} {
  func.func @_sc_kernel(%arg0: memref<64x32xf32, #tpu.memory_space<vmem>>, %arg1: memref<64x96xf32, #tpu.memory_space<vmem>>, %arg2: memref<64x128xf32, #tpu.memory_space<vmem>>, %arg3: memref<2x32xf32, #tpu.memory_space<vmem>>, %arg4: memref<2x32xf32, #tpu.memory_space<vmem>>, %arg5: memref<32x32xf32, #tpu.memory_space<vmem>>, %arg6: memref<1x32xf32, #tpu.memory_space<vmem>>, %arg7: memref<1x32xf32, #tpu.memory_space<vmem>>, %arg8: memref<64x32xf32, #tpu.memory_space<vmem>>) attributes {dimension_semantics = [], scalar_prefetch = 0 : i64, scratch_operands = 0 : i64, tpu.core_type = #tpu.core_type<tc>} {
    %c0 = arith.constant 0 : index
    %c0_0 = arith.constant 0 : index
    %0 = vector.load %arg0[%c0, %c0_0] : memref<64x32xf32, #tpu.memory_space<vmem>>, vector<64x32xf32>
    %c0_1 = arith.constant 0 : index
    %c0_2 = arith.constant 0 : index
    %1 = vector.load %arg3[%c0_1, %c0_2] : memref<2x32xf32, #tpu.memory_space<vmem>>, vector<2x32xf32>
    %c0_3 = arith.constant 0 : index
    %c0_4 = arith.constant 0 : index
    %2 = vector.load %arg4[%c0_3, %c0_4] : memref<2x32xf32, #tpu.memory_space<vmem>>, vector<2x32xf32>
    %c0_5 = arith.constant 0 : index
    %c0_6 = arith.constant 0 : index
    %3 = vector.load %arg1[%c0_5, %c0_6] : memref<64x96xf32, #tpu.memory_space<vmem>>, vector<64x96xf32>
    %4 = vector.extract_strided_slice %1 {offsets = [0, 0], sizes = [1, 32], strides = [1, 1]} : vector<2x32xf32> to vector<1x32xf32>
    %5 = vector.extract_strided_slice %2 {offsets = [0, 0], sizes = [1, 32], strides = [1, 1]} : vector<2x32xf32> to vector<1x32xf32>
    %6 = vector.broadcast %4 : vector<1x32xf32> to vector<64x32xf32>
    %7 = arith.mulf %0, %6 : vector<64x32xf32>
    %cst = arith.constant dense<0.000000e+00> : vector<64xf32>
    %8 = vector.multi_reduction <add>, %7, %cst [1] : vector<64x32xf32> to vector<64xf32>
    %9 = vector.shape_cast %8 : vector<64xf32> to vector<64x1xf32>
    %10 = vector.extract_strided_slice %3 {offsets = [0, 0], sizes = [64, 32], strides = [1, 1]} : vector<64x96xf32> to vector<64x32xf32>
    %11 = vector.broadcast %5 : vector<1x32xf32> to vector<64x32xf32>
    %12 = arith.mulf %10, %11 : vector<64x32xf32>
    %cst_7 = arith.constant dense<0.000000e+00> : vector<64xf32>
    %13 = vector.multi_reduction <add>, %12, %cst_7 [1] : vector<64x32xf32> to vector<64xf32>
    %14 = vector.shape_cast %13 : vector<64xf32> to vector<64x1xf32>
    %15 = arith.addf %9, %14 : vector<64x1xf32>
    %cst_8 = arith.constant 0.000000e+00 : f32
    %16 = vector.broadcast %cst_8 : f32 to vector<64x1xf32>
    %17 = arith.cmpf ogt, %15, %16 : vector<64x1xf32>
    %cst_9 = arith.constant 0.00999999977 : f32
    %18 = vector.broadcast %cst_9 : f32 to vector<64x1xf32>
    %19 = arith.mulf %18, %15 : vector<64x1xf32>
    %20 = arith.select %17, %15, %19 : vector<64x1xi1>, vector<64x1xf32>
    %21 = vector.extract_strided_slice %3 {offsets = [0, 32], sizes = [64, 32], strides = [1, 1]} : vector<64x96xf32> to vector<64x32xf32>
    %22 = vector.broadcast %5 : vector<1x32xf32> to vector<64x32xf32>
    %23 = arith.mulf %21, %22 : vector<64x32xf32>
    %cst_10 = arith.constant dense<0.000000e+00> : vector<64xf32>
    %24 = vector.multi_reduction <add>, %23, %cst_10 [1] : vector<64x32xf32> to vector<64xf32>
    %25 = vector.shape_cast %24 : vector<64xf32> to vector<64x1xf32>
    %26 = arith.addf %9, %25 : vector<64x1xf32>
    %cst_11 = arith.constant 0.000000e+00 : f32
    %27 = vector.broadcast %cst_11 : f32 to vector<64x1xf32>
    %28 = arith.cmpf ogt, %26, %27 : vector<64x1xf32>
    %cst_12 = arith.constant 0.00999999977 : f32
    %29 = vector.broadcast %cst_12 : f32 to vector<64x1xf32>
    %30 = arith.mulf %29, %26 : vector<64x1xf32>
    %31 = arith.select %28, %26, %30 : vector<64x1xi1>, vector<64x1xf32>
    %32 = vector.extract_strided_slice %3 {offsets = [0, 64], sizes = [64, 32], strides = [1, 1]} : vector<64x96xf32> to vector<64x32xf32>
    %33 = vector.broadcast %5 : vector<1x32xf32> to vector<64x32xf32>
    %34 = arith.mulf %32, %33 : vector<64x32xf32>
    %cst_13 = arith.constant dense<0.000000e+00> : vector<64xf32>
    %35 = vector.multi_reduction <add>, %34, %cst_13 [1] : vector<64x32xf32> to vector<64xf32>
    %36 = vector.shape_cast %35 : vector<64xf32> to vector<64x1xf32>
    %37 = arith.addf %9, %36 : vector<64x1xf32>
    %cst_14 = arith.constant 0.000000e+00 : f32
    %38 = vector.broadcast %cst_14 : f32 to vector<64x1xf32>
    %39 = arith.cmpf ogt, %37, %38 : vector<64x1xf32>
    %cst_15 = arith.constant 0.00999999977 : f32
    %40 = vector.broadcast %cst_15 : f32 to vector<64x1xf32>
    %41 = arith.mulf %40, %37 : vector<64x1xf32>
    %42 = arith.select %39, %37, %41 : vector<64x1xi1>, vector<64x1xf32>
    %43 = arith.maximumf %20, %31 : vector<64x1xf32>
    %44 = arith.maximumf %43, %42 : vector<64x1xf32>
    %45 = arith.subf %20, %44 : vector<64x1xf32>
    %46 = math.exp %45 : vector<64x1xf32>
    %47 = arith.subf %31, %44 : vector<64x1xf32>
    %48 = math.exp %47 : vector<64x1xf32>
    %49 = arith.subf %42, %44 : vector<64x1xf32>
    %50 = math.exp %49 : vector<64x1xf32>
    %51 = arith.addf %46, %48 : vector<64x1xf32>
    %52 = arith.addf %51, %50 : vector<64x1xf32>
    %53 = tpu.reciprocal %52 {approx = true} : vector<64x1xf32> -> vector<64x1xf32>
    %54 = arith.mulf %46, %53 : vector<64x1xf32>
    %55 = vector.extract_strided_slice %3 {offsets = [0, 0], sizes = [64, 32], strides = [1, 1]} : vector<64x96xf32> to vector<64x32xf32>
    %56 = vector.broadcast %54 : vector<64x1xf32> to vector<64x32xf32>
    %57 = arith.mulf %56, %55 : vector<64x32xf32>
    %58 = arith.mulf %48, %53 : vector<64x1xf32>
    %59 = vector.extract_strided_slice %3 {offsets = [0, 32], sizes = [64, 32], strides = [1, 1]} : vector<64x96xf32> to vector<64x32xf32>
    %60 = vector.broadcast %58 : vector<64x1xf32> to vector<64x32xf32>
    %61 = arith.mulf %60, %59 : vector<64x32xf32>
    %62 = arith.addf %57, %61 : vector<64x32xf32>
    %63 = arith.mulf %50, %53 : vector<64x1xf32>
    %64 = vector.extract_strided_slice %3 {offsets = [0, 64], sizes = [64, 32], strides = [1, 1]} : vector<64x96xf32> to vector<64x32xf32>
    %65 = vector.broadcast %63 : vector<64x1xf32> to vector<64x32xf32>
    %66 = arith.mulf %65, %64 : vector<64x32xf32>
    %67 = arith.addf %62, %66 : vector<64x32xf32>
    %cst_16 = arith.constant 0.000000e+00 : f32
    %68 = vector.broadcast %cst_16 : f32 to vector<64x32xf32>
    %69 = arith.cmpf ogt, %67, %68 : vector<64x32xf32>
    %cst_17 = arith.constant 0.000000e+00 : f32
    %70 = vector.broadcast %cst_17 : f32 to vector<64x32xf32>
    %71 = arith.minimumf %67, %70 : vector<64x32xf32>
    %72 = math.exp %71 : vector<64x32xf32>
    %cst_18 = arith.constant 1.000000e+00 : f32
    %73 = vector.broadcast %cst_18 : f32 to vector<64x32xf32>
    %74 = arith.subf %72, %73 : vector<64x32xf32>
    %75 = arith.select %69, %67, %74 : vector<64x32xi1>, vector<64x32xf32>
    %c0_19 = arith.constant 0 : index
    %c0_20 = arith.constant 0 : index
    %76 = vector.load %arg2[%c0_19, %c0_20] : memref<64x128xf32, #tpu.memory_space<vmem>>, vector<64x128xf32>
    %77 = vector.extract_strided_slice %1 {offsets = [1, 0], sizes = [1, 32], strides = [1, 1]} : vector<2x32xf32> to vector<1x32xf32>
    %78 = vector.extract_strided_slice %2 {offsets = [1, 0], sizes = [1, 32], strides = [1, 1]} : vector<2x32xf32> to vector<1x32xf32>
    %79 = vector.broadcast %77 : vector<1x32xf32> to vector<64x32xf32>
    %80 = arith.mulf %0, %79 : vector<64x32xf32>
    %cst_21 = arith.constant dense<0.000000e+00> : vector<64xf32>
    %81 = vector.multi_reduction <add>, %80, %cst_21 [1] : vector<64x32xf32> to vector<64xf32>
    %82 = vector.shape_cast %81 : vector<64xf32> to vector<64x1xf32>
    %83 = vector.extract_strided_slice %76 {offsets = [0, 0], sizes = [64, 32], strides = [1, 1]} : vector<64x128xf32> to vector<64x32xf32>
    %84 = vector.broadcast %78 : vector<1x32xf32> to vector<64x32xf32>
    %85 = arith.mulf %83, %84 : vector<64x32xf32>
    %cst_22 = arith.constant dense<0.000000e+00> : vector<64xf32>
    %86 = vector.multi_reduction <add>, %85, %cst_22 [1] : vector<64x32xf32> to vector<64xf32>
    %87 = vector.shape_cast %86 : vector<64xf32> to vector<64x1xf32>
    %88 = arith.addf %82, %87 : vector<64x1xf32>
    %cst_23 = arith.constant 0.000000e+00 : f32
    %89 = vector.broadcast %cst_23 : f32 to vector<64x1xf32>
    %90 = arith.cmpf ogt, %88, %89 : vector<64x1xf32>
    %cst_24 = arith.constant 0.00999999977 : f32
    %91 = vector.broadcast %cst_24 : f32 to vector<64x1xf32>
    %92 = arith.mulf %91, %88 : vector<64x1xf32>
    %93 = arith.select %90, %88, %92 : vector<64x1xi1>, vector<64x1xf32>
    %94 = vector.extract_strided_slice %76 {offsets = [0, 32], sizes = [64, 32], strides = [1, 1]} : vector<64x128xf32> to vector<64x32xf32>
    %95 = vector.broadcast %78 : vector<1x32xf32> to vector<64x32xf32>
    %96 = arith.mulf %94, %95 : vector<64x32xf32>
    %cst_25 = arith.constant dense<0.000000e+00> : vector<64xf32>
    %97 = vector.multi_reduction <add>, %96, %cst_25 [1] : vector<64x32xf32> to vector<64xf32>
    %98 = vector.shape_cast %97 : vector<64xf32> to vector<64x1xf32>
    %99 = arith.addf %82, %98 : vector<64x1xf32>
    %cst_26 = arith.constant 0.000000e+00 : f32
    %100 = vector.broadcast %cst_26 : f32 to vector<64x1xf32>
    %101 = arith.cmpf ogt, %99, %100 : vector<64x1xf32>
    %cst_27 = arith.constant 0.00999999977 : f32
    %102 = vector.broadcast %cst_27 : f32 to vector<64x1xf32>
    %103 = arith.mulf %102, %99 : vector<64x1xf32>
    %104 = arith.select %101, %99, %103 : vector<64x1xi1>, vector<64x1xf32>
    %105 = vector.extract_strided_slice %76 {offsets = [0, 64], sizes = [64, 32], strides = [1, 1]} : vector<64x128xf32> to vector<64x32xf32>
    %106 = vector.broadcast %78 : vector<1x32xf32> to vector<64x32xf32>
    %107 = arith.mulf %105, %106 : vector<64x32xf32>
    %cst_28 = arith.constant dense<0.000000e+00> : vector<64xf32>
    %108 = vector.multi_reduction <add>, %107, %cst_28 [1] : vector<64x32xf32> to vector<64xf32>
    %109 = vector.shape_cast %108 : vector<64xf32> to vector<64x1xf32>
    %110 = arith.addf %82, %109 : vector<64x1xf32>
    %cst_29 = arith.constant 0.000000e+00 : f32
    %111 = vector.broadcast %cst_29 : f32 to vector<64x1xf32>
    %112 = arith.cmpf ogt, %110, %111 : vector<64x1xf32>
    %cst_30 = arith.constant 0.00999999977 : f32
    %113 = vector.broadcast %cst_30 : f32 to vector<64x1xf32>
    %114 = arith.mulf %113, %110 : vector<64x1xf32>
    %115 = arith.select %112, %110, %114 : vector<64x1xi1>, vector<64x1xf32>
    %116 = vector.extract_strided_slice %76 {offsets = [0, 96], sizes = [64, 32], strides = [1, 1]} : vector<64x128xf32> to vector<64x32xf32>
    %117 = vector.broadcast %78 : vector<1x32xf32> to vector<64x32xf32>
    %118 = arith.mulf %116, %117 : vector<64x32xf32>
    %cst_31 = arith.constant dense<0.000000e+00> : vector<64xf32>
    %119 = vector.multi_reduction <add>, %118, %cst_31 [1] : vector<64x32xf32> to vector<64xf32>
    %120 = vector.shape_cast %119 : vector<64xf32> to vector<64x1xf32>
    %121 = arith.addf %82, %120 : vector<64x1xf32>
    %cst_32 = arith.constant 0.000000e+00 : f32
    %122 = vector.broadcast %cst_32 : f32 to vector<64x1xf32>
    %123 = arith.cmpf ogt, %121, %122 : vector<64x1xf32>
    %cst_33 = arith.constant 0.00999999977 : f32
    %124 = vector.broadcast %cst_33 : f32 to vector<64x1xf32>
    %125 = arith.mulf %124, %121 : vector<64x1xf32>
    %126 = arith.select %123, %121, %125 : vector<64x1xi1>, vector<64x1xf32>
    %127 = arith.maximumf %93, %104 : vector<64x1xf32>
    %128 = arith.maximumf %127, %115 : vector<64x1xf32>
    %129 = arith.maximumf %128, %126 : vector<64x1xf32>
    %130 = arith.subf %93, %129 : vector<64x1xf32>
    %131 = math.exp %130 : vector<64x1xf32>
    %132 = arith.subf %104, %129 : vector<64x1xf32>
    %133 = math.exp %132 : vector<64x1xf32>
    %134 = arith.subf %115, %129 : vector<64x1xf32>
    %135 = math.exp %134 : vector<64x1xf32>
    %136 = arith.subf %126, %129 : vector<64x1xf32>
    %137 = math.exp %136 : vector<64x1xf32>
    %138 = arith.addf %131, %133 : vector<64x1xf32>
    %139 = arith.addf %138, %135 : vector<64x1xf32>
    %140 = arith.addf %139, %137 : vector<64x1xf32>
    %141 = tpu.reciprocal %140 {approx = true} : vector<64x1xf32> -> vector<64x1xf32>
    %142 = arith.mulf %131, %141 : vector<64x1xf32>
    %143 = vector.extract_strided_slice %76 {offsets = [0, 0], sizes = [64, 32], strides = [1, 1]} : vector<64x128xf32> to vector<64x32xf32>
    %144 = vector.broadcast %142 : vector<64x1xf32> to vector<64x32xf32>
    %145 = arith.mulf %144, %143 : vector<64x32xf32>
    %146 = arith.mulf %133, %141 : vector<64x1xf32>
    %147 = vector.extract_strided_slice %76 {offsets = [0, 32], sizes = [64, 32], strides = [1, 1]} : vector<64x128xf32> to vector<64x32xf32>
    %148 = vector.broadcast %146 : vector<64x1xf32> to vector<64x32xf32>
    %149 = arith.mulf %148, %147 : vector<64x32xf32>
    %150 = arith.addf %145, %149 : vector<64x32xf32>
    %151 = arith.mulf %135, %141 : vector<64x1xf32>
    %152 = vector.extract_strided_slice %76 {offsets = [0, 64], sizes = [64, 32], strides = [1, 1]} : vector<64x128xf32> to vector<64x32xf32>
    %153 = vector.broadcast %151 : vector<64x1xf32> to vector<64x32xf32>
    %154 = arith.mulf %153, %152 : vector<64x32xf32>
    %155 = arith.addf %150, %154 : vector<64x32xf32>
    %156 = arith.mulf %137, %141 : vector<64x1xf32>
    %157 = vector.extract_strided_slice %76 {offsets = [0, 96], sizes = [64, 32], strides = [1, 1]} : vector<64x128xf32> to vector<64x32xf32>
    %158 = vector.broadcast %156 : vector<64x1xf32> to vector<64x32xf32>
    %159 = arith.mulf %158, %157 : vector<64x32xf32>
    %160 = arith.addf %155, %159 : vector<64x32xf32>
    %cst_34 = arith.constant 0.000000e+00 : f32
    %161 = vector.broadcast %cst_34 : f32 to vector<64x32xf32>
    %162 = arith.cmpf ogt, %160, %161 : vector<64x32xf32>
    %cst_35 = arith.constant 0.000000e+00 : f32
    %163 = vector.broadcast %cst_35 : f32 to vector<64x32xf32>
    %164 = arith.minimumf %160, %163 : vector<64x32xf32>
    %165 = math.exp %164 : vector<64x32xf32>
    %cst_36 = arith.constant 1.000000e+00 : f32
    %166 = vector.broadcast %cst_36 : f32 to vector<64x32xf32>
    %167 = arith.subf %165, %166 : vector<64x32xf32>
    %168 = arith.select %162, %160, %167 : vector<64x32xi1>, vector<64x32xf32>
    %c0_37 = arith.constant 0 : index
    %c0_38 = arith.constant 0 : index
    %169 = vector.load %arg5[%c0_37, %c0_38] : memref<32x32xf32, #tpu.memory_space<vmem>>, vector<32x32xf32>
    %c0_39 = arith.constant 0 : index
    %c0_40 = arith.constant 0 : index
    %170 = vector.load %arg6[%c0_39, %c0_40] : memref<1x32xf32, #tpu.memory_space<vmem>>, vector<1x32xf32>
    %c0_41 = arith.constant 0 : index
    %c0_42 = arith.constant 0 : index
    %171 = vector.load %arg7[%c0_41, %c0_42] : memref<1x32xf32, #tpu.memory_space<vmem>>, vector<1x32xf32>
    %cst_43 = arith.constant dense<0.000000e+00> : vector<64x32xf32>
    %172 = tpu.matmul %75, %169, %cst_43 {dimension_numbers = #tpu.dot_dimension_numbers<[1], [0], [0], [1], [0, 0, 1, 1], [], []>} : vector<64x32xf32>, vector<32x32xf32>, vector<64x32xf32> -> vector<64x32xf32>
    %173 = vector.broadcast %170 : vector<1x32xf32> to vector<64x32xf32>
    %174 = arith.addf %172, %173 : vector<64x32xf32>
    %175 = math.tanh %174 : vector<64x32xf32>
    %cst_44 = arith.constant dense<0.000000e+00> : vector<32xf32>
    %176 = vector.multi_reduction <add>, %175, %cst_44 [0] : vector<64x32xf32> to vector<32xf32>
    %177 = vector.shape_cast %176 : vector<32xf32> to vector<1x32xf32>
    %cst_45 = arith.constant 6.400000e+01 : f32
    %178 = vector.broadcast %cst_45 : f32 to vector<1x32xf32>
    %179 = arith.divf %177, %178 : vector<1x32xf32>
    %180 = arith.mulf %179, %171 : vector<1x32xf32>
    %cst_46 = arith.constant dense<0.000000e+00> : vector<1xf32>
    %181 = vector.multi_reduction <add>, %180, %cst_46 [1] : vector<1x32xf32> to vector<1xf32>
    %182 = vector.shape_cast %181 : vector<1xf32> to vector<1x1xf32>
    %cst_47 = arith.constant dense<0.000000e+00> : vector<64x32xf32>
    %183 = tpu.matmul %168, %169, %cst_47 {dimension_numbers = #tpu.dot_dimension_numbers<[1], [0], [0], [1], [0, 0, 1, 1], [], []>} : vector<64x32xf32>, vector<32x32xf32>, vector<64x32xf32> -> vector<64x32xf32>
    %184 = vector.broadcast %170 : vector<1x32xf32> to vector<64x32xf32>
    %185 = arith.addf %183, %184 : vector<64x32xf32>
    %186 = math.tanh %185 : vector<64x32xf32>
    %cst_48 = arith.constant dense<0.000000e+00> : vector<32xf32>
    %187 = vector.multi_reduction <add>, %186, %cst_48 [0] : vector<64x32xf32> to vector<32xf32>
    %188 = vector.shape_cast %187 : vector<32xf32> to vector<1x32xf32>
    %cst_49 = arith.constant 6.400000e+01 : f32
    %189 = vector.broadcast %cst_49 : f32 to vector<1x32xf32>
    %190 = arith.divf %188, %189 : vector<1x32xf32>
    %191 = arith.mulf %190, %171 : vector<1x32xf32>
    %cst_50 = arith.constant dense<0.000000e+00> : vector<1xf32>
    %192 = vector.multi_reduction <add>, %191, %cst_50 [1] : vector<1x32xf32> to vector<1xf32>
    %193 = vector.shape_cast %192 : vector<1xf32> to vector<1x1xf32>
    %194 = arith.maximumf %182, %193 : vector<1x1xf32>
    %195 = arith.subf %182, %194 : vector<1x1xf32>
    %196 = math.exp %195 : vector<1x1xf32>
    %197 = arith.subf %193, %194 : vector<1x1xf32>
    %198 = math.exp %197 : vector<1x1xf32>
    %199 = arith.addf %196, %198 : vector<1x1xf32>
    %200 = tpu.reciprocal %199 {approx = true} : vector<1x1xf32> -> vector<1x1xf32>
    %201 = arith.mulf %196, %200 : vector<1x1xf32>
    %202 = vector.broadcast %201 : vector<1x1xf32> to vector<64x32xf32>
    %203 = arith.mulf %75, %202 : vector<64x32xf32>
    %204 = arith.mulf %198, %200 : vector<1x1xf32>
    %205 = vector.broadcast %204 : vector<1x1xf32> to vector<64x32xf32>
    %206 = arith.mulf %168, %205 : vector<64x32xf32>
    %207 = arith.addf %203, %206 : vector<64x32xf32>
    %c0_51 = arith.constant 0 : index
    %c0_52 = arith.constant 0 : index
    %208 = vector.load %arg8[%c0_51, %c0_52] : memref<64x32xf32, #tpu.memory_space<vmem>>, vector<64x32xf32>
    tpu.vector_store %arg8[%c0_51, %c0_52], %207 {strides = array<i32>} : memref<64x32xf32, #tpu.memory_space<vmem>>, vector<64x32xf32>,
    return
  }
}

module attributes {stable_mosaic.version = 11 : i64} {
  func.func @_mp_kernel(%arg0: memref<2x64x64xbf16, #tpu.memory_space<vmem>>, %arg1: memref<64x32xf32, #tpu.memory_space<vmem>>, %arg2: memref<32x64xf32, #tpu.memory_space<vmem>>, %arg3: memref<1x64xf32, #tpu.memory_space<vmem>>, %arg4: memref<32x32xf32, #tpu.memory_space<vmem>>, %arg5: memref<1x32xf32, #tpu.memory_space<vmem>>, %arg6: memref<1x32xf32, #tpu.memory_space<vmem>>, %arg7: memref<192x32xf32, #tpu.memory_space<vmem>>) attributes {dimension_semantics = [], scalar_prefetch = 0 : i64, scratch_operands = 0 : i64, tpu.core_type = #tpu.core_type<tc>} {
    %c0 = arith.constant 0 : index
    %c0_0 = arith.constant 0 : index
    %0 = vector.load %arg1[%c0, %c0_0] : memref<64x32xf32, #tpu.memory_space<vmem>>, vector<64x32xf32>
    %1 = arith.truncf %0 : vector<64x32xf32> to vector<64x32xbf16>
    %c0_1 = arith.constant 0 : index
    %c0_2 = arith.constant 0 : index
    %2 = vector.load %arg2[%c0_1, %c0_2] : memref<32x64xf32, #tpu.memory_space<vmem>>, vector<32x64xf32>
    %3 = arith.truncf %2 : vector<32x64xf32> to vector<32x64xbf16>
    %cst = arith.constant dense<0.000000e+00> : vector<64x64xf32>
    %4 = tpu.matmul %1, %3, %cst {dimension_numbers = #tpu.dot_dimension_numbers<[1], [0], [0], [1], [0, 0, 1, 1], [], []>} : vector<64x32xbf16>, vector<32x64xbf16>, vector<64x64xf32> -> vector<64x64xf32>
    %5 = arith.truncf %4 : vector<64x64xf32> to vector<64x64xbf16>
    %c0_3 = arith.constant 0 : index
    %c0_4 = arith.constant 0 : index
    %6 = vector.load %arg3[%c0_3, %c0_4] : memref<1x64xf32, #tpu.memory_space<vmem>>, vector<1x64xf32>
    %7 = vector.extract_strided_slice %5 {offsets = [0, 0], sizes = [64, 32], strides = [1, 1]} : vector<64x64xbf16> to vector<64x32xbf16>
    %c0_5 = arith.constant 0 : index
    %c0_6 = arith.constant 0 : index
    %c0_7 = arith.constant 0 : index
    %8 = vector.load %arg0[%c0_5, %c0_6, %c0_7] : memref<2x64x64xbf16, #tpu.memory_space<vmem>>, vector<1x64x64xbf16>
    %9 = vector.shape_cast %8 : vector<1x64x64xbf16> to vector<64x64xbf16>
    %cst_8 = arith.constant dense<0.000000e+00> : vector<64x32xf32>
    %10 = tpu.matmul %9, %7, %cst_8 {dimension_numbers = #tpu.dot_dimension_numbers<[1], [0], [0], [1], [0, 0, 1, 1], [], []>} : vector<64x64xbf16>, vector<64x32xbf16>, vector<64x32xf32> -> vector<64x32xf32>
    %11 = vector.extract_strided_slice %6 {offsets = [0, 0], sizes = [1, 32], strides = [1, 1]} : vector<1x64xf32> to vector<1x32xf32>
    %12 = vector.broadcast %11 : vector<1x32xf32> to vector<64x32xf32>
    %13 = arith.addf %10, %12 : vector<64x32xf32>
    %cst_9 = arith.constant 0.000000e+00 : f32
    %14 = vector.broadcast %cst_9 : f32 to vector<64x32xf32>
    %15 = arith.cmpf ogt, %13, %14 : vector<64x32xf32>
    %cst_10 = arith.constant 2.500000e-01 : f32
    %16 = vector.broadcast %cst_10 : f32 to vector<64x32xf32>
    %17 = arith.mulf %16, %13 : vector<64x32xf32>
    %18 = arith.select %15, %13, %17 : vector<64x32xi1>, vector<64x32xf32>
    %c64 = arith.constant 64 : index
    %c0_11 = arith.constant 0 : index
    %19 = vector.load %arg7[%c64, %c0_11] : memref<192x32xf32, #tpu.memory_space<vmem>>, vector<64x32xf32>
    tpu.vector_store %arg7[%c64, %c0_11], %18 {strides = array<i32>} : memref<192x32xf32, #tpu.memory_space<vmem>>, vector<64x32xf32>,
    %20 = vector.extract_strided_slice %5 {offsets = [0, 32], sizes = [64, 32], strides = [1, 1]} : vector<64x64xbf16> to vector<64x32xbf16>
    %c1 = arith.constant 1 : index
    %c0_12 = arith.constant 0 : index
    %c0_13 = arith.constant 0 : index
    %21 = vector.load %arg0[%c1, %c0_12, %c0_13] : memref<2x64x64xbf16, #tpu.memory_space<vmem>>, vector<1x64x64xbf16>
    %22 = vector.shape_cast %21 : vector<1x64x64xbf16> to vector<64x64xbf16>
    %cst_14 = arith.constant dense<0.000000e+00> : vector<64x32xf32>
    %23 = tpu.matmul %22, %20, %cst_14 {dimension_numbers = #tpu.dot_dimension_numbers<[1], [0], [0], [1], [0, 0, 1, 1], [], []>} : vector<64x64xbf16>, vector<64x32xbf16>, vector<64x32xf32> -> vector<64x32xf32>
    %24 = vector.extract_strided_slice %6 {offsets = [0, 32], sizes = [1, 32], strides = [1, 1]} : vector<1x64xf32> to vector<1x32xf32>
    %25 = vector.broadcast %24 : vector<1x32xf32> to vector<64x32xf32>
    %26 = arith.addf %23, %25 : vector<64x32xf32>
    %cst_15 = arith.constant 0.000000e+00 : f32
    %27 = vector.broadcast %cst_15 : f32 to vector<64x32xf32>
    %28 = arith.cmpf ogt, %26, %27 : vector<64x32xf32>
    %cst_16 = arith.constant 2.500000e-01 : f32
    %29 = vector.broadcast %cst_16 : f32 to vector<64x32xf32>
    %30 = arith.mulf %29, %26 : vector<64x32xf32>
    %31 = arith.select %28, %26, %30 : vector<64x32xi1>, vector<64x32xf32>
    %c128 = arith.constant 128 : index
    %c0_17 = arith.constant 0 : index
    %32 = vector.load %arg7[%c128, %c0_17] : memref<192x32xf32, #tpu.memory_space<vmem>>, vector<64x32xf32>
    tpu.vector_store %arg7[%c128, %c0_17], %31 {strides = array<i32>} : memref<192x32xf32, #tpu.memory_space<vmem>>, vector<64x32xf32>,
    %c0_18 = arith.constant 0 : index
    %c0_19 = arith.constant 0 : index
    %33 = vector.load %arg4[%c0_18, %c0_19] : memref<32x32xf32, #tpu.memory_space<vmem>>, vector<32x32xf32>
    %c0_20 = arith.constant 0 : index
    %c0_21 = arith.constant 0 : index
    %34 = vector.load %arg5[%c0_20, %c0_21] : memref<1x32xf32, #tpu.memory_space<vmem>>, vector<1x32xf32>
    %c0_22 = arith.constant 0 : index
    %c0_23 = arith.constant 0 : index
    %35 = vector.load %arg6[%c0_22, %c0_23] : memref<1x32xf32, #tpu.memory_space<vmem>>, vector<1x32xf32>
    %cst_24 = arith.constant dense<0.000000e+00> : vector<64x32xf32>
    %36 = tpu.matmul %18, %33, %cst_24 {dimension_numbers = #tpu.dot_dimension_numbers<[1], [0], [0], [1], [0, 0, 1, 1], [], []>} : vector<64x32xf32>, vector<32x32xf32>, vector<64x32xf32> -> vector<64x32xf32>
    %37 = vector.broadcast %34 : vector<1x32xf32> to vector<64x32xf32>
    %38 = arith.addf %36, %37 : vector<64x32xf32>
    %39 = math.tanh %38 : vector<64x32xf32>
    %cst_25 = arith.constant dense<0.000000e+00> : vector<32xf32>
    %40 = vector.multi_reduction <add>, %39, %cst_25 [0] : vector<64x32xf32> to vector<32xf32>
    %41 = vector.shape_cast %40 : vector<32xf32> to vector<1x32xf32>
    %cst_26 = arith.constant 6.400000e+01 : f32
    %42 = vector.broadcast %cst_26 : f32 to vector<1x32xf32>
    %43 = arith.divf %41, %42 : vector<1x32xf32>
    %44 = arith.mulf %43, %35 : vector<1x32xf32>
    %cst_27 = arith.constant dense<0.000000e+00> : vector<1xf32>
    %45 = vector.multi_reduction <add>, %44, %cst_27 [1] : vector<1x32xf32> to vector<1xf32>
    %46 = vector.shape_cast %45 : vector<1xf32> to vector<1x1xf32>
    %cst_28 = arith.constant dense<0.000000e+00> : vector<64x32xf32>
    %47 = tpu.matmul %31, %33, %cst_28 {dimension_numbers = #tpu.dot_dimension_numbers<[1], [0], [0], [1], [0, 0, 1, 1], [], []>} : vector<64x32xf32>, vector<32x32xf32>, vector<64x32xf32> -> vector<64x32xf32>
    %48 = vector.broadcast %34 : vector<1x32xf32> to vector<64x32xf32>
    %49 = arith.addf %47, %48 : vector<64x32xf32>
    %50 = math.tanh %49 : vector<64x32xf32>
    %cst_29 = arith.constant dense<0.000000e+00> : vector<32xf32>
    %51 = vector.multi_reduction <add>, %50, %cst_29 [0] : vector<64x32xf32> to vector<32xf32>
    %52 = vector.shape_cast %51 : vector<32xf32> to vector<1x32xf32>
    %cst_30 = arith.constant 6.400000e+01 : f32
    %53 = vector.broadcast %cst_30 : f32 to vector<1x32xf32>
    %54 = arith.divf %52, %53 : vector<1x32xf32>
    %55 = arith.mulf %54, %35 : vector<1x32xf32>
    %cst_31 = arith.constant dense<0.000000e+00> : vector<1xf32>
    %56 = vector.multi_reduction <add>, %55, %cst_31 [1] : vector<1x32xf32> to vector<1xf32>
    %57 = vector.shape_cast %56 : vector<1xf32> to vector<1x1xf32>
    %58 = arith.maximumf %46, %57 : vector<1x1xf32>
    %59 = arith.subf %46, %58 : vector<1x1xf32>
    %60 = math.exp %59 : vector<1x1xf32>
    %61 = arith.subf %57, %58 : vector<1x1xf32>
    %62 = math.exp %61 : vector<1x1xf32>
    %63 = arith.addf %60, %62 : vector<1x1xf32>
    %64 = tpu.reciprocal %63 {approx = true} : vector<1x1xf32> -> vector<1x1xf32>
    %65 = arith.mulf %60, %64 : vector<1x1xf32>
    %66 = vector.broadcast %65 : vector<1x1xf32> to vector<64x32xf32>
    %67 = arith.mulf %18, %66 : vector<64x32xf32>
    %68 = arith.mulf %62, %64 : vector<1x1xf32>
    %69 = vector.broadcast %68 : vector<1x1xf32> to vector<64x32xf32>
    %70 = arith.mulf %31, %69 : vector<64x32xf32>
    %71 = arith.addf %67, %70 : vector<64x32xf32>
    %c0_32 = arith.constant 0 : index
    %c0_33 = arith.constant 0 : index
    %72 = vector.load %arg7[%c0_32, %c0_33] : memref<192x32xf32, #tpu.memory_space<vmem>>, vector<64x32xf32>
    tpu.vector_store %arg7[%c0_32, %c0_33], %71 {strides = array<i32>} : memref<192x32xf32, #tpu.memory_space<vmem>>, vector<64x32xf32>,
    return
  }
}

module attributes {stable_mosaic.version = 11 : i64} {
  func.func @_contrast_kernel(%arg0: memref<192x32xf32, #tpu.memory_space<vmem>>, %arg1: memref<64x32xf32, #tpu.memory_space<vmem>>, %arg2: memref<64x64xbf16, #tpu.memory_space<vmem>>, %arg3: memref<64x64xbf16, #tpu.memory_space<vmem>>, %arg4: memref<32x128xf32, #tpu.memory_space<vmem>>, %arg5: memref<1x128xf32, #tpu.memory_space<vmem>>, %arg6: memref<128x128xf32, #tpu.memory_space<vmem>>, %arg7: memref<1x128xf32, #tpu.memory_space<vmem>>, %arg8: memref<1x1xf32, #tpu.memory_space<vmem>>) attributes {dimension_semantics = [], scalar_prefetch = 0 : i64, scratch_operands = 0 : i64, tpu.core_type = #tpu.core_type<tc>} {
    %c0 = arith.constant 0 : index
    %c0_0 = arith.constant 0 : index
    %0 = vector.load %arg0[%c0, %c0_0] : memref<192x32xf32, #tpu.memory_space<vmem>>, vector<192x32xf32>
    %c0_1 = arith.constant 0 : index
    %c0_2 = arith.constant 0 : index
    %1 = vector.load %arg1[%c0_1, %c0_2] : memref<64x32xf32, #tpu.memory_space<vmem>>, vector<64x32xf32>
    %2 = tpu.concatenate %0, %1 in 0 : vector<192x32xf32>, vector<64x32xf32> -> vector<256x32xf32>
    %c0_3 = arith.constant 0 : index
    %c0_4 = arith.constant 0 : index
    %3 = vector.load %arg4[%c0_3, %c0_4] : memref<32x128xf32, #tpu.memory_space<vmem>>, vector<32x128xf32>
    %cst = arith.constant dense<0.000000e+00> : vector<256x128xf32>
    %4 = tpu.matmul %2, %3, %cst {dimension_numbers = #tpu.dot_dimension_numbers<[1], [0], [0], [1], [0, 0, 1, 1], [], []>} : vector<256x32xf32>, vector<32x128xf32>, vector<256x128xf32> -> vector<256x128xf32>
    %c0_5 = arith.constant 0 : index
    %c0_6 = arith.constant 0 : index
    %5 = vector.load %arg5[%c0_5, %c0_6] : memref<1x128xf32, #tpu.memory_space<vmem>>, vector<1x128xf32>
    %6 = vector.broadcast %5 : vector<1x128xf32> to vector<256x128xf32>
    %7 = arith.addf %4, %6 : vector<256x128xf32>
    %cst_7 = arith.constant 0.000000e+00 : f32
    %8 = vector.broadcast %cst_7 : f32 to vector<256x128xf32>
    %9 = arith.cmpf ogt, %7, %8 : vector<256x128xf32>
    %cst_8 = arith.constant 0.000000e+00 : f32
    %10 = vector.broadcast %cst_8 : f32 to vector<256x128xf32>
    %11 = arith.minimumf %7, %10 : vector<256x128xf32>
    %12 = math.exp %11 : vector<256x128xf32>
    %cst_9 = arith.constant 1.000000e+00 : f32
    %13 = vector.broadcast %cst_9 : f32 to vector<256x128xf32>
    %14 = arith.subf %12, %13 : vector<256x128xf32>
    %15 = arith.select %9, %7, %14 : vector<256x128xi1>, vector<256x128xf32>
    %c0_10 = arith.constant 0 : index
    %c0_11 = arith.constant 0 : index
    %16 = vector.load %arg6[%c0_10, %c0_11] : memref<128x128xf32, #tpu.memory_space<vmem>>, vector<128x128xf32>
    %cst_12 = arith.constant dense<0.000000e+00> : vector<256x128xf32>
    %17 = tpu.matmul %15, %16, %cst_12 {dimension_numbers = #tpu.dot_dimension_numbers<[1], [0], [0], [1], [0, 0, 1, 1], [], []>} : vector<256x128xf32>, vector<128x128xf32>, vector<256x128xf32> -> vector<256x128xf32>
    %c0_13 = arith.constant 0 : index
    %c0_14 = arith.constant 0 : index
    %18 = vector.load %arg7[%c0_13, %c0_14] : memref<1x128xf32, #tpu.memory_space<vmem>>, vector<1x128xf32>
    %19 = vector.broadcast %18 : vector<1x128xf32> to vector<256x128xf32>
    %20 = arith.addf %17, %19 : vector<256x128xf32>
    %21 = arith.mulf %20, %20 : vector<256x128xf32>
    %cst_15 = arith.constant dense<0.000000e+00> : vector<256xf32>
    %22 = vector.multi_reduction <add>, %21, %cst_15 [1] : vector<256x128xf32> to vector<256xf32>
    %23 = vector.shape_cast %22 : vector<256xf32> to vector<256x1xf32>
    %cst_16 = arith.constant 9.99999996E-13 : f32
    %24 = vector.broadcast %cst_16 : f32 to vector<256x1xf32>
    %25 = arith.addf %23, %24 : vector<256x1xf32>
    %26 = math.rsqrt %25 : vector<256x1xf32>
    %27 = vector.broadcast %26 : vector<256x1xf32> to vector<256x128xf32>
    %28 = arith.mulf %20, %27 : vector<256x128xf32>
    %29 = arith.truncf %28 : vector<256x128xf32> to vector<256x128xbf16>
    %30 = vector.extract_strided_slice %29 {offsets = [0, 0], sizes = [64, 128], strides = [1, 1]} : vector<256x128xbf16> to vector<64x128xbf16>
    %31 = vector.extract_strided_slice %29 {offsets = [64, 0], sizes = [192, 128], strides = [1, 1]} : vector<256x128xbf16> to vector<192x128xbf16>
    %cst_17 = arith.constant dense<0.000000e+00> : vector<64x192xf32>
    %32 = tpu.matmul %30, %31, %cst_17 {dimension_numbers = #tpu.dot_dimension_numbers<[1], [1], [0], [0], [0, 0, 1, 0], [], []>} : vector<64x128xbf16>, vector<192x128xbf16>, vector<64x192xf32> -> vector<64x192xf32>
    %cst_18 = arith.constant 1.250000e+00 : f32
    %33 = vector.broadcast %cst_18 : f32 to vector<64x192xf32>
    %34 = arith.mulf %32, %33 : vector<64x192xf32>
    %35 = math.exp %34 : vector<64x192xf32>
    %c0_19 = arith.constant 0 : index
    %c0_20 = arith.constant 0 : index
    %36 = vector.load %arg2[%c0_19, %c0_20] : memref<64x64xbf16, #tpu.memory_space<vmem>>, vector<64x64xbf16>
    %37 = arith.extf %36 : vector<64x64xbf16> to vector<64x64xf32>
    %c0_21 = arith.constant 0 : index
    %c0_22 = arith.constant 0 : index
    %38 = vector.load %arg3[%c0_21, %c0_22] : memref<64x64xbf16, #tpu.memory_space<vmem>>, vector<64x64xbf16>
    %39 = arith.extf %38 : vector<64x64xbf16> to vector<64x64xf32>
    %cst_23 = arith.constant 0.000000e+00 : f32
    %40 = vector.broadcast %cst_23 : f32 to vector<1x1xf32>
    %41 = vector.extract_strided_slice %35 {offsets = [0, 0], sizes = [64, 64], strides = [1, 1]} : vector<64x192xf32> to vector<64x64xf32>
    %42 = arith.mulf %41, %37 : vector<64x64xf32>
    %cst_24 = arith.constant dense<0.000000e+00> : vector<64xf32>
    %43 = vector.multi_reduction <add>, %42, %cst_24 [1] : vector<64x64xf32> to vector<64xf32>
    %44 = vector.shape_cast %43 : vector<64xf32> to vector<64x1xf32>
    %cst_25 = arith.constant dense<0.000000e+00> : vector<64xf32>
    %45 = vector.multi_reduction <add>, %41, %cst_25 [1] : vector<64x64xf32> to vector<64xf32>
    %46 = vector.shape_cast %45 : vector<64xf32> to vector<64x1xf32>
    %47 = arith.mulf %41, %39 : vector<64x64xf32>
    %cst_26 = arith.constant dense<0.000000e+00> : vector<64xf32>
    %48 = vector.multi_reduction <add>, %47, %cst_26 [0] : vector<64x64xf32> to vector<64xf32>
    %49 = vector.shape_cast %48 : vector<64xf32> to vector<1x64xf32>
    %cst_27 = arith.constant dense<0.000000e+00> : vector<64xf32>
    %50 = vector.multi_reduction <add>, %41, %cst_27 [0] : vector<64x64xf32> to vector<64xf32>
    %51 = vector.shape_cast %50 : vector<64xf32> to vector<1x64xf32>
    %cst_28 = arith.constant 9.99999993E-9 : f32
    %52 = vector.broadcast %cst_28 : f32 to vector<64x1xf32>
    %53 = arith.addf %46, %52 : vector<64x1xf32>
    %54 = arith.divf %44, %53 : vector<64x1xf32>
    %55 = math.log %54 : vector<64x1xf32>
    %cst_29 = arith.constant dense<0.000000e+00> : vector<1xf32>
    %56 = vector.multi_reduction <add>, %55, %cst_29 [0] : vector<64x1xf32> to vector<1xf32>
    %57 = vector.shape_cast %56 : vector<1xf32> to vector<1x1xf32>
    %cst_30 = arith.constant 0.000000e+00 : f32
    %58 = vector.broadcast %cst_30 : f32 to vector<1x1xf32>
    %59 = arith.subf %58, %57 : vector<1x1xf32>
    %cst_31 = arith.constant 1.562500e-02 : f32
    %60 = vector.broadcast %cst_31 : f32 to vector<1x1xf32>
    %61 = arith.mulf %59, %60 : vector<1x1xf32>
    %cst_32 = arith.constant 9.99999993E-9 : f32
    %62 = vector.broadcast %cst_32 : f32 to vector<1x64xf32>
    %63 = arith.addf %51, %62 : vector<1x64xf32>
    %64 = arith.divf %49, %63 : vector<1x64xf32>
    %65 = math.log %64 : vector<1x64xf32>
    %cst_33 = arith.constant dense<0.000000e+00> : vector<1xf32>
    %66 = vector.multi_reduction <add>, %65, %cst_33 [1] : vector<1x64xf32> to vector<1xf32>
    %67 = vector.shape_cast %66 : vector<1xf32> to vector<1x1xf32>
    %cst_34 = arith.constant 0.000000e+00 : f32
    %68 = vector.broadcast %cst_34 : f32 to vector<1x1xf32>
    %69 = arith.subf %68, %67 : vector<1x1xf32>
    %cst_35 = arith.constant 1.562500e-02 : f32
    %70 = vector.broadcast %cst_35 : f32 to vector<1x1xf32>
    %71 = arith.mulf %69, %70 : vector<1x1xf32>
    %cst_36 = arith.constant 5.000000e-01 : f32
    %72 = vector.broadcast %cst_36 : f32 to vector<1x1xf32>
    %73 = arith.mulf %72, %61 : vector<1x1xf32>
    %cst_37 = arith.constant 5.000000e-01 : f32
    %74 = vector.broadcast %cst_37 : f32 to vector<1x1xf32>
    %75 = arith.mulf %74, %71 : vector<1x1xf32>
    %76 = arith.addf %73, %75 : vector<1x1xf32>
    %cst_38 = arith.constant 5.000000e-01 : f32
    %77 = vector.broadcast %cst_38 : f32 to vector<1x1xf32>
    %78 = arith.mulf %77, %76 : vector<1x1xf32>
    %79 = arith.addf %40, %78 : vector<1x1xf32>
    %80 = vector.extract_strided_slice %35 {offsets = [0, 64], sizes = [64, 64], strides = [1, 1]} : vector<64x192xf32> to vector<64x64xf32>
    %81 = arith.mulf %80, %37 : vector<64x64xf32>
    %cst_39 = arith.constant dense<0.000000e+00> : vector<64xf32>
    %82 = vector.multi_reduction <add>, %81, %cst_39 [1] : vector<64x64xf32> to vector<64xf32>
    %83 = vector.shape_cast %82 : vector<64xf32> to vector<64x1xf32>
    %cst_40 = arith.constant dense<0.000000e+00> : vector<64xf32>
    %84 = vector.multi_reduction <add>, %80, %cst_40 [1] : vector<64x64xf32> to vector<64xf32>
    %85 = vector.shape_cast %84 : vector<64xf32> to vector<64x1xf32>
    %86 = arith.mulf %80, %39 : vector<64x64xf32>
    %cst_41 = arith.constant dense<0.000000e+00> : vector<64xf32>
    %87 = vector.multi_reduction <add>, %86, %cst_41 [0] : vector<64x64xf32> to vector<64xf32>
    %88 = vector.shape_cast %87 : vector<64xf32> to vector<1x64xf32>
    %cst_42 = arith.constant dense<0.000000e+00> : vector<64xf32>
    %89 = vector.multi_reduction <add>, %80, %cst_42 [0] : vector<64x64xf32> to vector<64xf32>
    %90 = vector.shape_cast %89 : vector<64xf32> to vector<1x64xf32>
    %cst_43 = arith.constant 9.99999993E-9 : f32
    %91 = vector.broadcast %cst_43 : f32 to vector<64x1xf32>
    %92 = arith.addf %85, %91 : vector<64x1xf32>
    %93 = arith.divf %83, %92 : vector<64x1xf32>
    %94 = math.log %93 : vector<64x1xf32>
    %cst_44 = arith.constant dense<0.000000e+00> : vector<1xf32>
    %95 = vector.multi_reduction <add>, %94, %cst_44 [0] : vector<64x1xf32> to vector<1xf32>
    %96 = vector.shape_cast %95 : vector<1xf32> to vector<1x1xf32>
    %cst_45 = arith.constant 0.000000e+00 : f32
    %97 = vector.broadcast %cst_45 : f32 to vector<1x1xf32>
    %98 = arith.subf %97, %96 : vector<1x1xf32>
    %cst_46 = arith.constant 1.562500e-02 : f32
    %99 = vector.broadcast %cst_46 : f32 to vector<1x1xf32>
    %100 = arith.mulf %98, %99 : vector<1x1xf32>
    %cst_47 = arith.constant 9.99999993E-9 : f32
    %101 = vector.broadcast %cst_47 : f32 to vector<1x64xf32>
    %102 = arith.addf %90, %101 : vector<1x64xf32>
    %103 = arith.divf %88, %102 : vector<1x64xf32>
    %104 = math.log %103 : vector<1x64xf32>
    %cst_48 = arith.constant dense<0.000000e+00> : vector<1xf32>
    %105 = vector.multi_reduction <add>, %104, %cst_48 [1] : vector<1x64xf32> to vector<1xf32>
    %106 = vector.shape_cast %105 : vector<1xf32> to vector<1x1xf32>
    %cst_49 = arith.constant 0.000000e+00 : f32
    %107 = vector.broadcast %cst_49 : f32 to vector<1x1xf32>
    %108 = arith.subf %107, %106 : vector<1x1xf32>
    %cst_50 = arith.constant 1.562500e-02 : f32
    %109 = vector.broadcast %cst_50 : f32 to vector<1x1xf32>
    %110 = arith.mulf %108, %109 : vector<1x1xf32>
    %cst_51 = arith.constant 5.000000e-01 : f32
    %111 = vector.broadcast %cst_51 : f32 to vector<1x1xf32>
    %112 = arith.mulf %111, %100 : vector<1x1xf32>
    %cst_52 = arith.constant 5.000000e-01 : f32
    %113 = vector.broadcast %cst_52 : f32 to vector<1x1xf32>
    %114 = arith.mulf %113, %110 : vector<1x1xf32>
    %115 = arith.addf %112, %114 : vector<1x1xf32>
    %cst_53 = arith.constant 5.000000e-01 : f32
    %116 = vector.broadcast %cst_53 : f32 to vector<1x1xf32>
    %117 = arith.mulf %116, %115 : vector<1x1xf32>
    %118 = arith.addf %79, %117 : vector<1x1xf32>
    %119 = vector.extract_strided_slice %35 {offsets = [0, 128], sizes = [64, 64], strides = [1, 1]} : vector<64x192xf32> to vector<64x64xf32>
    %120 = arith.mulf %119, %37 : vector<64x64xf32>
    %cst_54 = arith.constant dense<0.000000e+00> : vector<64xf32>
    %121 = vector.multi_reduction <add>, %120, %cst_54 [1] : vector<64x64xf32> to vector<64xf32>
    %122 = vector.shape_cast %121 : vector<64xf32> to vector<64x1xf32>
    %cst_55 = arith.constant dense<0.000000e+00> : vector<64xf32>
    %123 = vector.multi_reduction <add>, %119, %cst_55 [1] : vector<64x64xf32> to vector<64xf32>
    %124 = vector.shape_cast %123 : vector<64xf32> to vector<64x1xf32>
    %125 = arith.mulf %119, %39 : vector<64x64xf32>
    %cst_56 = arith.constant dense<0.000000e+00> : vector<64xf32>
    %126 = vector.multi_reduction <add>, %125, %cst_56 [0] : vector<64x64xf32> to vector<64xf32>
    %127 = vector.shape_cast %126 : vector<64xf32> to vector<1x64xf32>
    %cst_57 = arith.constant dense<0.000000e+00> : vector<64xf32>
    %128 = vector.multi_reduction <add>, %119, %cst_57 [0] : vector<64x64xf32> to vector<64xf32>
    %129 = vector.shape_cast %128 : vector<64xf32> to vector<1x64xf32>
    %cst_58 = arith.constant 9.99999993E-9 : f32
    %130 = vector.broadcast %cst_58 : f32 to vector<64x1xf32>
    %131 = arith.addf %124, %130 : vector<64x1xf32>
    %132 = arith.divf %122, %131 : vector<64x1xf32>
    %133 = math.log %132 : vector<64x1xf32>
    %cst_59 = arith.constant dense<0.000000e+00> : vector<1xf32>
    %134 = vector.multi_reduction <add>, %133, %cst_59 [0] : vector<64x1xf32> to vector<1xf32>
    %135 = vector.shape_cast %134 : vector<1xf32> to vector<1x1xf32>
    %cst_60 = arith.constant 0.000000e+00 : f32
    %136 = vector.broadcast %cst_60 : f32 to vector<1x1xf32>
    %137 = arith.subf %136, %135 : vector<1x1xf32>
    %cst_61 = arith.constant 1.562500e-02 : f32
    %138 = vector.broadcast %cst_61 : f32 to vector<1x1xf32>
    %139 = arith.mulf %137, %138 : vector<1x1xf32>
    %cst_62 = arith.constant 9.99999993E-9 : f32
    %140 = vector.broadcast %cst_62 : f32 to vector<1x64xf32>
    %141 = arith.addf %129, %140 : vector<1x64xf32>
    %142 = arith.divf %127, %141 : vector<1x64xf32>
    %143 = math.log %142 : vector<1x64xf32>
    %cst_63 = arith.constant dense<0.000000e+00> : vector<1xf32>
    %144 = vector.multi_reduction <add>, %143, %cst_63 [1] : vector<1x64xf32> to vector<1xf32>
    %145 = vector.shape_cast %144 : vector<1xf32> to vector<1x1xf32>
    %cst_64 = arith.constant 0.000000e+00 : f32
    %146 = vector.broadcast %cst_64 : f32 to vector<1x1xf32>
    %147 = arith.subf %146, %145 : vector<1x1xf32>
    %cst_65 = arith.constant 1.562500e-02 : f32
    %148 = vector.broadcast %cst_65 : f32 to vector<1x1xf32>
    %149 = arith.mulf %147, %148 : vector<1x1xf32>
    %cst_66 = arith.constant 5.000000e-01 : f32
    %150 = vector.broadcast %cst_66 : f32 to vector<1x1xf32>
    %151 = arith.mulf %150, %139 : vector<1x1xf32>
    %cst_67 = arith.constant 5.000000e-01 : f32
    %152 = vector.broadcast %cst_67 : f32 to vector<1x1xf32>
    %153 = arith.mulf %152, %149 : vector<1x1xf32>
    %154 = arith.addf %151, %153 : vector<1x1xf32>
    %cst_68 = arith.constant 1.000000e+00 : f32
    %155 = vector.broadcast %cst_68 : f32 to vector<1x1xf32>
    %156 = arith.mulf %155, %154 : vector<1x1xf32>
    %157 = arith.addf %118, %156 : vector<1x1xf32>
    %c0_69 = arith.constant 0 : index
    %c0_70 = arith.constant 0 : index
    %158 = vector.load %arg8[%c0_69, %c0_70] : memref<1x1xf32, #tpu.memory_space<vmem>>, vector<1x1xf32>
    tpu.vector_store %arg8[%c0_69, %c0_70], %157 {strides = array<i32>} : memref<1x1xf32, #tpu.memory_space<vmem>>, vector<1x1xf32>,
    return
  }
}

</mosaic_0001>

<llo_original>
// kernel: heco_forward.4
$region0: #{heco_forward.4}
  #allocation0 [shape = 'u32[]', space=smem, size = 0x4, offset = 0x4, fixed_abs, tag = 'smem constant byte address 0x4 - core index']
  #allocation1 [shape = 'u32[72,128]{1,0:T(1,128)}', space=vmem, size = 0x9000, scoped, tag = 'internal scratch']
  %s0 = inlined_call_operand.vmem [shape: f32[64,48], index: 0, kind: input, shape index: {}]
  %s1 = inlined_call_operand.vmem [shape: f32[32,40], index: 1, kind: input, shape index: {}]
  %s2 = inlined_call_operand.vmem [shape: f32[16,24], index: 2, kind: input, shape index: {}]
  %s3 = inlined_call_operand.vmem [shape: f32[48,32], index: 3, kind: input, shape index: {}]
  %s4 = inlined_call_operand.vmem [shape: f32[40,32], index: 4, kind: input, shape index: {}]
  %s5 = inlined_call_operand.vmem [shape: f32[24,32], index: 5, kind: input, shape index: {}]
  %s6 = inlined_call_operand.vmem [shape: f32[1,32], index: 6, kind: input, shape index: {}]
  %s7 = inlined_call_operand.vmem [shape: f32[1,32], index: 7, kind: input, shape index: {}]
  %s8 = inlined_call_operand.vmem [shape: f32[1,32], index: 8, kind: input, shape index: {}]
  %s9 = inlined_call_operand.vmem [shape: f32[64,32], index: 9, kind: output, shape index: {0}]
  %s10 = inlined_call_operand.vmem [shape: f32[32,32], index: 10, kind: output, shape index: {1}]
  %s11 = inlined_call_operand.vmem [shape: f32[16,32], index: 11, kind: output, shape index: {2}]
  %12 = xla_tuple %s9, %s10, %s11
  %s13 = sld [smem:[#allocation0]]
  $region62: #{heco_forward.4} parent=0
    _
  %s15 = ssub.s32 1, %s13
  %s16 = scalar_select 0, %s15, %s13
  // Predicated region
  $region2: #{heco_forward.4} parent=0 // pred_check
    _
  $region3: #{heco_forward.4} parent=0 // pred_check_branch
    %18 = sbr.rel (0) target = $region5
  $region4: #{heco_forward.4} parent=0 // pred_region
    _
  $region5: #{heco_forward.4} parent=0 // pred_fallthru
    _
  // Predicated region
  $region6: #{heco_forward.4} parent=0 // pred_check
    _
  $region7: #{heco_forward.4} parent=0 // pred_check_branch
    %20 = sbr.rel (0) target = $region9
  $region8: #{heco_forward.4} parent=0 // pred_region
    _
  $region9: #{heco_forward.4} parent=0 // pred_fallthru
    _
  // Predicated region
  $region10: #{heco_forward.4} parent=0 // pred_check
    _
  $region11: #{heco_forward.4} parent=0 // pred_check_branch
    %22 = sbr.rel (0) target = $region13
  $region12: #{heco_forward.4} parent=0 // pred_region
    _
  $region13: #{heco_forward.4} parent=0 // pred_fallthru
    _
  // Predicated region
  $region14: #{heco_forward.4} parent=0 // pred_check
    _
  $region15: #{heco_forward.4} parent=0 // pred_check_branch
    %24 = sbr.rel (0) target = $region17
  $region16: #{heco_forward.4} parent=0 // pred_region
    _
  $region17: #{heco_forward.4} parent=0 // pred_fallthru
    _
  // Predicated region
  $region18: #{heco_forward.4} parent=0 // pred_check
    _
  $region19: #{heco_forward.4} parent=0 // pred_check_branch
    %26 = sbr.rel (0) target = $region21
  $region20: #{heco_forward.4} parent=0 // pred_region
    _
  $region21: #{heco_forward.4} parent=0 // pred_fallthru
    _
  // Predicated region
  $region22: #{heco_forward.4} parent=0 // pred_check
    _
  $region23: #{heco_forward.4} parent=0 // pred_check_branch
    %28 = sbr.rel (0) target = $region25
  $region24: #{heco_forward.4} parent=0 // pred_region
    _
  $region25: #{heco_forward.4} parent=0 // pred_fallthru
    _
  // Predicated region
  $region26: #{heco_forward.4} parent=0 // pred_check
    _
  $region27: #{heco_forward.4} parent=0 // pred_check_branch
    %30 = sbr.rel (0) target = $region29
  $region28: #{heco_forward.4} parent=0 // pred_region
    _
  $region29: #{heco_forward.4} parent=0 // pred_fallthru
    _
  // Predicated region
  $region30: #{heco_forward.4} parent=0 // pred_check
    _
  $region31: #{heco_forward.4} parent=0 // pred_check_branch
    %32 = sbr.rel (0) target = $region33
  $region32: #{heco_forward.4} parent=0 // pred_region
    _
  $region33: #{heco_forward.4} parent=0 // pred_fallthru
    _
  // Predicated region
  $region34: #{heco_forward.4} parent=0 // pred_check
    _
  $region35: #{heco_forward.4} parent=0 // pred_check_branch
    %34 = sbr.rel (0) target = $region37
  $region36: #{heco_forward.4} parent=0 // pred_region
    _
  $region37: #{heco_forward.4} parent=0 // pred_fallthru
    _
  %v35 = vld [vmem:[%s0] sm:$0xff]
  %v36 = vld [vmem:[%s0 + $0x8] sm:$0xff]
  %v37 = vld [vmem:[%s0 + $0x10] sm:$0xff]
  %v38 = vld [vmem:[%s0 + $0x18] sm:$0xff]
  %v39 = vld [vmem:[%s0 + $0x20] sm:$0xff]
  %v40 = vld [vmem:[%s0 + $0x28] sm:$0xff]
  %v41 = vld [vmem:[%s0 + $0x30] sm:$0xff]
  %v42 = vld [vmem:[%s0 + $0x38] sm:$0xff]
  %v43 = vld [vmem:[%s3] sm:$0xff]
  %v44 = vld [vmem:[%s3 + $0x8] sm:$0xff]
  %v45 = vld [vmem:[%s3 + $0x10] sm:$0xff]
  %v46 = vld [vmem:[%s3 + $0x18] sm:$0xff]
  %v47 = vld [vmem:[%s3 + $0x20] sm:$0xff]
  %v48 = vld [vmem:[%s3 + $0x28] sm:$0xff]
  %v49 = vld [vmem:[%s6] sm:$0x1]
  %v51 = vperm.slane %v49, 0
  %vm53 = vcmask 392192
  %v55 = vsel %vm53, %v35, 0
  %v58 = vsel %vm53, %v36, 0
  %v61 = vsel %vm53, %v37, 0
  %v64 = vsel %vm53, %v38, 0
  %v67 = vsel %vm53, %v39, 0
  %v70 = vsel %vm53, %v40, 0
  %v73 = vsel %vm53, %v41, 0
  %v76 = vsel %vm53, %v42, 0
  %78 = vmatpush.msra.mxu0 0.0
  %79 = vmatpush.msra.mxu0 0.0
  %80 = vmatpush.msra.mxu0 0.0
  %81 = vmatpush.msra.mxu0 0.0
  %82 = vmatpush.msra.mxu0 0.0
  %83 = vmatpush.msra.mxu0 0.0
  %84 = vmatpush.msra.mxu0 0.0
  %85 = vmatpush.msra.mxu0 0.0
  %86 = vmatpush.msra.mxu0 0.0
  %87 = vmatpush.msra.mxu0 0.0
  %88 = vmatpush.msra.mxu0 %v48
  %89 = vmatpush.msra.mxu0 %v47
  %90 = vmatpush.msra.mxu0 %v46
  %91 = vmatpush.msra.mxu0 %v45
  %92 = vmatpush.msra.mxu0 %v44
  %93 = vmatpush.msra.mxu0 %v43
  %94 = vmatmul.f32.gmra.mxu0 %v55
  %v95 = vpop.f32.mrf.mxu0
  %v96 = vadd.f32 %v51, %v95
  %97 = vmatmul.f32.gmra.mxu0 %v58
  %v98 = vpop.f32.mrf.mxu0
  %v99 = vadd.f32 %v51, %v98
  %100 = vmatmul.f32.gmra.mxu0 %v61
  %v101 = vpop.f32.mrf.mxu0
  %v102 = vadd.f32 %v51, %v101
  %103 = vmatmul.f32.gmra.mxu0 %v64
  %v104 = vpop.f32.mrf.mxu0
  %v105 = vadd.f32 %v51, %v104
  %106 = vmatmul.f32.gmra.mxu0 %v67
  %v107 = vpop.f32.mrf.mxu0
  %v108 = vadd.f32 %v51, %v107
  %109 = vmatmul.f32.gmra.mxu0 %v70
  %v110 = vpop.f32.mrf.mxu0
  %v111 = vadd.f32 %v51, %v110
  %112 = vmatmul.f32.gmra.mxu0 %v73
  %v113 = vpop.f32.mrf.mxu0
  %v114 = vadd.f32 %v51, %v113
  %115 = vmatmul.f32.gmra.mxu0 %v76
  %v116 = vpop.f32.mrf.mxu0
  %v117 = vadd.f32 %v51, %v116
  %118 = vdwg.mxu0
  %vm119 = vcmp.gt.f32.partialorder %v96, 0.0
  %vm120 = vcmp.gt.f32.partialorder %v99, 0.0
  %vm121 = vcmp.gt.f32.partialorder %v102, 0.0
  %vm122 = vcmp.gt.f32.partialorder %v105, 0.0
  %vm123 = vcmp.gt.f32.partialorder %v108, 0.0
  %vm124 = vcmp.gt.f32.partialorder %v111, 0.0
  %vm125 = vcmp.gt.f32.partialorder %v114, 0.0
  %vm126 = vcmp.gt.f32.partialorder %v117, 0.0
  %v127 = vmin.f32 %v96, 0.0
  %v128 = vmin.f32 %v99, 0.0
  %v129 = vmin.f32 %v102, 0.0
  %v130 = vmin.f32 %v105, 0.0
  %v131 = vmin.f32 %v108, 0.0
  %v132 = vmin.f32 %v111, 0.0
  %v133 = vmin.f32 %v114, 0.0
  %v134 = vmin.f32 %v117, 0.0
  %v135 = vmul.f32 %v127, 1.442695
  %v136 = vpow.pop %v135
  %v137 = vmul.f32 %v128, 1.442695
  %v138 = vpow.pop %v137
  %v139 = vmul.f32 %v129, 1.442695
  %v140 = vpow.pop %v139
  %v141 = vmul.f32 %v130, 1.442695
  %v142 = vpow.pop %v141
  %v143 = vmul.f32 %v131, 1.442695
  %v144 = vpow.pop %v143
  %v145 = vmul.f32 %v132, 1.442695
  %v146 = vpow.pop %v145
  %v147 = vmul.f32 %v133, 1.442695
  %v148 = vpow.pop %v147
  %v149 = vmul.f32 %v134, 1.442695
  %v150 = vpow.pop %v149
  %v151 = vsub.f32 %v136, 1.0
  %v152 = vsub.f32 %v138, 1.0
  %v153 = vsub.f32 %v140, 1.0
  %v154 = vsub.f32 %v142, 1.0
  %v155 = vsub.f32 %v144, 1.0
  %v156 = vsub.f32 %v146, 1.0
  %v157 = vsub.f32 %v148, 1.0
  %v158 = vsub.f32 %v150, 1.0
  %v159 = vsel %vm119, %v96, %v151
  %v160 = vsel %vm120, %v99, %v152
  %v161 = vsel %vm121, %v102, %v153
  %v162 = vsel %vm122, %v105, %v154
  %v163 = vsel %vm123, %v108, %v155
  %v164 = vsel %vm124, %v111, %v156
  %v165 = vsel %vm125, %v114, %v157
  %v166 = vsel %vm126, %v117, %v158
  %vm167 = vcmask 261120
  %168 = vst.msk [vmem:[%s9] sm:$0xff] %vm167, %v159
  %169 = vst.msk [vmem:[%s9 + $0x8] sm:$0xff] %vm167, %v160
  %170 = vst.msk [vmem:[%s9 + $0x10] sm:$0xff] %vm167, %v161
  %171 = vst.msk [vmem:[%s9 + $0x18] sm:$0xff] %vm167, %v162
  %172 = vst.msk [vmem:[%s9 + $0x20] sm:$0xff] %vm167, %v163
  %173 = vst.msk [vmem:[%s9 + $0x28] sm:$0xff] %vm167, %v164
  %174 = vst.msk [vmem:[%s9 + $0x30] sm:$0xff] %vm167, %v165
  %175 = vst.msk [vmem:[%s9 + $0x38] sm:$0xff] %vm167, %v166
  %v176 = vld [vmem:[%s1] sm:$0xff]
  %v177 = vld [vmem:[%s1 + $0x8] sm:$0xff]
  %v178 = vld [vmem:[%s1 + $0x10] sm:$0xff]
  %v179 = vld [vmem:[%s1 + $0x18] sm:$0xff]
  %v180 = vld [vmem:[%s4] sm:$0xff]
  %v181 = vld [vmem:[%s4 + $0x8] sm:$0xff]
  %v182 = vld [vmem:[%s4 + $0x10] sm:$0xff]
  %v183 = vld [vmem:[%s4 + $0x18] sm:$0xff]
  %v184 = vld [vmem:[%s4 + $0x20] sm:$0xff]
  %v185 = vld [vmem:[%s7] sm:$0x1]
  %v187 = vperm.slane %v185, 0
  %vm189 = vcmask 326656
  %v191 = vsel %vm189, %v176, 0
  %v194 = vsel %vm189, %v177, 0
  %v197 = vsel %vm189, %v178, 0
  %v200 = vsel %vm189, %v179, 0
  %202 = vmatpush.msra.mxu0 0.0
  %203 = vmatpush.msra.mxu0 0.0
  %204 = vmatpush.msra.mxu0 0.0
  %205 = vmatpush.msra.mxu0 0.0
  %206 = vmatpush.msra.mxu0 0.0
  %207 = vmatpush.msra.mxu0 0.0
  %208 = vmatpush.msra.mxu0 0.0
  %209 = vmatpush.msra.mxu0 0.0
  %210 = vmatpush.msra.mxu0 0.0
  %211 = vmatpush.msra.mxu0 0.0
  %212 = vmatpush.msra.mxu0 0.0
  %213 = vmatpush.msra.mxu0 %v184
  %214 = vmatpush.msra.mxu0 %v183
  %215 = vmatpush.msra.mxu0 %v182
  %216 = vmatpush.msra.mxu0 %v181
  %217 = vmatpush.msra.mxu0 %v180
  %218 = vmatmul.f32.gmra.mxu0 %v191
  %v219 = vpop.f32.mrf.mxu0
  %v220 = vadd.f32 %v187, %v219
  %221 = vmatmul.f32.gmra.mxu0 %v194
  %v222 = vpop.f32.mrf.mxu0
  %v223 = vadd.f32 %v187, %v222
  %224 = vmatmul.f32.gmra.mxu0 %v197
  %v225 = vpop.f32.mrf.mxu0
  %v226 = vadd.f32 %v187, %v225
  %227 = vmatmul.f32.gmra.mxu0 %v200
  %v228 = vpop.f32.mrf.mxu0
  %v229 = vadd.f32 %v187, %v228
  %230 = vdwg.mxu0
  %vm231 = vcmp.gt.f32.partialorder %v220, 0.0
  %vm232 = vcmp.gt.f32.partialorder %v223, 0.0
  %vm233 = vcmp.gt.f32.partialorder %v226, 0.0
  %vm234 = vcmp.gt.f32.partialorder %v229, 0.0
  %v235 = vmin.f32 %v220, 0.0
  %v236 = vmin.f32 %v223, 0.0
  %v237 = vmin.f32 %v226, 0.0
  %v238 = vmin.f32 %v229, 0.0
  %v239 = vmul.f32 %v235, 1.442695
  %v240 = vpow.pop %v239
  %v241 = vmul.f32 %v236, 1.442695
  %v242 = vpow.pop %v241
  %v243 = vmul.f32 %v237, 1.442695
  %v244 = vpow.pop %v243
  %v245 = vmul.f32 %v238, 1.442695
  %v246 = vpow.pop %v245
  %v247 = vsub.f32 %v240, 1.0
  %v248 = vsub.f32 %v242, 1.0
  %v249 = vsub.f32 %v244, 1.0
  %v250 = vsub.f32 %v246, 1.0
  %v251 = vsel %vm231, %v220, %v247
  %v252 = vsel %vm232, %v223, %v248
  %v253 = vsel %vm233, %v226, %v249
  %v254 = vsel %vm234, %v229, %v250
  %255 = vst.msk [vmem:[%s10] sm:$0xff] %vm167, %v251
  %256 = vst.msk [vmem:[%s10 + $0x8] sm:$0xff] %vm167, %v252
  %257 = vst.msk [vmem:[%s10 + $0x10] sm:$0xff] %vm167, %v253
  %258 = vst.msk [vmem:[%s10 + $0x18] sm:$0xff] %vm167, %v254
  %v259 = vld [vmem:[%s2] sm:$0xff]
  %v260 = vld [vmem:[%s2 + $0x8] sm:$0xff]
  %v261 = vld [vmem:[%s5] sm:$0xff]
  %v262 = vld [vmem:[%s5 + $0x8] sm:$0xff]
  %v263 = vld [vmem:[%s5 + $0x10] sm:$0xff]
  %v264 = vld [vmem:[%s8] sm:$0x1]
  %v266 = vperm.slane %v264, 0
  %vm268 = vcmask 195584
  %v270 = vsel %vm268, %v259, 0
  %v273 = vsel %vm268, %v260, 0
  %275 = vmatpush.msra.mxu0 0.0
  %276 = vmatpush.msra.mxu0 0.0
  %277 = vmatpush.msra.mxu0 0.0
  %278 = vmatpush.msra.mxu0 0.0
  %279 = vmatpush.msra.mxu0 0.0
  %280 = vmatpush.msra.mxu0 0.0
  %281 = vmatpush.msra.mxu0 0.0
  %282 = vmatpush.msra.mxu0 0.0
  %283 = vmatpush.msra.mxu0 0.0
  %284 = vmatpush.msra.mxu0 0.0
  %285 = vmatpush.msra.mxu0 0.0
  %286 = vmatpush.msra.mxu0 0.0
  %287 = vmatpush.msra.mxu0 0.0
  %288 = vmatpush.msra.mxu0 %v263
  %289 = vmatpush.msra.mxu0 %v262
  %290 = vmatpush.msra.mxu0 %v261
  %291 = vmatmul.f32.gmra.mxu0 %v270
  %v292 = vpop.f32.mrf.mxu0
  %v293 = vadd.f32 %v266, %v292
  %294 = vmatmul.f32.gmra.mxu0 %v273
  %v295 = vpop.f32.mrf.mxu0
  %v296 = vadd.f32 %v266, %v295
  %297 = vdwg.mxu0
  %vm298 = vcmp.gt.f32.partialorder %v293, 0.0
  %vm299 = vcmp.gt.f32.partialorder %v296, 0.0
  %v300 = vmin.f32 %v293, 0.0
  %v301 = vmin.f32 %v296, 0.0
  %v302 = vmul.f32 %v300, 1.442695
  %v303 = vpow.pop %v302
  %v304 = vmul.f32 %v301, 1.442695
  %v305 = vpow.pop %v304
  %v306 = vsub.f32 %v303, 1.0
  %v307 = vsub.f32 %v305, 1.0
  %v308 = vsel %vm298, %v293, %v306
  %v309 = vsel %vm299, %v296, %v307
  %310 = vst.msk [vmem:[%s11] sm:$0xff] %vm167, %v308
  %311 = vst.msk [vmem:[%s11 + $0x8] sm:$0xff] %vm167, %v309
  // Predicated region
  $region38: #{heco_forward.4} parent=0 // pred_check
    _
  $region39: #{heco_forward.4} parent=0 // pred_check_branch
    %313 = sbr.rel (0) target = $region41
  $region40: #{heco_forward.4} parent=0 // pred_region
    _
  $region41: #{heco_forward.4} parent=0 // pred_fallthru
    _
  // Predicated region
  $region42: #{heco_forward.4} parent=0 // pred_check
    _
  $region43: #{heco_forward.4} parent=0 // pred_check_branch
    %315 = sbr.rel (0) target = $region45
  $region44: #{heco_forward.4} parent=0 // pred_region
    _
  $region45: #{heco_forward.4} parent=0 // pred_fallthru
    _
  // Predicated region
  $region46: #{heco_forward.4} parent=0 // pred_check
    _
  $region47: #{heco_forward.4} parent=0 // pred_check_branch
    %317 = sbr.rel (0) target = $region49
  $region48: #{heco_forward.4} parent=0 // pred_region
    _
  $region49: #{heco_forward.4} parent=0 // pred_fallthru
    _
  // Predicated region
  $region50: #{heco_forward.4} parent=0 // pred_check
    _
  $region51: #{heco_forward.4} parent=0 // pred_check_branch
    %319 = sbr.rel (0) target = $region53
  $region52: #{heco_forward.4} parent=0 // pred_region
    _
  $region53: #{heco_forward.4} parent=0 // pred_fallthru
    _
  // Predicated region
  $region54: #{heco_forward.4} parent=0 // pred_check
    _
  $region55: #{heco_forward.4} parent=0 // pred_check_branch
    %321 = sbr.rel (0) target = $region57
  $region56: #{heco_forward.4} parent=0 // pred_region
    _
  $region57: #{heco_forward.4} parent=0 // pred_fallthru
    _
  // Predicated region
  $region58: #{heco_forward.4} parent=0 // pred_check
    _
  $region59: #{heco_forward.4} parent=0 // pred_check_branch
    %323 = sbr.rel (0) target = $region61
  $region60: #{heco_forward.4} parent=0 // pred_region
    _
  $region61: #{heco_forward.4} parent=0 // pred_fallthru
    _

// kernel: heco_forward.6
$region0: #{heco_forward.6}
  #allocation0 [shape = 'u32[]', space=smem, size = 0x4, offset = 0x4, fixed_abs, tag = 'smem constant byte address 0x4 - core index']
  #allocation1 [shape = 'u32[72,128]{1,0:T(1,128)}', space=vmem, size = 0x9000, scoped, tag = 'internal scratch']
  %s0 = inlined_call_operand.vmem [shape: bf16[2,64,64], index: 0, kind: input, shape index: {}]
  %s1 = inlined_call_operand.vmem [shape: f32[64,32], index: 1, kind: input, shape index: {}]
  %s2 = inlined_call_operand.vmem [shape: f32[32,64], index: 2, kind: input, shape index: {}]
  %s3 = inlined_call_operand.vmem [shape: f32[1,64], index: 3, kind: input, shape index: {}]
  %s4 = inlined_call_operand.vmem [shape: f32[32,32], index: 4, kind: input, shape index: {}]
  %s5 = inlined_call_operand.vmem [shape: f32[1,32], index: 5, kind: input, shape index: {}]
  %s6 = inlined_call_operand.vmem [shape: f32[1,32], index: 6, kind: input, shape index: {}]
  %s7 = inlined_call_operand.vmem [shape: f32[192,32], index: 7, kind: output, shape index: {}]
  %s8 = sld [smem:[#allocation0]]
  $region38: #{heco_forward.6} parent=0
    _
  %s10 = ssub.s32 1, %s8
  %s11 = scalar_select 0, %s10, %s8
  // Predicated region
  $region2: #{heco_forward.6} parent=0 // pred_check
    _
  $region3: #{heco_forward.6} parent=0 // pred_check_branch
    %13 = sbr.rel (0) target = $region5
  $region4: #{heco_forward.6} parent=0 // pred_region
    _
  $region5: #{heco_forward.6} parent=0 // pred_fallthru
    _
  // Predicated region
  $region6: #{heco_forward.6} parent=0 // pred_check
    _
  $region7: #{heco_forward.6} parent=0 // pred_check_branch
    %15 = sbr.rel (0) target = $region9
  $region8: #{heco_forward.6} parent=0 // pred_region
    _
  $region9: #{heco_forward.6} parent=0 // pred_fallthru
    _
  // Predicated region
  $region10: #{heco_forward.6} parent=0 // pred_check
    _
  $region11: #{heco_forward.6} parent=0 // pred_check_branch
    %17 = sbr.rel (0) target = $region13
  $region12: #{heco_forward.6} parent=0 // pred_region
    _
  $region13: #{heco_forward.6} parent=0 // pred_fallthru
    _
  // Predicated region
  $region14: #{heco_forward.6} parent=0 // pred_check
    _
  $region15: #{heco_forward.6} parent=0 // pred_check_branch
    %19 = sbr.rel (0) target = $region17
  $region16: #{heco_forward.6} parent=0 // pred_region
    _
  $region17: #{heco_forward.6} parent=0 // pred_fallthru
    _
  // Predicated region
  $region18: #{heco_forward.6} parent=0 // pred_check
    _
  $region19: #{heco_forward.6} parent=0 // pred_check_branch
    %21 = sbr.rel (0) target = $region21
  $region20: #{heco_forward.6} parent=0 // pred_region
    _
  $region21: #{heco_forward.6} parent=0 // pred_fallthru
    _
  // Predicated region
  $region22: #{heco_forward.6} parent=0 // pred_check
    _
  $region23: #{heco_forward.6} parent=0 // pred_check_branch
    %23 = sbr.rel (0) target = $region25
  $region24: #{heco_forward.6} parent=0 // pred_region
    _
  $region25: #{heco_forward.6} parent=0 // pred_fallthru
    _
  // Predicated region
  $region26: #{heco_forward.6} parent=0 // pred_check
    _
  $region27: #{heco_forward.6} parent=0 // pred_check_branch
    %25 = sbr.rel (0) target = $region29
  $region28: #{heco_forward.6} parent=0 // pred_region
    _
  $region29: #{heco_forward.6} parent=0 // pred_fallthru
    _
  %v27 = vld [vmem:[%s1] sm:$0xff]
  %v28 = vld [vmem:[%s1 + $0x8] sm:$0xff]
  %v29 = vld [vmem:[%s1 + $0x10] sm:$0xff]
  %v30 = vld [vmem:[%s1 + $0x18] sm:$0xff]
  %v31 = vld [vmem:[%s1 + $0x20] sm:$0xff]
  %v32 = vld [vmem:[%s1 + $0x28] sm:$0xff]
  %v33 = vld [vmem:[%s1 + $0x30] sm:$0xff]
  %v34 = vld [vmem:[%s1 + $0x38] sm:$0xff]
  %v35 = vpack.c.bf16 %v28, %v27
  %v36 = vpack.c.bf16 %v30, %v29
  %v37 = vpack.c.bf16 %v32, %v31
  %v38 = vpack.c.bf16 %v34, %v33
  %v39 = vld [vmem:[%s2] sm:$0xff]
  %v40 = vld [vmem:[%s2 + $0x8] sm:$0xff]
  %v41 = vld [vmem:[%s2 + $0x10] sm:$0xff]
  %v42 = vld [vmem:[%s2 + $0x18] sm:$0xff]
  %v43 = vpack.c.bf16 %v40, %v39
  %v44 = vpack.c.bf16 %v42, %v41
  %vm45 = vcmask 261120
  %v47 = vsel %vm45, %v35, 0
  %v50 = vsel %vm45, %v36, 0
  %v53 = vsel %vm45, %v37, 0
  %v56 = vsel %vm45, %v38, 0
  %58 = vmatpush.bf16.msra.mxu0 0
  %59 = vmatpush.bf16.msra.mxu0 0
  %60 = vmatpush.bf16.msra.mxu0 0
  %61 = vmatpush.bf16.msra.mxu0 0
  %62 = vmatpush.bf16.msra.mxu0 0
  %63 = vmatpush.bf16.msra.mxu0 0
  %64 = vmatpush.bf16.msra.mxu0 %v44
  %65 = vmatpush.bf16.msra.mxu0 %v43
  %66 = vmatmul.bf16.gmra.mxu0 %v47
  %v67 = vpop.f32.mrf.mxu0
  %v68 = vadd.f32 0.0, %v67
  %v69 = vpop.f32.mrf.mxu0
  %v70 = vadd.f32 0.0, %v69
  %71 = vmatmul.bf16.gmra.mxu0 %v50
  %v72 = vpop.f32.mrf.mxu0
  %v73 = vadd.f32 0.0, %v72
  %v74 = vpop.f32.mrf.mxu0
  %v75 = vadd.f32 0.0, %v74
  %76 = vmatmul.bf16.gmra.mxu0 %v53
  %v77 = vpop.f32.mrf.mxu0
  %v78 = vadd.f32 0.0, %v77
  %v79 = vpop.f32.mrf.mxu0
  %v80 = vadd.f32 0.0, %v79
  %81 = vmatmul.bf16.gmra.mxu0 %v56
  %v82 = vpop.f32.mrf.mxu0
  %v83 = vadd.f32 0.0, %v82
  %v84 = vpop.f32.mrf.mxu0
  %v85 = vadd.f32 0.0, %v84
  %86 = vdwg.mxu0
  %v87 = vpack.c.bf16 %v68, %v68
  %v88 = vpack.c.bf16 %v70, %v70
  %v89 = vpack.c.bf16 %v73, %v73
  %v90 = vpack.c.bf16 %v75, %v75
  %v91 = vpack.c.bf16 %v78, %v78
  %v92 = vpack.c.bf16 %v80, %v80
  %v93 = vpack.c.bf16 %v83, %v83
  %v94 = vpack.c.bf16 %v85, %v85
  %v95 = vld [vmem:[%s3] sm:$0x1]
  %v96 = vld [vmem:[%s0] sm:$0xf]
  %v97 = vld [vmem:[%s0 + $0x4] sm:$0xf]
  %v98 = vld [vmem:[%s0 + $0x8] sm:$0xf]
  %v99 = vld [vmem:[%s0 + $0xc] sm:$0xf]
  %v100 = vld [vmem:[%s0 + $0x10] sm:$0xf]
  %v101 = vld [vmem:[%s0 + $0x14] sm:$0xf]
  %v102 = vld [vmem:[%s0 + $0x18] sm:$0xf]
  %v103 = vld [vmem:[%s0 + $0x1c] sm:$0xf]
  %v105 = vperm.slane %v95, 0
  %v115 = vunpack.c.l.b16 %v96
  %v116 = vunpack.c.l.b16 %v97
  %v117 = vunpack.c.l.b16 %v98
  %v118 = vunpack.c.l.b16 %v99
  %v119 = vunpack.c.l.b16 %v100
  %v120 = vunpack.c.l.b16 %v101
  %v121 = vunpack.c.l.b16 %v102
  %v122 = vunpack.c.l.b16 %v103
  %v123 = vpack.c.b16 %v116, %v115
  %v124 = vpack.c.b16 %v118, %v117
  %v125 = vpack.c.b16 %v120, %v119
  %v126 = vpack.c.b16 %v122, %v121
  %v135 = vunpack.c.l.b16 %v87
  %v136 = vunpack.c.l.b16 %v88
  %v137 = vunpack.c.l.b16 %v89
  %v138 = vunpack.c.l.b16 %v90
  %v139 = vunpack.c.l.b16 %v91
  %v140 = vunpack.c.l.b16 %v92
  %v141 = vunpack.c.l.b16 %v93
  %v142 = vunpack.c.l.b16 %v94
  %v143 = vpack.c.b16 %v136, %v135
  %v144 = vpack.c.b16 %v138, %v137
  %v145 = vpack.c.b16 %v140, %v139
  %v146 = vpack.c.b16 %v142, %v141
  %vm151 = vcmask 523264
  %v153 = vsel %vm151, %v123, 0
  %v156 = vsel %vm151, %v124, 0
  %v159 = vsel %vm151, %v125, 0
  %v162 = vsel %vm151, %v126, 0
  %164 = vmatpush.bf16.msra.mxu0 0
  %165 = vmatpush.bf16.msra.mxu0 0
  %166 = vmatpush.bf16.msra.mxu0 0
  %167 = vmatpush.bf16.msra.mxu0 0
  %168 = vmatpush.bf16.msra.mxu0 %v146
  %169 = vmatpush.bf16.msra.mxu0 %v145
  %170 = vmatpush.bf16.msra.mxu0 %v144
  %171 = vmatpush.bf16.msra.mxu0 %v143
  %172 = vmatmul.bf16.gmra.mxu0 %v153
  %v173 = vpop.f32.mrf.mxu0
  %v174 = vadd.f32 %v105, %v173
  %v175 = vpop.f32.mrf.mxu0
  %v176 = vadd.f32 %v105, %v175
  %177 = vmatmul.bf16.gmra.mxu0 %v156
  %v178 = vpop.f32.mrf.mxu0
  %v179 = vadd.f32 %v105, %v178
  %v180 = vpop.f32.mrf.mxu0
  %v181 = vadd.f32 %v105, %v180
  %182 = vmatmul.bf16.gmra.mxu0 %v159
  %v183 = vpop.f32.mrf.mxu0
  %v184 = vadd.f32 %v105, %v183
  %v185 = vpop.f32.mrf.mxu0
  %v186 = vadd.f32 %v105, %v185
  %187 = vmatmul.bf16.gmra.mxu0 %v162
  %v188 = vpop.f32.mrf.mxu0
  %v189 = vadd.f32 %v105, %v188
  %v190 = vpop.f32.mrf.mxu0
  %v191 = vadd.f32 %v105, %v190
  %192 = vdwg.mxu0
  %vm193 = vcmp.gt.f32.partialorder %v174, 0.0
  %vm194 = vcmp.gt.f32.partialorder %v176, 0.0
  %vm195 = vcmp.gt.f32.partialorder %v179, 0.0
  %vm196 = vcmp.gt.f32.partialorder %v181, 0.0
  %vm197 = vcmp.gt.f32.partialorder %v184, 0.0
  %vm198 = vcmp.gt.f32.partialorder %v186, 0.0
  %vm199 = vcmp.gt.f32.partialorder %v189, 0.0
  %vm200 = vcmp.gt.f32.partialorder %v191, 0.0
  %v201 = vmul.f32 %v174, 0.25
  %v202 = vmul.f32 %v176, 0.25
  %v203 = vmul.f32 %v179, 0.25
  %v204 = vmul.f32 %v181, 0.25
  %v205 = vmul.f32 %v184, 0.25
  %v206 = vmul.f32 %v186, 0.25
  %v207 = vmul.f32 %v189, 0.25
  %v208 = vmul.f32 %v191, 0.25
  %v209 = vsel %vm193, %v174, %v201
  %v210 = vsel %vm194, %v176, %v202
  %v211 = vsel %vm195, %v179, %v203
  %v212 = vsel %vm196, %v181, %v204
  %v213 = vsel %vm197, %v184, %v205
  %v214 = vsel %vm198, %v186, %v206
  %v215 = vsel %vm199, %v189, %v207
  %v216 = vsel %vm200, %v191, %v208
  %217 = vst.msk [vmem:[%s7 + $0x40] sm:$0xff] %vm45, %v209
  %218 = vst.msk [vmem:[%s7 + $0x48] sm:$0xff] %vm45, %v210
  %219 = vst.msk [vmem:[%s7 + $0x50] sm:$0xff] %vm45, %v211
  %220 = vst.msk [vmem:[%s7 + $0x58] sm:$0xff] %vm45, %v212
  %221 = vst.msk [vmem:[%s7 + $0x60] sm:$0xff] %vm45, %v213
  %222 = vst.msk [vmem:[%s7 + $0x68] sm:$0xff] %vm45, %v214
  %223 = vst.msk [vmem:[%s7 + $0x70] sm:$0xff] %vm45, %v215
  %224 = vst.msk [vmem:[%s7 + $0x78] sm:$0xff] %vm45, %v216
  %s225 = scalar_lea.vmem %s0, 32
  %v226 = vld [vmem:[%s225] sm:$0xf]
  %v227 = vld [vmem:[%s225 + $0x4] sm:$0xf]
  %v228 = vld [vmem:[%s225 + $0x8] sm:$0xf]
  %v229 = vld [vmem:[%s225 + $0xc] sm:$0xf]
  %v230 = vld [vmem:[%s225 + $0x10] sm:$0xf]
  %v231 = vld [vmem:[%s225 + $0x14] sm:$0xf]
  %v232 = vld [vmem:[%s225 + $0x18] sm:$0xf]
  %v233 = vld [vmem:[%s225 + $0x1c] sm:$0xf]
  %v242 = vunpack.c.l.b16 %v226
  %v243 = vunpack.c.l.b16 %v227
  %v244 = vunpack.c.l.b16 %v228
  %v245 = vunpack.c.l.b16 %v229
  %v246 = vunpack.c.l.b16 %v230
  %v247 = vunpack.c.l.b16 %v231
  %v248 = vunpack.c.l.b16 %v232
  %v249 = vunpack.c.l.b16 %v233
  %v250 = vpack.c.b16 %v243, %v242
  %v251 = vpack.c.b16 %v245, %v244
  %v252 = vpack.c.b16 %v247, %v246
  %v253 = vpack.c.b16 %v249, %v248
  %254 = vrot.lane.b32.xlu0 %v143, 96
  %v255 = vpop.permute.xlu0 %254
  %256 = vrot.lane.b32.xlu0 %v144, 96
  %v257 = vpop.permute.xlu0 %256
  %258 = vrot.lane.b32.xlu0 %v145, 96
  %v259 = vpop.permute.xlu0 %258
  %260 = vrot.lane.b32.xlu0 %v146, 96
  %v261 = vpop.permute.xlu0 %260
  %266 = vrot.lane.b32.xlu0 %v105, 96
  %v267 = vpop.permute.xlu0 %266
  %v270 = vsel %vm151, %v250, 0
  %v273 = vsel %vm151, %v251, 0
  %v276 = vsel %vm151, %v252, 0
  %v279 = vsel %vm151, %v253, 0
  %281 = vmatpush.bf16.msra.mxu0 0
  %282 = vmatpush.bf16.msra.mxu0 0
  %283 = vmatpush.bf16.msra.mxu0 0
  %284 = vmatpush.bf16.msra.mxu0 0
  %285 = vmatpush.bf16.msra.mxu0 %v261
  %286 = vmatpush.bf16.msra.mxu0 %v259
  %287 = vmatpush.bf16.msra.mxu0 %v257
  %288 = vmatpush.bf16.msra.mxu0 %v255
  %289 = vmatmul.bf16.gmra.mxu0 %v270
  %v290 = vpop.f32.mrf.mxu0
  %v291 = vadd.f32 %v267, %v290
  %v292 = vpop.f32.mrf.mxu0
  %v293 = vadd.f32 %v267, %v292
  %294 = vmatmul.bf16.gmra.mxu0 %v273
  %v295 = vpop.f32.mrf.mxu0
  %v296 = vadd.f32 %v267, %v295
  %v297 = vpop.f32.mrf.mxu0
  %v298 = vadd.f32 %v267, %v297
  %299 = vmatmul.bf16.gmra.mxu0 %v276
  %v300 = vpop.f32.mrf.mxu0
  %v301 = vadd.f32 %v267, %v300
  %v302 = vpop.f32.mrf.mxu0
  %v303 = vadd.f32 %v267, %v302
  %304 = vmatmul.bf16.gmra.mxu0 %v279
  %v305 = vpop.f32.mrf.mxu0
  %v306 = vadd.f32 %v267, %v305
  %v307 = vpop.f32.mrf.mxu0
  %v308 = vadd.f32 %v267, %v307
  %309 = vdwg.mxu0
  %vm310 = vcmp.gt.f32.partialorder %v291, 0.0
  %vm311 = vcmp.gt.f32.partialorder %v293, 0.0
  %vm312 = vcmp.gt.f32.partialorder %v296, 0.0
  %vm313 = vcmp.gt.f32.partialorder %v298, 0.0
  %vm314 = vcmp.gt.f32.partialorder %v301, 0.0
  %vm315 = vcmp.gt.f32.partialorder %v303, 0.0
  %vm316 = vcmp.gt.f32.partialorder %v306, 0.0
  %vm317 = vcmp.gt.f32.partialorder %v308, 0.0
  %v318 = vmul.f32 %v291, 0.25
  %v319 = vmul.f32 %v293, 0.25
  %v320 = vmul.f32 %v296, 0.25
  %v321 = vmul.f32 %v298, 0.25
  %v322 = vmul.f32 %v301, 0.25
  %v323 = vmul.f32 %v303, 0.25
  %v324 = vmul.f32 %v306, 0.25
  %v325 = vmul.f32 %v308, 0.25
  %v326 = vsel %vm310, %v291, %v318
  %v327 = vsel %vm311, %v293, %v319
  %v328 = vsel %vm312, %v296, %v320
  %v329 = vsel %vm313, %v298, %v321
  %v330 = vsel %vm314, %v301, %v322
  %v331 = vsel %vm315, %v303, %v323
  %v332 = vsel %vm316, %v306, %v324
  %v333 = vsel %vm317, %v308, %v325
  %334 = vst.msk [vmem:[%s7 + $0x80] sm:$0xff] %vm45, %v326
  %335 = vst.msk [vmem:[%s7 + $0x88] sm:$0xff] %vm45, %v327
  %336 = vst.msk [vmem:[%s7 + $0x90] sm:$0xff] %vm45, %v328
  %337 = vst.msk [vmem:[%s7 + $0x98] sm:$0xff] %vm45, %v329
  %338 = vst.msk [vmem:[%s7 + $0xa0] sm:$0xff] %vm45, %v330
  %339 = vst.msk [vmem:[%s7 + $0xa8] sm:$0xff] %vm45, %v331
  %340 = vst.msk [vmem:[%s7 + $0xb0] sm:$0xff] %vm45, %v332
  %341 = vst.msk [vmem:[%s7 + $0xb8] sm:$0xff] %vm45, %v333
  %v342 = vld [vmem:[%s4] sm:$0xff]
  %v343 = vld [vmem:[%s4 + $0x8] sm:$0xff]
  %v344 = vld [vmem:[%s4 + $0x10] sm:$0xff]
  %v345 = vld [vmem:[%s4 + $0x18] sm:$0xff]
  %v346 = vld [vmem:[%s5] sm:$0x1]
  %v347 = vld [vmem:[%s6] sm:$0x1]
  %v349 = vperm.slane %v346, 0
  %v352 = vsel %vm45, %v209, 0
  %v355 = vsel %vm45, %v210, 0
  %v358 = vsel %vm45, %v211, 0
  %v361 = vsel %vm45, %v212, 0
  %v364 = vsel %vm45, %v213, 0
  %v367 = vsel %vm45, %v214, 0
  %v370 = vsel %vm45, %v215, 0
  %v373 = vsel %vm45, %v216, 0
  %375 = vmatpush.msra.mxu0 0.0
  %376 = vmatpush.msra.mxu0 0.0
  %377 = vmatpush.msra.mxu0 0.0
  %378 = vmatpush.msra.mxu0 0.0
  %379 = vmatpush.msra.mxu0 0.0
  %380 = vmatpush.msra.mxu0 0.0
  %381 = vmatpush.msra.mxu0 0.0
  %382 = vmatpush.msra.mxu0 0.0
  %383 = vmatpush.msra.mxu0 0.0
  %384 = vmatpush.msra.mxu0 0.0
  %385 = vmatpush.msra.mxu0 0.0
  %386 = vmatpush.msra.mxu0 0.0
  %387 = vmatpush.msra.mxu0 %v345
  %388 = vmatpush.msra.mxu0 %v344
  %389 = vmatpush.msra.mxu0 %v343
  %390 = vmatpush.msra.mxu0 %v342
  %391 = vmatmul.f32.gmra.mxu0 %v352
  %v392 = vpop.f32.mrf.mxu0
  %v393 = vadd.f32 %v349, %v392
  %394 = vmatmul.f32.gmra.mxu0 %v355
  %v395 = vpop.f32.mrf.mxu0
  %v396 = vadd.f32 %v349, %v395
  %397 = vmatmul.f32.gmra.mxu0 %v358
  %v398 = vpop.f32.mrf.mxu0
  %v399 = vadd.f32 %v349, %v398
  %400 = vmatmul.f32.gmra.mxu0 %v361
  %v401 = vpop.f32.mrf.mxu0
  %v402 = vadd.f32 %v349, %v401
  %403 = vmatmul.f32.gmra.mxu0 %v364
  %v404 = vpop.f32.mrf.mxu0
  %v405 = vadd.f32 %v349, %v404
  %406 = vmatmul.f32.gmra.mxu0 %v367
  %v407 = vpop.f32.mrf.mxu0
  %v408 = vadd.f32 %v349, %v407
  %409 = vmatmul.f32.gmra.mxu0 %v370
  %v410 = vpop.f32.mrf.mxu0
  %v411 = vadd.f32 %v349, %v410
  %412 = vmatmul.f32.gmra.mxu0 %v373
  %v413 = vpop.f32.mrf.mxu0
  %v414 = vadd.f32 %v349, %v413
  %415 = vdwg.mxu0
  %v416 = vtanh.pop %v393
  %v417 = vtanh.pop %v396
  %v418 = vtanh.pop %v399
  %v419 = vtanh.pop %v402
  %v420 = vtanh.pop %v405
  %v421 = vtanh.pop %v408
  %v422 = vtanh.pop %v411
  %v423 = vtanh.pop %v414
  %v424 = vsel %vm45, %v416, 0.0
  %v425 = vsel %vm45, %v417, 0.0
  %v426 = vadd.f32 %v424, %v425
  %v427 = vsel %vm45, %v418, 0.0
  %v428 = vadd.f32 %v426, %v427
  %v429 = vsel %vm45, %v419, 0.0
  %v430 = vadd.f32 %v428, %v429
  %v431 = vsel %vm45, %v420, 0.0
  %v432 = vadd.f32 %v430, %v431
  %v433 = vsel %vm45, %v421, 0.0
  %v434 = vadd.f32 %v432, %v433
  %v435 = vsel %vm45, %v422, 0.0
  %v436 = vadd.f32 %v434, %v435
  %v437 = vsel %vm45, %v423, 0.0
  %v438 = vadd.f32 %v436, %v437
  %v439 = vrot.slane %v438, 4
  %v440 = vadd.f32 %v438, %v439
  %v441 = vrot.slane %v440, 2
  %v442 = vadd.f32 %v440, %v441
  %v443 = vrot.slane %v442, 1
  %v444 = vadd.f32 %v442, %v443
  %v445 = vrcp.pop 64.0
  %v446 = vmul.f32 64.0, %v445
  %v447 = vsub.f32 1.0, %v446
  %v448 = vmul.f32 %v445, %v447
  %v449 = vadd.f32 %v445, %v448
  %vm450 = vweird.f32 %v445
  %v451 = vsel %vm450, %v445, %v449
  %v452 = vmul.f32 %v444, %v451
  %v453 = vmul.f32 %v452, %v347
  %vm454 = vcmask 253952
  %v455 = vsel %vm454, %v453, 0.0
  %456 = vadd.xlane.f32.xlu0 %v455
  %v457 = vpop.xlane.xlu0 %456
  %v459 = vsel %vm45, %v326, 0
  %v462 = vsel %vm45, %v327, 0
  %v465 = vsel %vm45, %v328, 0
  %v468 = vsel %vm45, %v329, 0
  %v471 = vsel %vm45, %v330, 0
  %v474 = vsel %vm45, %v331, 0
  %v477 = vsel %vm45, %v332, 0
  %v480 = vsel %vm45, %v333, 0
  %482 = vmatpush.msra.mxu0 0.0
  %483 = vmatpush.msra.mxu0 0.0
  %484 = vmatpush.msra.mxu0 0.0
  %485 = vmatpush.msra.mxu0 0.0
  %486 = vmatpush.msra.mxu0 0.0
  %487 = vmatpush.msra.mxu0 0.0
  %488 = vmatpush.msra.mxu0 0.0
  %489 = vmatpush.msra.mxu0 0.0
  %490 = vmatpush.msra.mxu0 0.0
  %491 = vmatpush.msra.mxu0 0.0
  %492 = vmatpush.msra.mxu0 0.0
  %493 = vmatpush.msra.mxu0 0.0
  %494 = vmatpush.msra.mxu0 %v345
  %495 = vmatpush.msra.mxu0 %v344
  %496 = vmatpush.msra.mxu0 %v343
  %497 = vmatpush.msra.mxu0 %v342
  %498 = vmatmul.f32.gmra.mxu0 %v459
  %v499 = vpop.f32.mrf.mxu0
  %v500 = vadd.f32 %v349, %v499
  %501 = vmatmul.f32.gmra.mxu0 %v462
  %v502 = vpop.f32.mrf.mxu0
  %v503 = vadd.f32 %v349, %v502
  %504 = vmatmul.f32.gmra.mxu0 %v465
  %v505 = vpop.f32.mrf.mxu0
  %v506 = vadd.f32 %v349, %v505
  %507 = vmatmul.f32.gmra.mxu0 %v468
  %v508 = vpop.f32.mrf.mxu0
  %v509 = vadd.f32 %v349, %v508
  %510 = vmatmul.f32.gmra.mxu0 %v471
  %v511 = vpop.f32.mrf.mxu0
  %v512 = vadd.f32 %v349, %v511
  %513 = vmatmul.f32.gmra.mxu0 %v474
  %v514 = vpop.f32.mrf.mxu0
  %v515 = vadd.f32 %v349, %v514
  %516 = vmatmul.f32.gmra.mxu0 %v477
  %v517 = vpop.f32.mrf.mxu0
  %v518 = vadd.f32 %v349, %v517
  %519 = vmatmul.f32.gmra.mxu0 %v480
  %v520 = vpop.f32.mrf.mxu0
  %v521 = vadd.f32 %v349, %v520
  %522 = vdwg.mxu0
  %v523 = vtanh.pop %v500
  %v524 = vtanh.pop %v503
  %v525 = vtanh.pop %v506
  %v526 = vtanh.pop %v509
  %v527 = vtanh.pop %v512
  %v528 = vtanh.pop %v515
  %v529 = vtanh.pop %v518
  %v530 = vtanh.pop %v521
  %v531 = vsel %vm45, %v523, 0.0
  %v532 = vsel %vm45, %v524, 0.0
  %v533 = vadd.f32 %v531, %v532
  %v534 = vsel %vm45, %v525, 0.0
  %v535 = vadd.f32 %v533, %v534
  %v536 = vsel %vm45, %v526, 0.0
  %v537 = vadd.f32 %v535, %v536
  %v538 = vsel %vm45, %v527, 0.0
  %v539 = vadd.f32 %v537, %v538
  %v540 = vsel %vm45, %v528, 0.0
  %v541 = vadd.f32 %v539, %v540
  %v542 = vsel %vm45, %v529, 0.0
  %v543 = vadd.f32 %v541, %v542
  %v544 = vsel %vm45, %v530, 0.0
  %v545 = vadd.f32 %v543, %v544
  %v546 = vrot.slane %v545, 4
  %v547 = vadd.f32 %v545, %v546
  %v548 = vrot.slane %v547, 2
  %v549 = vadd.f32 %v547, %v548
  %v550 = vrot.slane %v549, 1
  %v551 = vadd.f32 %v549, %v550
  %v552 = vmul.f32 %v551, %v451
  %v553 = vmul.f32 %v552, %v347
  %v554 = vsel %vm454, %v553, 0.0
  %555 = vadd.xlane.f32.xlu0 %v554
  %v556 = vpop.xlane.xlu0 %555
  %v557 = vmax.f32 %v457, %v556
  %v558 = vsub.f32 %v457, %v557
  %v559 = vmul.f32 %v558, 1.442695
  %v560 = vpow.pop %v559
  %v561 = vsub.f32 %v556, %v557
  %v562 = vmul.f32 %v561, 1.442695
  %v563 = vpow.pop %v562
  %v564 = vadd.f32 %v560, %v563
  %v565 = vrcp.pop %v564
  %v566 = vmul.f32 %v560, %v565
  %v567 = vperm.slane %v566, 0
  %v568 = vmul.f32 %v209, %v567
  %v569 = vmul.f32 %v210, %v567
  %v570 = vmul.f32 %v211, %v567
  %v571 = vmul.f32 %v212, %v567
  %v572 = vmul.f32 %v213, %v567
  %v573 = vmul.f32 %v214, %v567
  %v574 = vmul.f32 %v215, %v567
  %v575 = vmul.f32 %v216, %v567
  %v576 = vmul.f32 %v563, %v565
  %v577 = vperm.slane %v576, 0
  %v578 = vmul.f32 %v326, %v577
  %v579 = vmul.f32 %v327, %v577
  %v580 = vmul.f32 %v328, %v577
  %v581 = vmul.f32 %v329, %v577
  %v582 = vmul.f32 %v330, %v577
  %v583 = vmul.f32 %v331, %v577
  %v584 = vmul.f32 %v332, %v577
  %v585 = vmul.f32 %v333, %v577
  %v586 = vadd.f32 %v568, %v578
  %v587 = vadd.f32 %v569, %v579
  %v588 = vadd.f32 %v570, %v580
  %v589 = vadd.f32 %v571, %v581
  %v590 = vadd.f32 %v572, %v582
  %v591 = vadd.f32 %v573, %v583
  %v592 = vadd.f32 %v574, %v584
  %v593 = vadd.f32 %v575, %v585
  %594 = vst.msk [vmem:[%s7] sm:$0xff] %vm45, %v586
  %595 = vst.msk [vmem:[%s7 + $0x8] sm:$0xff] %vm45, %v587
  %596 = vst.msk [vmem:[%s7 + $0x10] sm:$0xff] %vm45, %v588
  %597 = vst.msk [vmem:[%s7 + $0x18] sm:$0xff] %vm45, %v589
  %598 = vst.msk [vmem:[%s7 + $0x20] sm:$0xff] %vm45, %v590
  %599 = vst.msk [vmem:[%s7 + $0x28] sm:$0xff] %vm45, %v591
  %600 = vst.msk [vmem:[%s7 + $0x30] sm:$0xff] %vm45, %v592
  %601 = vst.msk [vmem:[%s7 + $0x38] sm:$0xff] %vm45, %v593
  // Predicated region
  $region30: #{heco_forward.6} parent=0 // pred_check
    _
  $region31: #{heco_forward.6} parent=0 // pred_check_branch
    %603 = sbr.rel (0) target = $region33
  $region32: #{heco_forward.6} parent=0 // pred_region
    _
  $region33: #{heco_forward.6} parent=0 // pred_fallthru
    _
  // Predicated region
  $region34: #{heco_forward.6} parent=0 // pred_check
    _
  $region35: #{heco_forward.6} parent=0 // pred_check_branch
    %605 = sbr.rel (0) target = $region37
  $region36: #{heco_forward.6} parent=0 // pred_region
    _
  $region37: #{heco_forward.6} parent=0 // pred_fallthru
    _

// kernel: heco_forward.5
$region0: #{heco_forward.5}
  #allocation0 [shape = 'u32[]', space=smem, size = 0x4, offset = 0x4, fixed_abs, tag = 'smem constant byte address 0x4 - core index']
  #allocation1 [shape = 'u32[72,128]{1,0:T(1,128)}', space=vmem, size = 0x9000, scoped, tag = 'internal scratch']
  %s0 = inlined_call_operand.vmem [shape: f32[64,32], index: 0, kind: input, shape index: {}]
  %s1 = inlined_call_operand.vmem [shape: f32[64,96], index: 1, kind: input, shape index: {}]
  %s2 = inlined_call_operand.vmem [shape: f32[64,128], index: 2, kind: input, shape index: {}]
  %s3 = inlined_call_operand.vmem [shape: f32[2,32], index: 3, kind: input, shape index: {}]
  %s4 = inlined_call_operand.vmem [shape: f32[2,32], index: 4, kind: input, shape index: {}]
  %s5 = inlined_call_operand.vmem [shape: f32[32,32], index: 5, kind: input, shape index: {}]
  %s6 = inlined_call_operand.vmem [shape: f32[1,32], index: 6, kind: input, shape index: {}]
  %s7 = inlined_call_operand.vmem [shape: f32[1,32], index: 7, kind: input, shape index: {}]
  %s8 = inlined_call_operand.vmem [shape: f32[64,32], index: 8, kind: output, shape index: {}]
  %s9 = sld [smem:[#allocation0]]
  $region42: #{heco_forward.5} parent=0
    _
  %s11 = ssub.s32 1, %s9
  %s12 = scalar_select 0, %s11, %s9
  // Predicated region
  $region2: #{heco_forward.5} parent=0 // pred_check
    _
  $region3: #{heco_forward.5} parent=0 // pred_check_branch
    %14 = sbr.rel (0) target = $region5
  $region4: #{heco_forward.5} parent=0 // pred_region
    _
  $region5: #{heco_forward.5} parent=0 // pred_fallthru
    _
  // Predicated region
  $region6: #{heco_forward.5} parent=0 // pred_check
    _
  $region7: #{heco_forward.5} parent=0 // pred_check_branch
    %16 = sbr.rel (0) target = $region9
  $region8: #{heco_forward.5} parent=0 // pred_region
    _
  $region9: #{heco_forward.5} parent=0 // pred_fallthru
    _
  // Predicated region
  $region10: #{heco_forward.5} parent=0 // pred_check
    _
  $region11: #{heco_forward.5} parent=0 // pred_check_branch
    %18 = sbr.rel (0) target = $region13
  $region12: #{heco_forward.5} parent=0 // pred_region
    _
  $region13: #{heco_forward.5} parent=0 // pred_fallthru
    _
  // Predicated region
  $region14: #{heco_forward.5} parent=0 // pred_check
    _
  $region15: #{heco_forward.5} parent=0 // pred_check_branch
    %20 = sbr.rel (0) target = $region17
  $region16: #{heco_forward.5} parent=0 // pred_region
    _
  $region17: #{heco_forward.5} parent=0 // pred_fallthru
    _
  // Predicated region
  $region18: #{heco_forward.5} parent=0 // pred_check
    _
  $region19: #{heco_forward.5} parent=0 // pred_check_branch
    %22 = sbr.rel (0) target = $region21
  $region20: #{heco_forward.5} parent=0 // pred_region
    _
  $region21: #{heco_forward.5} parent=0 // pred_fallthru
    _
  // Predicated region
  $region22: #{heco_forward.5} parent=0 // pred_check
    _
  $region23: #{heco_forward.5} parent=0 // pred_check_branch
    %24 = sbr.rel (0) target = $region25
  $region24: #{heco_forward.5} parent=0 // pred_region
    _
  $region25: #{heco_forward.5} parent=0 // pred_fallthru
    _
  // Predicated region
  $region26: #{heco_forward.5} parent=0 // pred_check
    _
  $region27: #{heco_forward.5} parent=0 // pred_check_branch
    %26 = sbr.rel (0) target = $region29
  $region28: #{heco_forward.5} parent=0 // pred_region
    _
  $region29: #{heco_forward.5} parent=0 // pred_fallthru
    _
  // Predicated region
  $region30: #{heco_forward.5} parent=0 // pred_check
    _
  $region31: #{heco_forward.5} parent=0 // pred_check_branch
    %28 = sbr.rel (0) target = $region33
  $region32: #{heco_forward.5} parent=0 // pred_region
    _
  $region33: #{heco_forward.5} parent=0 // pred_fallthru
    _
  %v29 = vld [vmem:[%s0] sm:$0xff]
  %v30 = vld [vmem:[%s0 + $0x8] sm:$0xff]
  %v31 = vld [vmem:[%s0 + $0x10] sm:$0xff]
  %v32 = vld [vmem:[%s0 + $0x18] sm:$0xff]
  %v33 = vld [vmem:[%s0 + $0x20] sm:$0xff]
  %v34 = vld [vmem:[%s0 + $0x28] sm:$0xff]
  %v35 = vld [vmem:[%s0 + $0x30] sm:$0xff]
  %v36 = vld [vmem:[%s0 + $0x38] sm:$0xff]
  %v37 = vld [vmem:[%s3] sm:$0x3]
  %v38 = vld [vmem:[%s4] sm:$0x3]
  %v39 = vld [vmem:[%s1] sm:$0xff]
  %v40 = vld [vmem:[%s1 + $0x8] sm:$0xff]
  %v41 = vld [vmem:[%s1 + $0x10] sm:$0xff]
  %v42 = vld [vmem:[%s1 + $0x18] sm:$0xff]
  %v43 = vld [vmem:[%s1 + $0x20] sm:$0xff]
  %v44 = vld [vmem:[%s1 + $0x28] sm:$0xff]
  %v45 = vld [vmem:[%s1 + $0x30] sm:$0xff]
  %v46 = vld [vmem:[%s1 + $0x38] sm:$0xff]
  %v47 = vperm.slane %v37, 0
  %v48 = vmul.f32 %v29, %v47
  %v49 = vmul.f32 %v30, %v47
  %v50 = vmul.f32 %v31, %v47
  %v51 = vmul.f32 %v32, %v47
  %v52 = vmul.f32 %v33, %v47
  %v53 = vmul.f32 %v34, %v47
  %v54 = vmul.f32 %v35, %v47
  %v55 = vmul.f32 %v36, %v47
  %vm56 = vcmask 261120
  %v57 = vsel %vm56, %v48, 0.0
  %58 = vadd.xlane.f32.xlu0 %v57
  %v59 = vpop.xlane.xlu0 %58
  %v60 = vsel %vm56, %v49, 0.0
  %61 = vadd.xlane.f32.xlu0 %v60
  %v62 = vpop.xlane.xlu0 %61
  %v63 = vsel %vm56, %v50, 0.0
  %64 = vadd.xlane.f32.xlu0 %v63
  %v65 = vpop.xlane.xlu0 %64
  %v66 = vsel %vm56, %v51, 0.0
  %67 = vadd.xlane.f32.xlu0 %v66
  %v68 = vpop.xlane.xlu0 %67
  %v69 = vsel %vm56, %v52, 0.0
  %70 = vadd.xlane.f32.xlu0 %v69
  %v71 = vpop.xlane.xlu0 %70
  %v72 = vsel %vm56, %v53, 0.0
  %73 = vadd.xlane.f32.xlu0 %v72
  %v74 = vpop.xlane.xlu0 %73
  %v75 = vsel %vm56, %v54, 0.0
  %76 = vadd.xlane.f32.xlu0 %v75
  %v77 = vpop.xlane.xlu0 %76
  %v78 = vsel %vm56, %v55, 0.0
  %79 = vadd.xlane.f32.xlu0 %v78
  %v80 = vpop.xlane.xlu0 %79
  %v81 = vperm.slane %v38, 0
  %v82 = vmul.f32 %v39, %v81
  %v83 = vmul.f32 %v40, %v81
  %v84 = vmul.f32 %v41, %v81
  %v85 = vmul.f32 %v42, %v81
  %v86 = vmul.f32 %v43, %v81
  %v87 = vmul.f32 %v44, %v81
  %v88 = vmul.f32 %v45, %v81
  %v89 = vmul.f32 %v46, %v81
  %v90 = vsel %vm56, %v82, 0.0
  %91 = vadd.xlane.f32.xlu0 %v90
  %v92 = vpop.xlane.xlu0 %91
  %v93 = vsel %vm56, %v83, 0.0
  %94 = vadd.xlane.f32.xlu0 %v93
  %v95 = vpop.xlane.xlu0 %94
  %v96 = vsel %vm56, %v84, 0.0
  %97 = vadd.xlane.f32.xlu0 %v96
  %v98 = vpop.xlane.xlu0 %97
  %v99 = vsel %vm56, %v85, 0.0
  %100 = vadd.xlane.f32.xlu0 %v99
  %v101 = vpop.xlane.xlu0 %100
  %v102 = vsel %vm56, %v86, 0.0
  %103 = vadd.xlane.f32.xlu0 %v102
  %v104 = vpop.xlane.xlu0 %103
  %v105 = vsel %vm56, %v87, 0.0
  %106 = vadd.xlane.f32.xlu0 %v105
  %v107 = vpop.xlane.xlu0 %106
  %v108 = vsel %vm56, %v88, 0.0
  %109 = vadd.xlane.f32.xlu0 %v108
  %v110 = vpop.xlane.xlu0 %109
  %v111 = vsel %vm56, %v89, 0.0
  %112 = vadd.xlane.f32.xlu0 %v111
  %v113 = vpop.xlane.xlu0 %112
  %v114 = vadd.f32 %v59, %v92
  %v115 = vadd.f32 %v62, %v95
  %v116 = vadd.f32 %v65, %v98
  %v117 = vadd.f32 %v68, %v101
  %v118 = vadd.f32 %v71, %v104
  %v119 = vadd.f32 %v74, %v107
  %v120 = vadd.f32 %v77, %v110
  %v121 = vadd.f32 %v80, %v113
  %vm122 = vcmp.gt.f32.partialorder %v114, 0.0
  %vm123 = vcmp.gt.f32.partialorder %v115, 0.0
  %vm124 = vcmp.gt.f32.partialorder %v116, 0.0
  %vm125 = vcmp.gt.f32.partialorder %v117, 0.0
  %vm126 = vcmp.gt.f32.partialorder %v118, 0.0
  %vm127 = vcmp.gt.f32.partialorder %v119, 0.0
  %vm128 = vcmp.gt.f32.partialorder %v120, 0.0
  %vm129 = vcmp.gt.f32.partialorder %v121, 0.0
  %v130 = vmul.f32 %v114, 0.01
  %v131 = vmul.f32 %v115, 0.01
  %v132 = vmul.f32 %v116, 0.01
  %v133 = vmul.f32 %v117, 0.01
  %v134 = vmul.f32 %v118, 0.01
  %v135 = vmul.f32 %v119, 0.01
  %v136 = vmul.f32 %v120, 0.01
  %v137 = vmul.f32 %v121, 0.01
  %v138 = vsel %vm122, %v114, %v130
  %v139 = vsel %vm123, %v115, %v131
  %v140 = vsel %vm124, %v116, %v132
  %v141 = vsel %vm125, %v117, %v133
  %v142 = vsel %vm126, %v118, %v134
  %v143 = vsel %vm127, %v119, %v135
  %v144 = vsel %vm128, %v120, %v136
  %v145 = vsel %vm129, %v121, %v137
  %147 = vrot.lane.b32.xlu0 %v81, 32
  %v148 = vpop.permute.xlu0 %147
  %v150 = vmul.f32 %v39, %v148
  %v151 = vmul.f32 %v40, %v148
  %v152 = vmul.f32 %v41, %v148
  %v153 = vmul.f32 %v42, %v148
  %v154 = vmul.f32 %v43, %v148
  %v155 = vmul.f32 %v44, %v148
  %v156 = vmul.f32 %v45, %v148
  %v157 = vmul.f32 %v46, %v148
  %166 = vrot.lane.b32.xlu0 %v150, 96
  %v167 = vpop.permute.xlu0 %166
  %168 = vrot.lane.b32.xlu0 %v151, 96
  %v169 = vpop.permute.xlu0 %168
  %170 = vrot.lane.b32.xlu0 %v152, 96
  %v171 = vpop.permute.xlu0 %170
  %172 = vrot.lane.b32.xlu0 %v153, 96
  %v173 = vpop.permute.xlu0 %172
  %174 = vrot.lane.b32.xlu0 %v154, 96
  %v175 = vpop.permute.xlu0 %174
  %176 = vrot.lane.b32.xlu0 %v155, 96
  %v177 = vpop.permute.xlu0 %176
  %178 = vrot.lane.b32.xlu0 %v156, 96
  %v179 = vpop.permute.xlu0 %178
  %180 = vrot.lane.b32.xlu0 %v157, 96
  %v181 = vpop.permute.xlu0 %180
  %v190 = vsel %vm56, %v167, 0.0
  %191 = vadd.xlane.f32.xlu0 %v190
  %v192 = vpop.xlane.xlu0 %191
  %v193 = vsel %vm56, %v169, 0.0
  %194 = vadd.xlane.f32.xlu0 %v193
  %v195 = vpop.xlane.xlu0 %194
  %v196 = vsel %vm56, %v171, 0.0
  %197 = vadd.xlane.f32.xlu0 %v196
  %v198 = vpop.xlane.xlu0 %197
  %v199 = vsel %vm56, %v173, 0.0
  %200 = vadd.xlane.f32.xlu0 %v199
  %v201 = vpop.xlane.xlu0 %200
  %v202 = vsel %vm56, %v175, 0.0
  %203 = vadd.xlane.f32.xlu0 %v202
  %v204 = vpop.xlane.xlu0 %203
  %v205 = vsel %vm56, %v177, 0.0
  %206 = vadd.xlane.f32.xlu0 %v205
  %v207 = vpop.xlane.xlu0 %206
  %v208 = vsel %vm56, %v179, 0.0
  %209 = vadd.xlane.f32.xlu0 %v208
  %v210 = vpop.xlane.xlu0 %209
  %v211 = vsel %vm56, %v181, 0.0
  %212 = vadd.xlane.f32.xlu0 %v211
  %v213 = vpop.xlane.xlu0 %212
  %v214 = vadd.f32 %v59, %v192
  %v215 = vadd.f32 %v62, %v195
  %v216 = vadd.f32 %v65, %v198
  %v217 = vadd.f32 %v68, %v201
  %v218 = vadd.f32 %v71, %v204
  %v219 = vadd.f32 %v74, %v207
  %v220 = vadd.f32 %v77, %v210
  %v221 = vadd.f32 %v80, %v213
  %vm222 = vcmp.gt.f32.partialorder %v214, 0.0
  %vm223 = vcmp.gt.f32.partialorder %v215, 0.0
  %vm224 = vcmp.gt.f32.partialorder %v216, 0.0
  %vm225 = vcmp.gt.f32.partialorder %v217, 0.0
  %vm226 = vcmp.gt.f32.partialorder %v218, 0.0
  %vm227 = vcmp.gt.f32.partialorder %v219, 0.0
  %vm228 = vcmp.gt.f32.partialorder %v220, 0.0
  %vm229 = vcmp.gt.f32.partialorder %v221, 0.0
  %v230 = vmul.f32 %v214, 0.01
  %v231 = vmul.f32 %v215, 0.01
  %v232 = vmul.f32 %v216, 0.01
  %v233 = vmul.f32 %v217, 0.01
  %v234 = vmul.f32 %v218, 0.01
  %v235 = vmul.f32 %v219, 0.01
  %v236 = vmul.f32 %v220, 0.01
  %v237 = vmul.f32 %v221, 0.01
  %v238 = vsel %vm222, %v214, %v230
  %v239 = vsel %vm223, %v215, %v231
  %v240 = vsel %vm224, %v216, %v232
  %v241 = vsel %vm225, %v217, %v233
  %v242 = vsel %vm226, %v218, %v234
  %v243 = vsel %vm227, %v219, %v235
  %v244 = vsel %vm228, %v220, %v236
  %v245 = vsel %vm229, %v221, %v237
  %246 = vrot.lane.b32.xlu0 %v81, 64
  %v247 = vpop.permute.xlu0 %246
  %v249 = vmul.f32 %v39, %v247
  %v250 = vmul.f32 %v40, %v247
  %v251 = vmul.f32 %v41, %v247
  %v252 = vmul.f32 %v42, %v247
  %v253 = vmul.f32 %v43, %v247
  %v254 = vmul.f32 %v44, %v247
  %v255 = vmul.f32 %v45, %v247
  %v256 = vmul.f32 %v46, %v247
  %265 = vrot.lane.b32.xlu0 %v249, 64
  %v266 = vpop.permute.xlu0 %265
  %267 = vrot.lane.b32.xlu0 %v250, 64
  %v268 = vpop.permute.xlu0 %267
  %269 = vrot.lane.b32.xlu0 %v251, 64
  %v270 = vpop.permute.xlu0 %269
  %271 = vrot.lane.b32.xlu0 %v252, 64
  %v272 = vpop.permute.xlu0 %271
  %273 = vrot.lane.b32.xlu0 %v253, 64
  %v274 = vpop.permute.xlu0 %273
  %275 = vrot.lane.b32.xlu0 %v254, 64
  %v276 = vpop.permute.xlu0 %275
  %277 = vrot.lane.b32.xlu0 %v255, 64
  %v278 = vpop.permute.xlu0 %277
  %279 = vrot.lane.b32.xlu0 %v256, 64
  %v280 = vpop.permute.xlu0 %279
  %v289 = vsel %vm56, %v266, 0.0
  %290 = vadd.xlane.f32.xlu0 %v289
  %v291 = vpop.xlane.xlu0 %290
  %v292 = vsel %vm56, %v268, 0.0
  %293 = vadd.xlane.f32.xlu0 %v292
  %v294 = vpop.xlane.xlu0 %293
  %v295 = vsel %vm56, %v270, 0.0
  %296 = vadd.xlane.f32.xlu0 %v295
  %v297 = vpop.xlane.xlu0 %296
  %v298 = vsel %vm56, %v272, 0.0
  %299 = vadd.xlane.f32.xlu0 %v298
  %v300 = vpop.xlane.xlu0 %299
  %v301 = vsel %vm56, %v274, 0.0
  %302 = vadd.xlane.f32.xlu0 %v301
  %v303 = vpop.xlane.xlu0 %302
  %v304 = vsel %vm56, %v276, 0.0
  %305 = vadd.xlane.f32.xlu0 %v304
  %v306 = vpop.xlane.xlu0 %305
  %v307 = vsel %vm56, %v278, 0.0
  %308 = vadd.xlane.f32.xlu0 %v307
  %v309 = vpop.xlane.xlu0 %308
  %v310 = vsel %vm56, %v280, 0.0
  %311 = vadd.xlane.f32.xlu0 %v310
  %v312 = vpop.xlane.xlu0 %311
  %v313 = vadd.f32 %v59, %v291
  %v314 = vadd.f32 %v62, %v294
  %v315 = vadd.f32 %v65, %v297
  %v316 = vadd.f32 %v68, %v300
  %v317 = vadd.f32 %v71, %v303
  %v318 = vadd.f32 %v74, %v306
  %v319 = vadd.f32 %v77, %v309
  %v320 = vadd.f32 %v80, %v312
  %vm321 = vcmp.gt.f32.partialorder %v313, 0.0
  %vm322 = vcmp.gt.f32.partialorder %v314, 0.0
  %vm323 = vcmp.gt.f32.partialorder %v315, 0.0
  %vm324 = vcmp.gt.f32.partialorder %v316, 0.0
  %vm325 = vcmp.gt.f32.partialorder %v317, 0.0
  %vm326 = vcmp.gt.f32.partialorder %v318, 0.0
  %vm327 = vcmp.gt.f32.partialorder %v319, 0.0
  %vm328 = vcmp.gt.f32.partialorder %v320, 0.0
  %v329 = vmul.f32 %v313, 0.01
  %v330 = vmul.f32 %v314, 0.01
  %v331 = vmul.f32 %v315, 0.01
  %v332 = vmul.f32 %v316, 0.01
  %v333 = vmul.f32 %v317, 0.01
  %v334 = vmul.f32 %v318, 0.01
  %v335 = vmul.f32 %v319, 0.01
  %v336 = vmul.f32 %v320, 0.01
  %v337 = vsel %vm321, %v313, %v329
  %v338 = vsel %vm322, %v314, %v330
  %v339 = vsel %vm323, %v315, %v331
  %v340 = vsel %vm324, %v316, %v332
  %v341 = vsel %vm325, %v317, %v333
  %v342 = vsel %vm326, %v318, %v334
  %v343 = vsel %vm327, %v319, %v335
  %v344 = vsel %vm328, %v320, %v336
  %v345 = vmax.f32 %v138, %v238
  %v346 = vmax.f32 %v139, %v239
  %v347 = vmax.f32 %v140, %v240
  %v348 = vmax.f32 %v141, %v241
  %v349 = vmax.f32 %v142, %v242
  %v350 = vmax.f32 %v143, %v243
  %v351 = vmax.f32 %v144, %v244
  %v352 = vmax.f32 %v145, %v245
  %v353 = vmax.f32 %v345, %v337
  %v354 = vmax.f32 %v346, %v338
  %v355 = vmax.f32 %v347, %v339
  %v356 = vmax.f32 %v348, %v340
  %v357 = vmax.f32 %v349, %v341
  %v358 = vmax.f32 %v350, %v342
  %v359 = vmax.f32 %v351, %v343
  %v360 = vmax.f32 %v352, %v344
  %v361 = vsub.f32 %v138, %v353
  %v362 = vsub.f32 %v139, %v354
  %v363 = vsub.f32 %v140, %v355
  %v364 = vsub.f32 %v141, %v356
  %v365 = vsub.f32 %v142, %v357
  %v366 = vsub.f32 %v143, %v358
  %v367 = vsub.f32 %v144, %v359
  %v368 = vsub.f32 %v145, %v360
  %v369 = vmul.f32 %v361, 1.442695
  %v370 = vpow.pop %v369
  %v371 = vmul.f32 %v362, 1.442695
  %v372 = vpow.pop %v371
  %v373 = vmul.f32 %v363, 1.442695
  %v374 = vpow.pop %v373
  %v375 = vmul.f32 %v364, 1.442695
  %v376 = vpow.pop %v375
  %v377 = vmul.f32 %v365, 1.442695
  %v378 = vpow.pop %v377
  %v379 = vmul.f32 %v366, 1.442695
  %v380 = vpow.pop %v379
  %v381 = vmul.f32 %v367, 1.442695
  %v382 = vpow.pop %v381
  %v383 = vmul.f32 %v368, 1.442695
  %v384 = vpow.pop %v383
  %v385 = vsub.f32 %v238, %v353
  %v386 = vsub.f32 %v239, %v354
  %v387 = vsub.f32 %v240, %v355
  %v388 = vsub.f32 %v241, %v356
  %v389 = vsub.f32 %v242, %v357
  %v390 = vsub.f32 %v243, %v358
  %v391 = vsub.f32 %v244, %v359
  %v392 = vsub.f32 %v245, %v360
  %v393 = vmul.f32 %v385, 1.442695
  %v394 = vpow.pop %v393
  %v395 = vmul.f32 %v386, 1.442695
  %v396 = vpow.pop %v395
  %v397 = vmul.f32 %v387, 1.442695
  %v398 = vpow.pop %v397
  %v399 = vmul.f32 %v388, 1.442695
  %v400 = vpow.pop %v399
  %v401 = vmul.f32 %v389, 1.442695
  %v402 = vpow.pop %v401
  %v403 = vmul.f32 %v390, 1.442695
  %v404 = vpow.pop %v403
  %v405 = vmul.f32 %v391, 1.442695
  %v406 = vpow.pop %v405
  %v407 = vmul.f32 %v392, 1.442695
  %v408 = vpow.pop %v407
  %v409 = vsub.f32 %v337, %v353
  %v410 = vsub.f32 %v338, %v354
  %v411 = vsub.f32 %v339, %v355
  %v412 = vsub.f32 %v340, %v356
  %v413 = vsub.f32 %v341, %v357
  %v414 = vsub.f32 %v342, %v358
  %v415 = vsub.f32 %v343, %v359
  %v416 = vsub.f32 %v344, %v360
  %v417 = vmul.f32 %v409, 1.442695
  %v418 = vpow.pop %v417
  %v419 = vmul.f32 %v410, 1.442695
  %v420 = vpow.pop %v419
  %v421 = vmul.f32 %v411, 1.442695
  %v422 = vpow.pop %v421
  %v423 = vmul.f32 %v412, 1.442695
  %v424 = vpow.pop %v423
  %v425 = vmul.f32 %v413, 1.442695
  %v426 = vpow.pop %v425
  %v427 = vmul.f32 %v414, 1.442695
  %v428 = vpow.pop %v427
  %v429 = vmul.f32 %v415, 1.442695
  %v430 = vpow.pop %v429
  %v431 = vmul.f32 %v416, 1.442695
  %v432 = vpow.pop %v431
  %v433 = vadd.f32 %v370, %v394
  %v434 = vadd.f32 %v372, %v396
  %v435 = vadd.f32 %v374, %v398
  %v436 = vadd.f32 %v376, %v400
  %v437 = vadd.f32 %v378, %v402
  %v438 = vadd.f32 %v380, %v404
  %v439 = vadd.f32 %v382, %v406
  %v440 = vadd.f32 %v384, %v408
  %v441 = vadd.f32 %v433, %v418
  %v442 = vadd.f32 %v434, %v420
  %v443 = vadd.f32 %v435, %v422
  %v444 = vadd.f32 %v436, %v424
  %v445 = vadd.f32 %v437, %v426
  %v446 = vadd.f32 %v438, %v428
  %v447 = vadd.f32 %v439, %v430
  %v448 = vadd.f32 %v440, %v432
  %v449 = vrcp.pop %v441
  %v450 = vrcp.pop %v442
  %v451 = vrcp.pop %v443
  %v452 = vrcp.pop %v444
  %v453 = vrcp.pop %v445
  %v454 = vrcp.pop %v446
  %v455 = vrcp.pop %v447
  %v456 = vrcp.pop %v448
  %v457 = vmul.f32 %v370, %v449
  %v458 = vmul.f32 %v372, %v450
  %v459 = vmul.f32 %v374, %v451
  %v460 = vmul.f32 %v376, %v452
  %v461 = vmul.f32 %v378, %v453
  %v462 = vmul.f32 %v380, %v454
  %v463 = vmul.f32 %v382, %v455
  %v464 = vmul.f32 %v384, %v456
  %v465 = vmul.f32 %v457, %v39
  %v466 = vmul.f32 %v458, %v40
  %v467 = vmul.f32 %v459, %v41
  %v468 = vmul.f32 %v460, %v42
  %v469 = vmul.f32 %v461, %v43
  %v470 = vmul.f32 %v462, %v44
  %v471 = vmul.f32 %v463, %v45
  %v472 = vmul.f32 %v464, %v46
  %v473 = vmul.f32 %v394, %v449
  %v474 = vmul.f32 %v396, %v450
  %v475 = vmul.f32 %v398, %v451
  %v476 = vmul.f32 %v400, %v452
  %v477 = vmul.f32 %v402, %v453
  %v478 = vmul.f32 %v404, %v454
  %v479 = vmul.f32 %v406, %v455
  %v480 = vmul.f32 %v408, %v456
  %v481 = vmul.f32 %v473, %v39
  %v482 = vmul.f32 %v474, %v40
  %v483 = vmul.f32 %v475, %v41
  %v484 = vmul.f32 %v476, %v42
  %v485 = vmul.f32 %v477, %v43
  %v486 = vmul.f32 %v478, %v44
  %v487 = vmul.f32 %v479, %v45
  %v488 = vmul.f32 %v480, %v46
  %497 = vrot.lane.b32.xlu0 %v481, 96
  %v498 = vpop.permute.xlu0 %497
  %499 = vrot.lane.b32.xlu0 %v482, 96
  %v500 = vpop.permute.xlu0 %499
  %501 = vrot.lane.b32.xlu0 %v483, 96
  %v502 = vpop.permute.xlu0 %501
  %503 = vrot.lane.b32.xlu0 %v484, 96
  %v504 = vpop.permute.xlu0 %503
  %505 = vrot.lane.b32.xlu0 %v485, 96
  %v506 = vpop.permute.xlu0 %505
  %507 = vrot.lane.b32.xlu0 %v486, 96
  %v508 = vpop.permute.xlu0 %507
  %509 = vrot.lane.b32.xlu0 %v487, 96
  %v510 = vpop.permute.xlu0 %509
  %511 = vrot.lane.b32.xlu0 %v488, 96
  %v512 = vpop.permute.xlu0 %511
  %v521 = vadd.f32 %v465, %v498
  %v522 = vadd.f32 %v466, %v500
  %v523 = vadd.f32 %v467, %v502
  %v524 = vadd.f32 %v468, %v504
  %v525 = vadd.f32 %v469, %v506
  %v526 = vadd.f32 %v470, %v508
  %v527 = vadd.f32 %v471, %v510
  %v528 = vadd.f32 %v472, %v512
  %v529 = vmul.f32 %v418, %v449
  %v530 = vmul.f32 %v420, %v450
  %v531 = vmul.f32 %v422, %v451
  %v532 = vmul.f32 %v424, %v452
  %v533 = vmul.f32 %v426, %v453
  %v534 = vmul.f32 %v428, %v454
  %v535 = vmul.f32 %v430, %v455
  %v536 = vmul.f32 %v432, %v456
  %v537 = vmul.f32 %v529, %v39
  %v538 = vmul.f32 %v530, %v40
  %v539 = vmul.f32 %v531, %v41
  %v540 = vmul.f32 %v532, %v42
  %v541 = vmul.f32 %v533, %v43
  %v542 = vmul.f32 %v534, %v44
  %v543 = vmul.f32 %v535, %v45
  %v544 = vmul.f32 %v536, %v46
  %553 = vrot.lane.b32.xlu0 %v537, 64
  %v554 = vpop.permute.xlu0 %553
  %555 = vrot.lane.b32.xlu0 %v538, 64
  %v556 = vpop.permute.xlu0 %555
  %557 = vrot.lane.b32.xlu0 %v539, 64
  %v558 = vpop.permute.xlu0 %557
  %559 = vrot.lane.b32.xlu0 %v540, 64
  %v560 = vpop.permute.xlu0 %559
  %561 = vrot.lane.b32.xlu0 %v541, 64
  %v562 = vpop.permute.xlu0 %561
  %563 = vrot.lane.b32.xlu0 %v542, 64
  %v564 = vpop.permute.xlu0 %563
  %565 = vrot.lane.b32.xlu0 %v543, 64
  %v566 = vpop.permute.xlu0 %565
  %567 = vrot.lane.b32.xlu0 %v544, 64
  %v568 = vpop.permute.xlu0 %567
  %v577 = vadd.f32 %v521, %v554
  %v578 = vadd.f32 %v522, %v556
  %v579 = vadd.f32 %v523, %v558
  %v580 = vadd.f32 %v524, %v560
  %v581 = vadd.f32 %v525, %v562
  %v582 = vadd.f32 %v526, %v564
  %v583 = vadd.f32 %v527, %v566
  %v584 = vadd.f32 %v528, %v568
  %vm585 = vcmp.gt.f32.partialorder %v577, 0.0
  %vm586 = vcmp.gt.f32.partialorder %v578, 0.0
  %vm587 = vcmp.gt.f32.partialorder %v579, 0.0
  %vm588 = vcmp.gt.f32.partialorder %v580, 0.0
  %vm589 = vcmp.gt.f32.partialorder %v581, 0.0
  %vm590 = vcmp.gt.f32.partialorder %v582, 0.0
  %vm591 = vcmp.gt.f32.partialorder %v583, 0.0
  %vm592 = vcmp.gt.f32.partialorder %v584, 0.0
  %v593 = vmin.f32 %v577, 0.0
  %v594 = vmin.f32 %v578, 0.0
  %v595 = vmin.f32 %v579, 0.0
  %v596 = vmin.f32 %v580, 0.0
  %v597 = vmin.f32 %v581, 0.0
  %v598 = vmin.f32 %v582, 0.0
  %v599 = vmin.f32 %v583, 0.0
  %v600 = vmin.f32 %v584, 0.0
  %v601 = vmul.f32 %v593, 1.442695
  %v602 = vpow.pop %v601
  %v603 = vmul.f32 %v594, 1.442695
  %v604 = vpow.pop %v603
  %v605 = vmul.f32 %v595, 1.442695
  %v606 = vpow.pop %v605
  %v607 = vmul.f32 %v596, 1.442695
  %v608 = vpow.pop %v607
  %v609 = vmul.f32 %v597, 1.442695
  %v610 = vpow.pop %v609
  %v611 = vmul.f32 %v598, 1.442695
  %v612 = vpow.pop %v611
  %v613 = vmul.f32 %v599, 1.442695
  %v614 = vpow.pop %v613
  %v615 = vmul.f32 %v600, 1.442695
  %v616 = vpow.pop %v615
  %v617 = vsub.f32 %v602, 1.0
  %v618 = vsub.f32 %v604, 1.0
  %v619 = vsub.f32 %v606, 1.0
  %v620 = vsub.f32 %v608, 1.0
  %v621 = vsub.f32 %v610, 1.0
  %v622 = vsub.f32 %v612, 1.0
  %v623 = vsub.f32 %v614, 1.0
  %v624 = vsub.f32 %v616, 1.0
  %v625 = vsel %vm585, %v577, %v617
  %v626 = vsel %vm586, %v578, %v618
  %v627 = vsel %vm587, %v579, %v619
  %v628 = vsel %vm588, %v580, %v620
  %v629 = vsel %vm589, %v581, %v621
  %v630 = vsel %vm590, %v582, %v622
  %v631 = vsel %vm591, %v583, %v623
  %v632 = vsel %vm592, %v584, %v624
  %v633 = vld [vmem:[%s2] sm:$0xff]
  %v634 = vld [vmem:[%s2 + $0x8] sm:$0xff]
  %v635 = vld [vmem:[%s2 + $0x10] sm:$0xff]
  %v636 = vld [vmem:[%s2 + $0x18] sm:$0xff]
  %v637 = vld [vmem:[%s2 + $0x20] sm:$0xff]
  %v638 = vld [vmem:[%s2 + $0x28] sm:$0xff]
  %v639 = vld [vmem:[%s2 + $0x30] sm:$0xff]
  %v640 = vld [vmem:[%s2 + $0x38] sm:$0xff]
  %v641 = vperm.slane %v37, 1
  %v642 = vmul.f32 %v29, %v641
  %v643 = vmul.f32 %v30, %v641
  %v644 = vmul.f32 %v31, %v641
  %v645 = vmul.f32 %v32, %v641
  %v646 = vmul.f32 %v33, %v641
  %v647 = vmul.f32 %v34, %v641
  %v648 = vmul.f32 %v35, %v641
  %v649 = vmul.f32 %v36, %v641
  %v650 = vsel %vm56, %v642, 0.0
  %651 = vadd.xlane.f32.xlu0 %v650
  %v652 = vpop.xlane.xlu0 %651
  %v653 = vsel %vm56, %v643, 0.0
  %654 = vadd.xlane.f32.xlu0 %v653
  %v655 = vpop.xlane.xlu0 %654
  %v656 = vsel %vm56, %v644, 0.0
  %657 = vadd.xlane.f32.xlu0 %v656
  %v658 = vpop.xlane.xlu0 %657
  %v659 = vsel %vm56, %v645, 0.0
  %660 = vadd.xlane.f32.xlu0 %v659
  %v661 = vpop.xlane.xlu0 %660
  %v662 = vsel %vm56, %v646, 0.0
  %663 = vadd.xlane.f32.xlu0 %v662
  %v664 = vpop.xlane.xlu0 %663
  %v665 = vsel %vm56, %v647, 0.0
  %666 = vadd.xlane.f32.xlu0 %v665
  %v667 = vpop.xlane.xlu0 %666
  %v668 = vsel %vm56, %v648, 0.0
  %669 = vadd.xlane.f32.xlu0 %v668
  %v670 = vpop.xlane.xlu0 %669
  %v671 = vsel %vm56, %v649, 0.0
  %672 = vadd.xlane.f32.xlu0 %v671
  %v673 = vpop.xlane.xlu0 %672
  %v674 = vperm.slane %v38, 1
  %v675 = vmul.f32 %v633, %v674
  %v676 = vmul.f32 %v634, %v674
  %v677 = vmul.f32 %v635, %v674
  %v678 = vmul.f32 %v636, %v674
  %v679 = vmul.f32 %v637, %v674
  %v680 = vmul.f32 %v638, %v674
  %v681 = vmul.f32 %v639, %v674
  %v682 = vmul.f32 %v640, %v674
  %v683 = vsel %vm56, %v675, 0.0
  %684 = vadd.xlane.f32.xlu0 %v683
  %v685 = vpop.xlane.xlu0 %684
  %v686 = vsel %vm56, %v676, 0.0
  %687 = vadd.xlane.f32.xlu0 %v686
  %v688 = vpop.xlane.xlu0 %687
  %v689 = vsel %vm56, %v677, 0.0
  %690 = vadd.xlane.f32.xlu0 %v689
  %v691 = vpop.xlane.xlu0 %690
  %v692 = vsel %vm56, %v678, 0.0
  %693 = vadd.xlane.f32.xlu0 %v692
  %v694 = vpop.xlane.xlu0 %693
  %v695 = vsel %vm56, %v679, 0.0
  %696 = vadd.xlane.f32.xlu0 %v695
  %v697 = vpop.xlane.xlu0 %696
  %v698 = vsel %vm56, %v680, 0.0
  %699 = vadd.xlane.f32.xlu0 %v698
  %v700 = vpop.xlane.xlu0 %699
  %v701 = vsel %vm56, %v681, 0.0
  %702 = vadd.xlane.f32.xlu0 %v701
  %v703 = vpop.xlane.xlu0 %702
  %v704 = vsel %vm56, %v682, 0.0
  %705 = vadd.xlane.f32.xlu0 %v704
  %v706 = vpop.xlane.xlu0 %705
  %v707 = vadd.f32 %v652, %v685
  %v708 = vadd.f32 %v655, %v688
  %v709 = vadd.f32 %v658, %v691
  %v710 = vadd.f32 %v661, %v694
  %v711 = vadd.f32 %v664, %v697
  %v712 = vadd.f32 %v667, %v700
  %v713 = vadd.f32 %v670, %v703
  %v714 = vadd.f32 %v673, %v706
  %vm715 = vcmp.gt.f32.partialorder %v707, 0.0
  %vm716 = vcmp.gt.f32.partialorder %v708, 0.0
  %vm717 = vcmp.gt.f32.partialorder %v709, 0.0
  %vm718 = vcmp.gt.f32.partialorder %v710, 0.0
  %vm719 = vcmp.gt.f32.partialorder %v711, 0.0
  %vm720 = vcmp.gt.f32.partialorder %v712, 0.0
  %vm721 = vcmp.gt.f32.partialorder %v713, 0.0
  %vm722 = vcmp.gt.f32.partialorder %v714, 0.0
  %v723 = vmul.f32 %v707, 0.01
  %v724 = vmul.f32 %v708, 0.01
  %v725 = vmul.f32 %v709, 0.01
  %v726 = vmul.f32 %v710, 0.01
  %v727 = vmul.f32 %v711, 0.01
  %v728 = vmul.f32 %v712, 0.01
  %v729 = vmul.f32 %v713, 0.01
  %v730 = vmul.f32 %v714, 0.01
  %v731 = vsel %vm715, %v707, %v723
  %v732 = vsel %vm716, %v708, %v724
  %v733 = vsel %vm717, %v709, %v725
  %v734 = vsel %vm718, %v710, %v726
  %v735 = vsel %vm719, %v711, %v727
  %v736 = vsel %vm720, %v712, %v728
  %v737 = vsel %vm721, %v713, %v729
  %v738 = vsel %vm722, %v714, %v730
  %740 = vrot.lane.b32.xlu0 %v674, 32
  %v741 = vpop.permute.xlu0 %740
  %v743 = vmul.f32 %v633, %v741
  %v744 = vmul.f32 %v634, %v741
  %v745 = vmul.f32 %v635, %v741
  %v746 = vmul.f32 %v636, %v741
  %v747 = vmul.f32 %v637, %v741
  %v748 = vmul.f32 %v638, %v741
  %v749 = vmul.f32 %v639, %v741
  %v750 = vmul.f32 %v640, %v741
  %759 = vrot.lane.b32.xlu0 %v743, 96
  %v760 = vpop.permute.xlu0 %759
  %761 = vrot.lane.b32.xlu0 %v744, 96
  %v762 = vpop.permute.xlu0 %761
  %763 = vrot.lane.b32.xlu0 %v745, 96
  %v764 = vpop.permute.xlu0 %763
  %765 = vrot.lane.b32.xlu0 %v746, 96
  %v766 = vpop.permute.xlu0 %765
  %767 = vrot.lane.b32.xlu0 %v747, 96
  %v768 = vpop.permute.xlu0 %767
  %769 = vrot.lane.b32.xlu0 %v748, 96
  %v770 = vpop.permute.xlu0 %769
  %771 = vrot.lane.b32.xlu0 %v749, 96
  %v772 = vpop.permute.xlu0 %771
  %773 = vrot.lane.b32.xlu0 %v750, 96
  %v774 = vpop.permute.xlu0 %773
  %v783 = vsel %vm56, %v760, 0.0
  %784 = vadd.xlane.f32.xlu0 %v783
  %v785 = vpop.xlane.xlu0 %784
  %v786 = vsel %vm56, %v762, 0.0
  %787 = vadd.xlane.f32.xlu0 %v786
  %v788 = vpop.xlane.xlu0 %787
  %v789 = vsel %vm56, %v764, 0.0
  %790 = vadd.xlane.f32.xlu0 %v789
  %v791 = vpop.xlane.xlu0 %790
  %v792 = vsel %vm56, %v766, 0.0
  %793 = vadd.xlane.f32.xlu0 %v792
  %v794 = vpop.xlane.xlu0 %793
  %v795 = vsel %vm56, %v768, 0.0
  %796 = vadd.xlane.f32.xlu0 %v795
  %v797 = vpop.xlane.xlu0 %796
  %v798 = vsel %vm56, %v770, 0.0
  %799 = vadd.xlane.f32.xlu0 %v798
  %v800 = vpop.xlane.xlu0 %799
  %v801 = vsel %vm56, %v772, 0.0
  %802 = vadd.xlane.f32.xlu0 %v801
  %v803 = vpop.xlane.xlu0 %802
  %v804 = vsel %vm56, %v774, 0.0
  %805 = vadd.xlane.f32.xlu0 %v804
  %v806 = vpop.xlane.xlu0 %805
  %v807 = vadd.f32 %v652, %v785
  %v808 = vadd.f32 %v655, %v788
  %v809 = vadd.f32 %v658, %v791
  %v810 = vadd.f32 %v661, %v794
  %v811 = vadd.f32 %v664, %v797
  %v812 = vadd.f32 %v667, %v800
  %v813 = vadd.f32 %v670, %v803
  %v814 = vadd.f32 %v673, %v806
  %vm815 = vcmp.gt.f32.partialorder %v807, 0.0
  %vm816 = vcmp.gt.f32.partialorder %v808, 0.0
  %vm817 = vcmp.gt.f32.partialorder %v809, 0.0
  %vm818 = vcmp.gt.f32.partialorder %v810, 0.0
  %vm819 = vcmp.gt.f32.partialorder %v811, 0.0
  %vm820 = vcmp.gt.f32.partialorder %v812, 0.0
  %vm821 = vcmp.gt.f32.partialorder %v813, 0.0
  %vm822 = vcmp.gt.f32.partialorder %v814, 0.0
  %v823 = vmul.f32 %v807, 0.01
  %v824 = vmul.f32 %v808, 0.01
  %v825 = vmul.f32 %v809, 0.01
  %v826 = vmul.f32 %v810, 0.01
  %v827 = vmul.f32 %v811, 0.01
  %v828 = vmul.f32 %v812, 0.01
  %v829 = vmul.f32 %v813, 0.01
  %v830 = vmul.f32 %v814, 0.01
  %v831 = vsel %vm815, %v807, %v823
  %v832 = vsel %vm816, %v808, %v824
  %v833 = vsel %vm817, %v809, %v825
  %v834 = vsel %vm818, %v810, %v826
  %v835 = vsel %vm819, %v811, %v827
  %v836 = vsel %vm820, %v812, %v828
  %v837 = vsel %vm821, %v813, %v829
  %v838 = vsel %vm822, %v814, %v830
  %839 = vrot.lane.b32.xlu0 %v674, 64
  %v840 = vpop.permute.xlu0 %839
  %v842 = vmul.f32 %v633, %v840
  %v843 = vmul.f32 %v634, %v840
  %v844 = vmul.f32 %v635, %v840
  %v845 = vmul.f32 %v636, %v840
  %v846 = vmul.f32 %v637, %v840
  %v847 = vmul.f32 %v638, %v840
  %v848 = vmul.f32 %v639, %v840
  %v849 = vmul.f32 %v640, %v840
  %858 = vrot.lane.b32.xlu0 %v842, 64
  %v859 = vpop.permute.xlu0 %858
  %860 = vrot.lane.b32.xlu0 %v843, 64
  %v861 = vpop.permute.xlu0 %860
  %862 = vrot.lane.b32.xlu0 %v844, 64
  %v863 = vpop.permute.xlu0 %862
  %864 = vrot.lane.b32.xlu0 %v845, 64
  %v865 = vpop.permute.xlu0 %864
  %866 = vrot.lane.b32.xlu0 %v846, 64
  %v867 = vpop.permute.xlu0 %866
  %868 = vrot.lane.b32.xlu0 %v847, 64
  %v869 = vpop.permute.xlu0 %868
  %870 = vrot.lane.b32.xlu0 %v848, 64
  %v871 = vpop.permute.xlu0 %870
  %872 = vrot.lane.b32.xlu0 %v849, 64
  %v873 = vpop.permute.xlu0 %872
  %v882 = vsel %vm56, %v859, 0.0
  %883 = vadd.xlane.f32.xlu0 %v882
  %v884 = vpop.xlane.xlu0 %883
  %v885 = vsel %vm56, %v861, 0.0
  %886 = vadd.xlane.f32.xlu0 %v885
  %v887 = vpop.xlane.xlu0 %886
  %v888 = vsel %vm56, %v863, 0.0
  %889 = vadd.xlane.f32.xlu0 %v888
  %v890 = vpop.xlane.xlu0 %889
  %v891 = vsel %vm56, %v865, 0.0
  %892 = vadd.xlane.f32.xlu0 %v891
  %v893 = vpop.xlane.xlu0 %892
  %v894 = vsel %vm56, %v867, 0.0
  %895 = vadd.xlane.f32.xlu0 %v894
  %v896 = vpop.xlane.xlu0 %895
  %v897 = vsel %vm56, %v869, 0.0
  %898 = vadd.xlane.f32.xlu0 %v897
  %v899 = vpop.xlane.xlu0 %898
  %v900 = vsel %vm56, %v871, 0.0
  %901 = vadd.xlane.f32.xlu0 %v900
  %v902 = vpop.xlane.xlu0 %901
  %v903 = vsel %vm56, %v873, 0.0
  %904 = vadd.xlane.f32.xlu0 %v903
  %v905 = vpop.xlane.xlu0 %904
  %v906 = vadd.f32 %v652, %v884
  %v907 = vadd.f32 %v655, %v887
  %v908 = vadd.f32 %v658, %v890
  %v909 = vadd.f32 %v661, %v893
  %v910 = vadd.f32 %v664, %v896
  %v911 = vadd.f32 %v667, %v899
  %v912 = vadd.f32 %v670, %v902
  %v913 = vadd.f32 %v673, %v905
  %vm914 = vcmp.gt.f32.partialorder %v906, 0.0
  %vm915 = vcmp.gt.f32.partialorder %v907, 0.0
  %vm916 = vcmp.gt.f32.partialorder %v908, 0.0
  %vm917 = vcmp.gt.f32.partialorder %v909, 0.0
  %vm918 = vcmp.gt.f32.partialorder %v910, 0.0
  %vm919 = vcmp.gt.f32.partialorder %v911, 0.0
  %vm920 = vcmp.gt.f32.partialorder %v912, 0.0
  %vm921 = vcmp.gt.f32.partialorder %v913, 0.0
  %v922 = vmul.f32 %v906, 0.01
  %v923 = vmul.f32 %v907, 0.01
  %v924 = vmul.f32 %v908, 0.01
  %v925 = vmul.f32 %v909, 0.01
  %v926 = vmul.f32 %v910, 0.01
  %v927 = vmul.f32 %v911, 0.01
  %v928 = vmul.f32 %v912, 0.01
  %v929 = vmul.f32 %v913, 0.01
  %v930 = vsel %vm914, %v906, %v922
  %v931 = vsel %vm915, %v907, %v923
  %v932 = vsel %vm916, %v908, %v924
  %v933 = vsel %vm917, %v909, %v925
  %v934 = vsel %vm918, %v910, %v926
  %v935 = vsel %vm919, %v911, %v927
  %v936 = vsel %vm920, %v912, %v928
  %v937 = vsel %vm921, %v913, %v929
  %938 = vrot.lane.b32.xlu0 %v674, 96
  %v939 = vpop.permute.xlu0 %938
  %v941 = vmul.f32 %v633, %v939
  %v942 = vmul.f32 %v634, %v939
  %v943 = vmul.f32 %v635, %v939
  %v944 = vmul.f32 %v636, %v939
  %v945 = vmul.f32 %v637, %v939
  %v946 = vmul.f32 %v638, %v939
  %v947 = vmul.f32 %v639, %v939
  %v948 = vmul.f32 %v640, %v939
  %957 = vrot.lane.b32.xlu0 %v941, 32
  %v958 = vpop.permute.xlu0 %957
  %959 = vrot.lane.b32.xlu0 %v942, 32
  %v960 = vpop.permute.xlu0 %959
  %961 = vrot.lane.b32.xlu0 %v943, 32
  %v962 = vpop.permute.xlu0 %961
  %963 = vrot.lane.b32.xlu0 %v944, 32
  %v964 = vpop.permute.xlu0 %963
  %965 = vrot.lane.b32.xlu0 %v945, 32
  %v966 = vpop.permute.xlu0 %965
  %967 = vrot.lane.b32.xlu0 %v946, 32
  %v968 = vpop.permute.xlu0 %967
  %969 = vrot.lane.b32.xlu0 %v947, 32
  %v970 = vpop.permute.xlu0 %969
  %971 = vrot.lane.b32.xlu0 %v948, 32
  %v972 = vpop.permute.xlu0 %971
  %v981 = vsel %vm56, %v958, 0.0
  %982 = vadd.xlane.f32.xlu0 %v981
  %v983 = vpop.xlane.xlu0 %982
  %v984 = vsel %vm56, %v960, 0.0
  %985 = vadd.xlane.f32.xlu0 %v984
  %v986 = vpop.xlane.xlu0 %985
  %v987 = vsel %vm56, %v962, 0.0
  %988 = vadd.xlane.f32.xlu0 %v987
  %v989 = vpop.xlane.xlu0 %988
  %v990 = vsel %vm56, %v964, 0.0
  %991 = vadd.xlane.f32.xlu0 %v990
  %v992 = vpop.xlane.xlu0 %991
  %v993 = vsel %vm56, %v966, 0.0
  %994 = vadd.xlane.f32.xlu0 %v993
  %v995 = vpop.xlane.xlu0 %994
  %v996 = vsel %vm56, %v968, 0.0
  %997 = vadd.xlane.f32.xlu0 %v996
  %v998 = vpop.xlane.xlu0 %997
  %v999 = vsel %vm56, %v970, 0.0
  %1000 = vadd.xlane.f32.xlu0 %v999
  %v1001 = vpop.xlane.xlu0 %1000
  %v1002 = vsel %vm56, %v972, 0.0
  %1003 = vadd.xlane.f32.xlu0 %v1002
  %v1004 = vpop.xlane.xlu0 %1003
  %v1005 = vadd.f32 %v652, %v983
  %v1006 = vadd.f32 %v655, %v986
  %v1007 = vadd.f32 %v658, %v989
  %v1008 = vadd.f32 %v661, %v992
  %v1009 = vadd.f32 %v664, %v995
  %v1010 = vadd.f32 %v667, %v998
  %v1011 = vadd.f32 %v670, %v1001
  %v1012 = vadd.f32 %v673, %v1004
  %vm1013 = vcmp.gt.f32.partialorder %v1005, 0.0
  %vm1014 = vcmp.gt.f32.partialorder %v1006, 0.0
  %vm1015 = vcmp.gt.f32.partialorder %v1007, 0.0
  %vm1016 = vcmp.gt.f32.partialorder %v1008, 0.0
  %vm1017 = vcmp.gt.f32.partialorder %v1009, 0.0
  %vm1018 = vcmp.gt.f32.partialorder %v1010, 0.0
  %vm1019 = vcmp.gt.f32.partialorder %v1011, 0.0
  %vm1020 = vcmp.gt.f32.partialorder %v1012, 0.0
  %v1021 = vmul.f32 %v1005, 0.01
  %v1022 = vmul.f32 %v1006, 0.01
  %v1023 = vmul.f32 %v1007, 0.01
  %v1024 = vmul.f32 %v1008, 0.01
  %v1025 = vmul.f32 %v1009, 0.01
  %v1026 = vmul.f32 %v1010, 0.01
  %v1027 = vmul.f32 %v1011, 0.01
  %v1028 = vmul.f32 %v1012, 0.01
  %v1029 = vsel %vm1013, %v1005, %v1021
  %v1030 = vsel %vm1014, %v1006, %v1022
  %v1031 = vsel %vm1015, %v1007, %v1023
  %v1032 = vsel %vm1016, %v1008, %v1024
  %v1033 = vsel %vm1017, %v1009, %v1025
  %v1034 = vsel %vm1018, %v1010, %v1026
  %v1035 = vsel %vm1019, %v1011, %v1027
  %v1036 = vsel %vm1020, %v1012, %v1028
  %v1037 = vmax.f32 %v731, %v831
  %v1038 = vmax.f32 %v732, %v832
  %v1039 = vmax.f32 %v733, %v833
  %v1040 = vmax.f32 %v734, %v834
  %v1041 = vmax.f32 %v735, %v835
  %v1042 = vmax.f32 %v736, %v836
  %v1043 = vmax.f32 %v737, %v837
  %v1044 = vmax.f32 %v738, %v838
  %v1045 = vmax.f32 %v1037, %v930
  %v1046 = vmax.f32 %v1038, %v931
  %v1047 = vmax.f32 %v1039, %v932
  %v1048 = vmax.f32 %v1040, %v933
  %v1049 = vmax.f32 %v1041, %v934
  %v1050 = vmax.f32 %v1042, %v935
  %v1051 = vmax.f32 %v1043, %v936
  %v1052 = vmax.f32 %v1044, %v937
  %v1053 = vmax.f32 %v1045, %v1029
  %v1054 = vmax.f32 %v1046, %v1030
  %v1055 = vmax.f32 %v1047, %v1031
  %v1056 = vmax.f32 %v1048, %v1032
  %v1057 = vmax.f32 %v1049, %v1033
  %v1058 = vmax.f32 %v1050, %v1034
  %v1059 = vmax.f32 %v1051, %v1035
  %v1060 = vmax.f32 %v1052, %v1036
  %v1061 = vsub.f32 %v731, %v1053
  %v1062 = vsub.f32 %v732, %v1054
  %v1063 = vsub.f32 %v733, %v1055
  %v1064 = vsub.f32 %v734, %v1056
  %v1065 = vsub.f32 %v735, %v1057
  %v1066 = vsub.f32 %v736, %v1058
  %v1067 = vsub.f32 %v737, %v1059
  %v1068 = vsub.f32 %v738, %v1060
  %v1069 = vmul.f32 %v1061, 1.442695
  %v1070 = vpow.pop %v1069
  %v1071 = vmul.f32 %v1062, 1.442695
  %v1072 = vpow.pop %v1071
  %v1073 = vmul.f32 %v1063, 1.442695
  %v1074 = vpow.pop %v1073
  %v1075 = vmul.f32 %v1064, 1.442695
  %v1076 = vpow.pop %v1075
  %v1077 = vmul.f32 %v1065, 1.442695
  %v1078 = vpow.pop %v1077
  %v1079 = vmul.f32 %v1066, 1.442695
  %v1080 = vpow.pop %v1079
  %v1081 = vmul.f32 %v1067, 1.442695
  %v1082 = vpow.pop %v1081
  %v1083 = vmul.f32 %v1068, 1.442695
  %v1084 = vpow.pop %v1083
  %v1085 = vsub.f32 %v831, %v1053
  %v1086 = vsub.f32 %v832, %v1054
  %v1087 = vsub.f32 %v833, %v1055
  %v1088 = vsub.f32 %v834, %v1056
  %v1089 = vsub.f32 %v835, %v1057
  %v1090 = vsub.f32 %v836, %v1058
  %v1091 = vsub.f32 %v837, %v1059
  %v1092 = vsub.f32 %v838, %v1060
  %v1093 = vmul.f32 %v1085, 1.442695
  %v1094 = vpow.pop %v1093
  %v1095 = vmul.f32 %v1086, 1.442695
  %v1096 = vpow.pop %v1095
  %v1097 = vmul.f32 %v1087, 1.442695
  %v1098 = vpow.pop %v1097
  %v1099 = vmul.f32 %v1088, 1.442695
  %v1100 = vpow.pop %v1099
  %v1101 = vmul.f32 %v1089, 1.442695
  %v1102 = vpow.pop %v1101
  %v1103 = vmul.f32 %v1090, 1.442695
  %v1104 = vpow.pop %v1103
  %v1105 = vmul.f32 %v1091, 1.442695
  %v1106 = vpow.pop %v1105
  %v1107 = vmul.f32 %v1092, 1.442695
  %v1108 = vpow.pop %v1107
  %v1109 = vsub.f32 %v930, %v1053
  %v1110 = vsub.f32 %v931, %v1054
  %v1111 = vsub.f32 %v932, %v1055
  %v1112 = vsub.f32 %v933, %v1056
  %v1113 = vsub.f32 %v934, %v1057
  %v1114 = vsub.f32 %v935, %v1058
  %v1115 = vsub.f32 %v936, %v1059
  %v1116 = vsub.f32 %v937, %v1060
  %v1117 = vmul.f32 %v1109, 1.442695
  %v1118 = vpow.pop %v1117
  %v1119 = vmul.f32 %v1110, 1.442695
  %v1120 = vpow.pop %v1119
  %v1121 = vmul.f32 %v1111, 1.442695
  %v1122 = vpow.pop %v1121
  %v1123 = vmul.f32 %v1112, 1.442695
  %v1124 = vpow.pop %v1123
  %v1125 = vmul.f32 %v1113, 1.442695
  %v1126 = vpow.pop %v1125
  %v1127 = vmul.f32 %v1114, 1.442695
  %v1128 = vpow.pop %v1127
  %v1129 = vmul.f32 %v1115, 1.442695
  %v1130 = vpow.pop %v1129
  %v1131 = vmul.f32 %v1116, 1.442695
  %v1132 = vpow.pop %v1131
  %v1133 = vsub.f32 %v1029, %v1053
  %v1134 = vsub.f32 %v1030, %v1054
  %v1135 = vsub.f32 %v1031, %v1055
  %v1136 = vsub.f32 %v1032, %v1056
  %v1137 = vsub.f32 %v1033, %v1057
  %v1138 = vsub.f32 %v1034, %v1058
  %v1139 = vsub.f32 %v1035, %v1059
  %v1140 = vsub.f32 %v1036, %v1060
  %v1141 = vmul.f32 %v1133, 1.442695
  %v1142 = vpow.pop %v1141
  %v1143 = vmul.f32 %v1134, 1.442695
  %v1144 = vpow.pop %v1143
  %v1145 = vmul.f32 %v1135, 1.442695
  %v1146 = vpow.pop %v1145
  %v1147 = vmul.f32 %v1136, 1.442695
  %v1148 = vpow.pop %v1147
  %v1149 = vmul.f32 %v1137, 1.442695
  %v1150 = vpow.pop %v1149
  %v1151 = vmul.f32 %v1138, 1.442695
  %v1152 = vpow.pop %v1151
  %v1153 = vmul.f32 %v1139, 1.442695
  %v1154 = vpow.pop %v1153
  %v1155 = vmul.f32 %v1140, 1.442695
  %v1156 = vpow.pop %v1155
  %v1157 = vadd.f32 %v1070, %v1094
  %v1158 = vadd.f32 %v1072, %v1096
  %v1159 = vadd.f32 %v1074, %v1098
  %v1160 = vadd.f32 %v1076, %v1100
  %v1161 = vadd.f32 %v1078, %v1102
  %v1162 = vadd.f32 %v1080, %v1104
  %v1163 = vadd.f32 %v1082, %v1106
  %v1164 = vadd.f32 %v1084, %v1108
  %v1165 = vadd.f32 %v1157, %v1118
  %v1166 = vadd.f32 %v1158, %v1120
  %v1167 = vadd.f32 %v1159, %v1122
  %v1168 = vadd.f32 %v1160, %v1124
  %v1169 = vadd.f32 %v1161, %v1126
  %v1170 = vadd.f32 %v1162, %v1128
  %v1171 = vadd.f32 %v1163, %v1130
  %v1172 = vadd.f32 %v1164, %v1132
  %v1173 = vadd.f32 %v1165, %v1142
  %v1174 = vadd.f32 %v1166, %v1144
  %v1175 = vadd.f32 %v1167, %v1146
  %v1176 = vadd.f32 %v1168, %v1148
  %v1177 = vadd.f32 %v1169, %v1150
  %v1178 = vadd.f32 %v1170, %v1152
  %v1179 = vadd.f32 %v1171, %v1154
  %v1180 = vadd.f32 %v1172, %v1156
  %v1181 = vrcp.pop %v1173
  %v1182 = vrcp.pop %v1174
  %v1183 = vrcp.pop %v1175
  %v1184 = vrcp.pop %v1176
  %v1185 = vrcp.pop %v1177
  %v1186 = vrcp.pop %v1178
  %v1187 = vrcp.pop %v1179
  %v1188 = vrcp.pop %v1180
  %v1189 = vmul.f32 %v1070, %v1181
  %v1190 = vmul.f32 %v1072, %v1182
  %v1191 = vmul.f32 %v1074, %v1183
  %v1192 = vmul.f32 %v1076, %v1184
  %v1193 = vmul.f32 %v1078, %v1185
  %v1194 = vmul.f32 %v1080, %v1186
  %v1195 = vmul.f32 %v1082, %v1187
  %v1196 = vmul.f32 %v1084, %v1188
  %v1197 = vmul.f32 %v1189, %v633
  %v1198 = vmul.f32 %v1190, %v634
  %v1199 = vmul.f32 %v1191, %v635
  %v1200 = vmul.f32 %v1192, %v636
  %v1201 = vmul.f32 %v1193, %v637
  %v1202 = vmul.f32 %v1194, %v638
  %v1203 = vmul.f32 %v1195, %v639
  %v1204 = vmul.f32 %v1196, %v640
  %v1205 = vmul.f32 %v1094, %v1181
  %v1206 = vmul.f32 %v1096, %v1182
  %v1207 = vmul.f32 %v1098, %v1183
  %v1208 = vmul.f32 %v1100, %v1184
  %v1209 = vmul.f32 %v1102, %v1185
  %v1210 = vmul.f32 %v1104, %v1186
  %v1211 = vmul.f32 %v1106, %v1187
  %v1212 = vmul.f32 %v1108, %v1188
  %v1213 = vmul.f32 %v1205, %v633
  %v1214 = vmul.f32 %v1206, %v634
  %v1215 = vmul.f32 %v1207, %v635
  %v1216 = vmul.f32 %v1208, %v636
  %v1217 = vmul.f32 %v1209, %v637
  %v1218 = vmul.f32 %v1210, %v638
  %v1219 = vmul.f32 %v1211, %v639
  %v1220 = vmul.f32 %v1212, %v640
  %1229 = vrot.lane.b32.xlu0 %v1213, 96
  %v1230 = vpop.permute.xlu0 %1229
  %1231 = vrot.lane.b32.xlu0 %v1214, 96
  %v1232 = vpop.permute.xlu0 %1231
  %1233 = vrot.lane.b32.xlu0 %v1215, 96
  %v1234 = vpop.permute.xlu0 %1233
  %1235 = vrot.lane.b32.xlu0 %v1216, 96
  %v1236 = vpop.permute.xlu0 %1235
  %1237 = vrot.lane.b32.xlu0 %v1217, 96
  %v1238 = vpop.permute.xlu0 %1237
  %1239 = vrot.lane.b32.xlu0 %v1218, 96
  %v1240 = vpop.permute.xlu0 %1239
  %1241 = vrot.lane.b32.xlu0 %v1219, 96
  %v1242 = vpop.permute.xlu0 %1241
  %1243 = vrot.lane.b32.xlu0 %v1220, 96
  %v1244 = vpop.permute.xlu0 %1243
  %v1253 = vadd.f32 %v1197, %v1230
  %v1254 = vadd.f32 %v1198, %v1232
  %v1255 = vadd.f32 %v1199, %v1234
  %v1256 = vadd.f32 %v1200, %v1236
  %v1257 = vadd.f32 %v1201, %v1238
  %v1258 = vadd.f32 %v1202, %v1240
  %v1259 = vadd.f32 %v1203, %v1242
  %v1260 = vadd.f32 %v1204, %v1244
  %v1261 = vmul.f32 %v1118, %v1181
  %v1262 = vmul.f32 %v1120, %v1182
  %v1263 = vmul.f32 %v1122, %v1183
  %v1264 = vmul.f32 %v1124, %v1184
  %v1265 = vmul.f32 %v1126, %v1185
  %v1266 = vmul.f32 %v1128, %v1186
  %v1267 = vmul.f32 %v1130, %v1187
  %v1268 = vmul.f32 %v1132, %v1188
  %v1269 = vmul.f32 %v1261, %v633
  %v1270 = vmul.f32 %v1262, %v634
  %v1271 = vmul.f32 %v1263, %v635
  %v1272 = vmul.f32 %v1264, %v636
  %v1273 = vmul.f32 %v1265, %v637
  %v1274 = vmul.f32 %v1266, %v638
  %v1275 = vmul.f32 %v1267, %v639
  %v1276 = vmul.f32 %v1268, %v640
  %1285 = vrot.lane.b32.xlu0 %v1269, 64
  %v1286 = vpop.permute.xlu0 %1285
  %1287 = vrot.lane.b32.xlu0 %v1270, 64
  %v1288 = vpop.permute.xlu0 %1287
  %1289 = vrot.lane.b32.xlu0 %v1271, 64
  %v1290 = vpop.permute.xlu0 %1289
  %1291 = vrot.lane.b32.xlu0 %v1272, 64
  %v1292 = vpop.permute.xlu0 %1291
  %1293 = vrot.lane.b32.xlu0 %v1273, 64
  %v1294 = vpop.permute.xlu0 %1293
  %1295 = vrot.lane.b32.xlu0 %v1274, 64
  %v1296 = vpop.permute.xlu0 %1295
  %1297 = vrot.lane.b32.xlu0 %v1275, 64
  %v1298 = vpop.permute.xlu0 %1297
  %1299 = vrot.lane.b32.xlu0 %v1276, 64
  %v1300 = vpop.permute.xlu0 %1299
  %v1309 = vadd.f32 %v1253, %v1286
  %v1310 = vadd.f32 %v1254, %v1288
  %v1311 = vadd.f32 %v1255, %v1290
  %v1312 = vadd.f32 %v1256, %v1292
  %v1313 = vadd.f32 %v1257, %v1294
  %v1314 = vadd.f32 %v1258, %v1296
  %v1315 = vadd.f32 %v1259, %v1298
  %v1316 = vadd.f32 %v1260, %v1300
  %v1317 = vmul.f32 %v1142, %v1181
  %v1318 = vmul.f32 %v1144, %v1182
  %v1319 = vmul.f32 %v1146, %v1183
  %v1320 = vmul.f32 %v1148, %v1184
  %v1321 = vmul.f32 %v1150, %v1185
  %v1322 = vmul.f32 %v1152, %v1186
  %v1323 = vmul.f32 %v1154, %v1187
  %v1324 = vmul.f32 %v1156, %v1188
  %v1325 = vmul.f32 %v1317, %v633
  %v1326 = vmul.f32 %v1318, %v634
  %v1327 = vmul.f32 %v1319, %v635
  %v1328 = vmul.f32 %v1320, %v636
  %v1329 = vmul.f32 %v1321, %v637
  %v1330 = vmul.f32 %v1322, %v638
  %v1331 = vmul.f32 %v1323, %v639
  %v1332 = vmul.f32 %v1324, %v640
  %1341 = vrot.lane.b32.xlu0 %v1325, 32
  %v1342 = vpop.permute.xlu0 %1341
  %1343 = vrot.lane.b32.xlu0 %v1326, 32
  %v1344 = vpop.permute.xlu0 %1343
  %1345 = vrot.lane.b32.xlu0 %v1327, 32
  %v1346 = vpop.permute.xlu0 %1345
  %1347 = vrot.lane.b32.xlu0 %v1328, 32
  %v1348 = vpop.permute.xlu0 %1347
  %1349 = vrot.lane.b32.xlu0 %v1329, 32
  %v1350 = vpop.permute.xlu0 %1349
  %1351 = vrot.lane.b32.xlu0 %v1330, 32
  %v1352 = vpop.permute.xlu0 %1351
  %1353 = vrot.lane.b32.xlu0 %v1331, 32
  %v1354 = vpop.permute.xlu0 %1353
  %1355 = vrot.lane.b32.xlu0 %v1332, 32
  %v1356 = vpop.permute.xlu0 %1355
  %v1365 = vadd.f32 %v1309, %v1342
  %v1366 = vadd.f32 %v1310, %v1344
  %v1367 = vadd.f32 %v1311, %v1346
  %v1368 = vadd.f32 %v1312, %v1348
  %v1369 = vadd.f32 %v1313, %v1350
  %v1370 = vadd.f32 %v1314, %v1352
  %v1371 = vadd.f32 %v1315, %v1354
  %v1372 = vadd.f32 %v1316, %v1356
  %vm1373 = vcmp.gt.f32.partialorder %v1365, 0.0
  %vm1374 = vcmp.gt.f32.partialorder %v1366, 0.0
  %vm1375 = vcmp.gt.f32.partialorder %v1367, 0.0
  %vm1376 = vcmp.gt.f32.partialorder %v1368, 0.0
  %vm1377 = vcmp.gt.f32.partialorder %v1369, 0.0
  %vm1378 = vcmp.gt.f32.partialorder %v1370, 0.0
  %vm1379 = vcmp.gt.f32.partialorder %v1371, 0.0
  %vm1380 = vcmp.gt.f32.partialorder %v1372, 0.0
  %v1381 = vmin.f32 %v1365, 0.0
  %v1382 = vmin.f32 %v1366, 0.0
  %v1383 = vmin.f32 %v1367, 0.0
  %v1384 = vmin.f32 %v1368, 0.0
  %v1385 = vmin.f32 %v1369, 0.0
  %v1386 = vmin.f32 %v1370, 0.0
  %v1387 = vmin.f32 %v1371, 0.0
  %v1388 = vmin.f32 %v1372, 0.0
  %v1389 = vmul.f32 %v1381, 1.442695
  %v1390 = vpow.pop %v1389
  %v1391 = vmul.f32 %v1382, 1.442695
  %v1392 = vpow.pop %v1391
  %v1393 = vmul.f32 %v1383, 1.442695
  %v1394 = vpow.pop %v1393
  %v1395 = vmul.f32 %v1384, 1.442695
  %v1396 = vpow.pop %v1395
  %v1397 = vmul.f32 %v1385, 1.442695
  %v1398 = vpow.pop %v1397
  %v1399 = vmul.f32 %v1386, 1.442695
  %v1400 = vpow.pop %v1399
  %v1401 = vmul.f32 %v1387, 1.442695
  %v1402 = vpow.pop %v1401
  %v1403 = vmul.f32 %v1388, 1.442695
  %v1404 = vpow.pop %v1403
  %v1405 = vsub.f32 %v1390, 1.0
  %v1406 = vsub.f32 %v1392, 1.0
  %v1407 = vsub.f32 %v1394, 1.0
  %v1408 = vsub.f32 %v1396, 1.0
  %v1409 = vsub.f32 %v1398, 1.0
  %v1410 = vsub.f32 %v1400, 1.0
  %v1411 = vsub.f32 %v1402, 1.0
  %v1412 = vsub.f32 %v1404, 1.0
  %v1413 = vsel %vm1373, %v1365, %v1405
  %v1414 = vsel %vm1374, %v1366, %v1406
  %v1415 = vsel %vm1375, %v1367, %v1407
  %v1416 = vsel %vm1376, %v1368, %v1408
  %v1417 = vsel %vm1377, %v1369, %v1409
  %v1418 = vsel %vm1378, %v1370, %v1410
  %v1419 = vsel %vm1379, %v1371, %v1411
  %v1420 = vsel %vm1380, %v1372, %v1412
  %v1421 = vld [vmem:[%s5] sm:$0xff]
  %v1422 = vld [vmem:[%s5 + $0x8] sm:$0xff]
  %v1423 = vld [vmem:[%s5 + $0x10] sm:$0xff]
  %v1424 = vld [vmem:[%s5 + $0x18] sm:$0xff]
  %v1425 = vld [vmem:[%s6] sm:$0x1]
  %v1426 = vld [vmem:[%s7] sm:$0x1]
  %v1428 = vperm.slane %v1425, 0
  %v1431 = vsel %vm56, %v625, 0
  %v1434 = vsel %vm56, %v626, 0
  %v1437 = vsel %vm56, %v627, 0
  %v1440 = vsel %vm56, %v628, 0
  %v1443 = vsel %vm56, %v629, 0
  %v1446 = vsel %vm56, %v630, 0
  %v1449 = vsel %vm56, %v631, 0
  %v1452 = vsel %vm56, %v632, 0
  %1454 = vmatpush.msra.mxu0 0.0
  %1455 = vmatpush.msra.mxu0 0.0
  %1456 = vmatpush.msra.mxu0 0.0
  %1457 = vmatpush.msra.mxu0 0.0
  %1458 = vmatpush.msra.mxu0 0.0
  %1459 = vmatpush.msra.mxu0 0.0
  %1460 = vmatpush.msra.mxu0 0.0
  %1461 = vmatpush.msra.mxu0 0.0
  %1462 = vmatpush.msra.mxu0 0.0
  %1463 = vmatpush.msra.mxu0 0.0
  %1464 = vmatpush.msra.mxu0 0.0
  %1465 = vmatpush.msra.mxu0 0.0
  %1466 = vmatpush.msra.mxu0 %v1424
  %1467 = vmatpush.msra.mxu0 %v1423
  %1468 = vmatpush.msra.mxu0 %v1422
  %1469 = vmatpush.msra.mxu0 %v1421
  %1470 = vmatmul.f32.gmra.mxu0 %v1431
  %v1471 = vpop.f32.mrf.mxu0
  %v1472 = vadd.f32 %v1428, %v1471
  %1473 = vmatmul.f32.gmra.mxu0 %v1434
  %v1474 = vpop.f32.mrf.mxu0
  %v1475 = vadd.f32 %v1428, %v1474
  %1476 = vmatmul.f32.gmra.mxu0 %v1437
  %v1477 = vpop.f32.mrf.mxu0
  %v1478 = vadd.f32 %v1428, %v1477
  %1479 = vmatmul.f32.gmra.mxu0 %v1440
  %v1480 = vpop.f32.mrf.mxu0
  %v1481 = vadd.f32 %v1428, %v1480
  %1482 = vmatmul.f32.gmra.mxu0 %v1443
  %v1483 = vpop.f32.mrf.mxu0
  %v1484 = vadd.f32 %v1428, %v1483
  %1485 = vmatmul.f32.gmra.mxu0 %v1446
  %v1486 = vpop.f32.mrf.mxu0
  %v1487 = vadd.f32 %v1428, %v1486
  %1488 = vmatmul.f32.gmra.mxu0 %v1449
  %v1489 = vpop.f32.mrf.mxu0
  %v1490 = vadd.f32 %v1428, %v1489
  %1491 = vmatmul.f32.gmra.mxu0 %v1452
  %v1492 = vpop.f32.mrf.mxu0
  %v1493 = vadd.f32 %v1428, %v1492
  %1494 = vdwg.mxu0
  %v1495 = vtanh.pop %v1472
  %v1496 = vtanh.pop %v1475
  %v1497 = vtanh.pop %v1478
  %v1498 = vtanh.pop %v1481
  %v1499 = vtanh.pop %v1484
  %v1500 = vtanh.pop %v1487
  %v1501 = vtanh.pop %v1490
  %v1502 = vtanh.pop %v1493
  %v1503 = vsel %vm56, %v1495, 0.0
  %v1504 = vsel %vm56, %v1496, 0.0
  %v1505 = vadd.f32 %v1503, %v1504
  %v1506 = vsel %vm56, %v1497, 0.0
  %v1507 = vadd.f32 %v1505, %v1506
  %v1508 = vsel %vm56, %v1498, 0.0
  %v1509 = vadd.f32 %v1507, %v1508
  %v1510 = vsel %vm56, %v1499, 0.0
  %v1511 = vadd.f32 %v1509, %v1510
  %v1512 = vsel %vm56, %v1500, 0.0
  %v1513 = vadd.f32 %v1511, %v1512
  %v1514 = vsel %vm56, %v1501, 0.0
  %v1515 = vadd.f32 %v1513, %v1514
  %v1516 = vsel %vm56, %v1502, 0.0
  %v1517 = vadd.f32 %v1515, %v1516
  %v1518 = vrot.slane %v1517, 4
  %v1519 = vadd.f32 %v1517, %v1518
  %v1520 = vrot.slane %v1519, 2
  %v1521 = vadd.f32 %v1519, %v1520
  %v1522 = vrot.slane %v1521, 1
  %v1523 = vadd.f32 %v1521, %v1522
  %v1524 = vrcp.pop 64.0
  %v1525 = vmul.f32 64.0, %v1524
  %v1526 = vsub.f32 1.0, %v1525
  %v1527 = vmul.f32 %v1524, %v1526
  %v1528 = vadd.f32 %v1524, %v1527
  %vm1529 = vweird.f32 %v1524
  %v1530 = vsel %vm1529, %v1524, %v1528
  %v1531 = vmul.f32 %v1523, %v1530
  %v1532 = vmul.f32 %v1531, %v1426
  %vm1533 = vcmask 253952
  %v1534 = vsel %vm1533, %v1532, 0.0
  %1535 = vadd.xlane.f32.xlu0 %v1534
  %v1536 = vpop.xlane.xlu0 %1535
  %v1538 = vsel %vm56, %v1413, 0
  %v1541 = vsel %vm56, %v1414, 0
  %v1544 = vsel %vm56, %v1415, 0
  %v1547 = vsel %vm56, %v1416, 0
  %v1550 = vsel %vm56, %v1417, 0
  %v1553 = vsel %vm56, %v1418, 0
  %v1556 = vsel %vm56, %v1419, 0
  %v1559 = vsel %vm56, %v1420, 0
  %1561 = vmatpush.msra.mxu0 0.0
  %1562 = vmatpush.msra.mxu0 0.0
  %1563 = vmatpush.msra.mxu0 0.0
  %1564 = vmatpush.msra.mxu0 0.0
  %1565 = vmatpush.msra.mxu0 0.0
  %1566 = vmatpush.msra.mxu0 0.0
  %1567 = vmatpush.msra.mxu0 0.0
  %1568 = vmatpush.msra.mxu0 0.0
  %1569 = vmatpush.msra.mxu0 0.0
  %1570 = vmatpush.msra.mxu0 0.0
  %1571 = vmatpush.msra.mxu0 0.0
  %1572 = vmatpush.msra.mxu0 0.0
  %1573 = vmatpush.msra.mxu0 %v1424
  %1574 = vmatpush.msra.mxu0 %v1423
  %1575 = vmatpush.msra.mxu0 %v1422
  %1576 = vmatpush.msra.mxu0 %v1421
  %1577 = vmatmul.f32.gmra.mxu0 %v1538
  %v1578 = vpop.f32.mrf.mxu0
  %v1579 = vadd.f32 %v1428, %v1578
  %1580 = vmatmul.f32.gmra.mxu0 %v1541
  %v1581 = vpop.f32.mrf.mxu0
  %v1582 = vadd.f32 %v1428, %v1581
  %1583 = vmatmul.f32.gmra.mxu0 %v1544
  %v1584 = vpop.f32.mrf.mxu0
  %v1585 = vadd.f32 %v1428, %v1584
  %1586 = vmatmul.f32.gmra.mxu0 %v1547
  %v1587 = vpop.f32.mrf.mxu0
  %v1588 = vadd.f32 %v1428, %v1587
  %1589 = vmatmul.f32.gmra.mxu0 %v1550
  %v1590 = vpop.f32.mrf.mxu0
  %v1591 = vadd.f32 %v1428, %v1590
  %1592 = vmatmul.f32.gmra.mxu0 %v1553
  %v1593 = vpop.f32.mrf.mxu0
  %v1594 = vadd.f32 %v1428, %v1593
  %1595 = vmatmul.f32.gmra.mxu0 %v1556
  %v1596 = vpop.f32.mrf.mxu0
  %v1597 = vadd.f32 %v1428, %v1596
  %1598 = vmatmul.f32.gmra.mxu0 %v1559
  %v1599 = vpop.f32.mrf.mxu0
  %v1600 = vadd.f32 %v1428, %v1599
  %1601 = vdwg.mxu0
  %v1602 = vtanh.pop %v1579
  %v1603 = vtanh.pop %v1582
  %v1604 = vtanh.pop %v1585
  %v1605 = vtanh.pop %v1588
  %v1606 = vtanh.pop %v1591
  %v1607 = vtanh.pop %v1594
  %v1608 = vtanh.pop %v1597
  %v1609 = vtanh.pop %v1600
  %v1610 = vsel %vm56, %v1602, 0.0
  %v1611 = vsel %vm56, %v1603, 0.0
  %v1612 = vadd.f32 %v1610, %v1611
  %v1613 = vsel %vm56, %v1604, 0.0
  %v1614 = vadd.f32 %v1612, %v1613
  %v1615 = vsel %vm56, %v1605, 0.0
  %v1616 = vadd.f32 %v1614, %v1615
  %v1617 = vsel %vm56, %v1606, 0.0
  %v1618 = vadd.f32 %v1616, %v1617
  %v1619 = vsel %vm56, %v1607, 0.0
  %v1620 = vadd.f32 %v1618, %v1619
  %v1621 = vsel %vm56, %v1608, 0.0
  %v1622 = vadd.f32 %v1620, %v1621
  %v1623 = vsel %vm56, %v1609, 0.0
  %v1624 = vadd.f32 %v1622, %v1623
  %v1625 = vrot.slane %v1624, 4
  %v1626 = vadd.f32 %v1624, %v1625
  %v1627 = vrot.slane %v1626, 2
  %v1628 = vadd.f32 %v1626, %v1627
  %v1629 = vrot.slane %v1628, 1
  %v1630 = vadd.f32 %v1628, %v1629
  %v1631 = vmul.f32 %v1630, %v1530
  %v1632 = vmul.f32 %v1631, %v1426
  %v1633 = vsel %vm1533, %v1632, 0.0
  %1634 = vadd.xlane.f32.xlu0 %v1633
  %v1635 = vpop.xlane.xlu0 %1634
  %v1636 = vmax.f32 %v1536, %v1635
  %v1637 = vsub.f32 %v1536, %v1636
  %v1638 = vmul.f32 %v1637, 1.442695
  %v1639 = vpow.pop %v1638
  %v1640 = vsub.f32 %v1635, %v1636
  %v1641 = vmul.f32 %v1640, 1.442695
  %v1642 = vpow.pop %v1641
  %v1643 = vadd.f32 %v1639, %v1642
  %v1644 = vrcp.pop %v1643
  %v1645 = vmul.f32 %v1639, %v1644
  %v1646 = vperm.slane %v1645, 0
  %v1647 = vmul.f32 %v625, %v1646
  %v1648 = vmul.f32 %v626, %v1646
  %v1649 = vmul.f32 %v627, %v1646
  %v1650 = vmul.f32 %v628, %v1646
  %v1651 = vmul.f32 %v629, %v1646
  %v1652 = vmul.f32 %v630, %v1646
  %v1653 = vmul.f32 %v631, %v1646
  %v1654 = vmul.f32 %v632, %v1646
  %v1655 = vmul.f32 %v1642, %v1644
  %v1656 = vperm.slane %v1655, 0
  %v1657 = vmul.f32 %v1413, %v1656
  %v1658 = vmul.f32 %v1414, %v1656
  %v1659 = vmul.f32 %v1415, %v1656
  %v1660 = vmul.f32 %v1416, %v1656
  %v1661 = vmul.f32 %v1417, %v1656
  %v1662 = vmul.f32 %v1418, %v1656
  %v1663 = vmul.f32 %v1419, %v1656
  %v1664 = vmul.f32 %v1420, %v1656
  %v1665 = vadd.f32 %v1647, %v1657
  %v1666 = vadd.f32 %v1648, %v1658
  %v1667 = vadd.f32 %v1649, %v1659
  %v1668 = vadd.f32 %v1650, %v1660
  %v1669 = vadd.f32 %v1651, %v1661
  %v1670 = vadd.f32 %v1652, %v1662
  %v1671 = vadd.f32 %v1653, %v1663
  %v1672 = vadd.f32 %v1654, %v1664
  %1673 = vst.msk [vmem:[%s8] sm:$0xff] %vm56, %v1665
  %1674 = vst.msk [vmem:[%s8 + $0x8] sm:$0xff] %vm56, %v1666
  %1675 = vst.msk [vmem:[%s8 + $0x10] sm:$0xff] %vm56, %v1667
  %1676 = vst.msk [vmem:[%s8 + $0x18] sm:$0xff] %vm56, %v1668
  %1677 = vst.msk [vmem:[%s8 + $0x20] sm:$0xff] %vm56, %v1669
  %1678 = vst.msk [vmem:[%s8 + $0x28] sm:$0xff] %vm56, %v1670
  %1679 = vst.msk [vmem:[%s8 + $0x30] sm:$0xff] %vm56, %v1671
  %1680 = vst.msk [vmem:[%s8 + $0x38] sm:$0xff] %vm56, %v1672
  // Predicated region
  $region34: #{heco_forward.5} parent=0 // pred_check
    _
  $region35: #{heco_forward.5} parent=0 // pred_check_branch
    %1682 = sbr.rel (0) target = $region37
  $region36: #{heco_forward.5} parent=0 // pred_region
    _
  $region37: #{heco_forward.5} parent=0 // pred_fallthru
    _
  // Predicated region
  $region38: #{heco_forward.5} parent=0 // pred_check
    _
  $region39: #{heco_forward.5} parent=0 // pred_check_branch
    %1684 = sbr.rel (0) target = $region41
  $region40: #{heco_forward.5} parent=0 // pred_region
    _
  $region41: #{heco_forward.5} parent=0 // pred_fallthru
    _

// kernel: heco_forward.7
$region0: #{heco_forward.7}
  #allocation0 [shape = 'u32[]', space=smem, size = 0x4, offset = 0x4, fixed_abs, tag = 'smem constant byte address 0x4 - core index']
  #allocation1 [shape = 'u32[72,128]{1,0:T(1,128)}', space=vmem, size = 0x9000, scoped, tag = 'internal scratch']
  %s0 = inlined_call_operand.vmem [shape: f32[192,32], index: 0, kind: input, shape index: {}]
  %s1 = inlined_call_operand.vmem [shape: f32[64,32], index: 1, kind: input, shape index: {}]
  %s2 = inlined_call_operand.vmem [shape: bf16[64,64], index: 2, kind: input, shape index: {}]
  %s3 = inlined_call_operand.vmem [shape: bf16[64,64], index: 3, kind: input, shape index: {}]
  %s4 = inlined_call_operand.vmem [shape: f32[32,128], index: 4, kind: input, shape index: {}]
  %s5 = inlined_call_operand.vmem [shape: f32[1,128], index: 5, kind: input, shape index: {}]
  %s6 = inlined_call_operand.vmem [shape: f32[128,128], index: 6, kind: input, shape index: {}]
  %s7 = inlined_call_operand.vmem [shape: f32[1,128], index: 7, kind: input, shape index: {}]
  %s8 = inlined_call_operand.hbm [shape: f32[1,1], index: 8, kind: output, shape index: {}]
  %s9 = sld [smem:[#allocation0]]
  $region42: #{heco_forward.7} parent=0
    _
  %s11 = ssub.s32 1, %s9
  %s12 = scalar_select 0, %s11, %s9
  $region1: #{heco_forward.7} parent=0
    #allocation2 [shape = 'u8[512]{0}', space=vmem, size = 0x400, scoped, tag = 'output window, operand 0, single buffered']
    #allocation3 [shape = 's32[1]{0}', space=sflag, size = 0x4, scoped, tag = 'scoped memory for heco_forward.7']
    %13 = vsyncpa [#allocation3], 0
    // Predicated region
    $region2: #{heco_forward.7} parent=1 // pred_check
      _
    $region3: #{heco_forward.7} parent=1 // pred_check_branch
      %15 = sbr.rel (0) target = $region5
    $region4: #{heco_forward.7} parent=1 // pred_region
      _
    $region5: #{heco_forward.7} parent=1 // pred_fallthru
      _
    // Predicated region
    $region6: #{heco_forward.7} parent=1 // pred_check
      _
    $region7: #{heco_forward.7} parent=1 // pred_check_branch
      %17 = sbr.rel (0) target = $region9
    $region8: #{heco_forward.7} parent=1 // pred_region
      _
    $region9: #{heco_forward.7} parent=1 // pred_fallthru
      _
    // Predicated region
    $region10: #{heco_forward.7} parent=1 // pred_check
      _
    $region11: #{heco_forward.7} parent=1 // pred_check_branch
      %19 = sbr.rel (0) target = $region13
    $region12: #{heco_forward.7} parent=1 // pred_region
      _
    $region13: #{heco_forward.7} parent=1 // pred_fallthru
      _
    // Predicated region
    $region14: #{heco_forward.7} parent=1 // pred_check
      _
    $region15: #{heco_forward.7} parent=1 // pred_check_branch
      %21 = sbr.rel (0) target = $region17
    $region16: #{heco_forward.7} parent=1 // pred_region
      _
    $region17: #{heco_forward.7} parent=1 // pred_fallthru
      _
    // Predicated region
    $region18: #{heco_forward.7} parent=1 // pred_check
      _
    $region19: #{heco_forward.7} parent=1 // pred_check_branch
      %23 = sbr.rel (0) target = $region21
    $region20: #{heco_forward.7} parent=1 // pred_region
      _
    $region21: #{heco_forward.7} parent=1 // pred_fallthru
      _
    // Predicated region
    $region22: #{heco_forward.7} parent=1 // pred_check
      _
    $region23: #{heco_forward.7} parent=1 // pred_check_branch
      %25 = sbr.rel (0) target = $region25
    $region24: #{heco_forward.7} parent=1 // pred_region
      _
    $region25: #{heco_forward.7} parent=1 // pred_fallthru
      _
    // Predicated region
    $region26: #{heco_forward.7} parent=1 // pred_check
      _
    $region27: #{heco_forward.7} parent=1 // pred_check_branch
      %27 = sbr.rel (0) target = $region29
    $region28: #{heco_forward.7} parent=1 // pred_region
      _
    $region29: #{heco_forward.7} parent=1 // pred_fallthru
      _
    // Predicated region
    $region30: #{heco_forward.7} parent=1 // pred_check
      _
    $region31: #{heco_forward.7} parent=1 // pred_check_branch
      %29 = sbr.rel (0) target = $region33
    $region32: #{heco_forward.7} parent=1 // pred_region
      _
    $region33: #{heco_forward.7} parent=1 // pred_fallthru
      _
    %v31 = vld [vmem:[%s0] sm:$0xff]
    %v32 = vld [vmem:[%s0 + $0x8] sm:$0xff]
    %v33 = vld [vmem:[%s0 + $0x10] sm:$0xff]
    %v34 = vld [vmem:[%s0 + $0x18] sm:$0xff]
    %v35 = vld [vmem:[%s0 + $0x20] sm:$0xff]
    %v36 = vld [vmem:[%s0 + $0x28] sm:$0xff]
    %v37 = vld [vmem:[%s0 + $0x30] sm:$0xff]
    %v38 = vld [vmem:[%s0 + $0x38] sm:$0xff]
    %v39 = vld [vmem:[%s0 + $0x40] sm:$0xff]
    %v40 = vld [vmem:[%s0 + $0x48] sm:$0xff]
    %v41 = vld [vmem:[%s0 + $0x50] sm:$0xff]
    %v42 = vld [vmem:[%s0 + $0x58] sm:$0xff]
    %v43 = vld [vmem:[%s0 + $0x60] sm:$0xff]
    %v44 = vld [vmem:[%s0 + $0x68] sm:$0xff]
    %v45 = vld [vmem:[%s0 + $0x70] sm:$0xff]
    %v46 = vld [vmem:[%s0 + $0x78] sm:$0xff]
    %v47 = vld [vmem:[%s0 + $0x80] sm:$0xff]
    %v48 = vld [vmem:[%s0 + $0x88] sm:$0xff]
    %v49 = vld [vmem:[%s0 + $0x90] sm:$0xff]
    %v50 = vld [vmem:[%s0 + $0x98] sm:$0xff]
    %v51 = vld [vmem:[%s0 + $0xa0] sm:$0xff]
    %v52 = vld [vmem:[%s0 + $0xa8] sm:$0xff]
    %v53 = vld [vmem:[%s0 + $0xb0] sm:$0xff]
    %v54 = vld [vmem:[%s0 + $0xb8] sm:$0xff]
    %v55 = vld [vmem:[%s1] sm:$0xff]
    %v56 = vld [vmem:[%s1 + $0x8] sm:$0xff]
    %v57 = vld [vmem:[%s1 + $0x10] sm:$0xff]
    %v58 = vld [vmem:[%s1 + $0x18] sm:$0xff]
    %v59 = vld [vmem:[%s1 + $0x20] sm:$0xff]
    %v60 = vld [vmem:[%s1 + $0x28] sm:$0xff]
    %v61 = vld [vmem:[%s1 + $0x30] sm:$0xff]
    %v62 = vld [vmem:[%s1 + $0x38] sm:$0xff]
    %v63 = vld [vmem:[%s4] sm:$0xff]
    %v64 = vld [vmem:[%s4 + $0x8] sm:$0xff]
    %v65 = vld [vmem:[%s4 + $0x10] sm:$0xff]
    %v66 = vld [vmem:[%s4 + $0x18] sm:$0xff]
    %v67 = vld [vmem:[%s5] sm:$0x1]
    %v69 = vperm.slane %v67, 0
    %vm71 = vcmask 261120
    %v73 = vsel %vm71, %v31, 0
    %v76 = vsel %vm71, %v32, 0
    %v79 = vsel %vm71, %v33, 0
    %v82 = vsel %vm71, %v34, 0
    %v85 = vsel %vm71, %v35, 0
    %v88 = vsel %vm71, %v36, 0
    %v91 = vsel %vm71, %v37, 0
    %v94 = vsel %vm71, %v38, 0
    %v97 = vsel %vm71, %v39, 0
    %v100 = vsel %vm71, %v40, 0
    %v103 = vsel %vm71, %v41, 0
    %v106 = vsel %vm71, %v42, 0
    %v109 = vsel %vm71, %v43, 0
    %v112 = vsel %vm71, %v44, 0
    %v115 = vsel %vm71, %v45, 0
    %v118 = vsel %vm71, %v46, 0
    %v121 = vsel %vm71, %v47, 0
    %v124 = vsel %vm71, %v48, 0
    %v127 = vsel %vm71, %v49, 0
    %v130 = vsel %vm71, %v50, 0
    %v133 = vsel %vm71, %v51, 0
    %v136 = vsel %vm71, %v52, 0
    %v139 = vsel %vm71, %v53, 0
    %v142 = vsel %vm71, %v54, 0
    %v145 = vsel %vm71, %v55, 0
    %v148 = vsel %vm71, %v56, 0
    %v151 = vsel %vm71, %v57, 0
    %v154 = vsel %vm71, %v58, 0
    %v157 = vsel %vm71, %v59, 0
    %v160 = vsel %vm71, %v60, 0
    %v163 = vsel %vm71, %v61, 0
    %v166 = vsel %vm71, %v62, 0
    %168 = vmatpush.msra.mxu0 0.0
    %169 = vmatpush.msra.mxu0 0.0
    %170 = vmatpush.msra.mxu0 0.0
    %171 = vmatpush.msra.mxu0 0.0
    %172 = vmatpush.msra.mxu0 0.0
    %173 = vmatpush.msra.mxu0 0.0
    %174 = vmatpush.msra.mxu0 0.0
    %175 = vmatpush.msra.mxu0 0.0
    %176 = vmatpush.msra.mxu0 0.0
    %177 = vmatpush.msra.mxu0 0.0
    %178 = vmatpush.msra.mxu0 0.0
    %179 = vmatpush.msra.mxu0 0.0
    %180 = vmatpush.msra.mxu0 %v66
    %181 = vmatpush.msra.mxu0 %v65
    %182 = vmatpush.msra.mxu0 %v64
    %183 = vmatpush.msra.mxu0 %v63
    %184 = vmatmul.f32.gmra.mxu0 %v73
    %v185 = vpop.f32.mrf.mxu0
    %v186 = vadd.f32 %v69, %v185
    %187 = vmatmul.f32.gmra.mxu0 %v76
    %v188 = vpop.f32.mrf.mxu0
    %v189 = vadd.f32 %v69, %v188
    %190 = vmatmul.f32.gmra.mxu0 %v79
    %v191 = vpop.f32.mrf.mxu0
    %v192 = vadd.f32 %v69, %v191
    %193 = vmatmul.f32.gmra.mxu0 %v82
    %v194 = vpop.f32.mrf.mxu0
    %v195 = vadd.f32 %v69, %v194
    %196 = vmatmul.f32.gmra.mxu0 %v85
    %v197 = vpop.f32.mrf.mxu0
    %v198 = vadd.f32 %v69, %v197
    %199 = vmatmul.f32.gmra.mxu0 %v88
    %v200 = vpop.f32.mrf.mxu0
    %v201 = vadd.f32 %v69, %v200
    %202 = vmatmul.f32.gmra.mxu0 %v91
    %v203 = vpop.f32.mrf.mxu0
    %v204 = vadd.f32 %v69, %v203
    %205 = vmatmul.f32.gmra.mxu0 %v94
    %v206 = vpop.f32.mrf.mxu0
    %v207 = vadd.f32 %v69, %v206
    %208 = vmatmul.f32.gmra.mxu0 %v97
    %v209 = vpop.f32.mrf.mxu0
    %v210 = vadd.f32 %v69, %v209
    %211 = vmatmul.f32.gmra.mxu0 %v100
    %v212 = vpop.f32.mrf.mxu0
    %v213 = vadd.f32 %v69, %v212
    %214 = vmatmul.f32.gmra.mxu0 %v103
    %v215 = vpop.f32.mrf.mxu0
    %v216 = vadd.f32 %v69, %v215
    %217 = vmatmul.f32.gmra.mxu0 %v106
    %v218 = vpop.f32.mrf.mxu0
    %v219 = vadd.f32 %v69, %v218
    %220 = vmatmul.f32.gmra.mxu0 %v109
    %v221 = vpop.f32.mrf.mxu0
    %v222 = vadd.f32 %v69, %v221
    %223 = vmatmul.f32.gmra.mxu0 %v112
    %v224 = vpop.f32.mrf.mxu0
    %v225 = vadd.f32 %v69, %v224
    %226 = vmatmul.f32.gmra.mxu0 %v115
    %v227 = vpop.f32.mrf.mxu0
    %v228 = vadd.f32 %v69, %v227
    %229 = vmatmul.f32.gmra.mxu0 %v118
    %v230 = vpop.f32.mrf.mxu0
    %v231 = vadd.f32 %v69, %v230
    %232 = vmatmul.f32.gmra.mxu0 %v121
    %v233 = vpop.f32.mrf.mxu0
    %v234 = vadd.f32 %v69, %v233
    %235 = vmatmul.f32.gmra.mxu0 %v124
    %v236 = vpop.f32.mrf.mxu0
    %v237 = vadd.f32 %v69, %v236
    %238 = vmatmul.f32.gmra.mxu0 %v127
    %v239 = vpop.f32.mrf.mxu0
    %v240 = vadd.f32 %v69, %v239
    %241 = vmatmul.f32.gmra.mxu0 %v130
    %v242 = vpop.f32.mrf.mxu0
    %v243 = vadd.f32 %v69, %v242
    %244 = vmatmul.f32.gmra.mxu0 %v133
    %v245 = vpop.f32.mrf.mxu0
    %v246 = vadd.f32 %v69, %v245
    %247 = vmatmul.f32.gmra.mxu0 %v136
    %v248 = vpop.f32.mrf.mxu0
    %v249 = vadd.f32 %v69, %v248
    %250 = vmatmul.f32.gmra.mxu0 %v139
    %v251 = vpop.f32.mrf.mxu0
    %v252 = vadd.f32 %v69, %v251
    %253 = vmatmul.f32.gmra.mxu0 %v142
    %v254 = vpop.f32.mrf.mxu0
    %v255 = vadd.f32 %v69, %v254
    %256 = vmatmul.f32.gmra.mxu0 %v145
    %v257 = vpop.f32.mrf.mxu0
    %v258 = vadd.f32 %v69, %v257
    %259 = vmatmul.f32.gmra.mxu0 %v148
    %v260 = vpop.f32.mrf.mxu0
    %v261 = vadd.f32 %v69, %v260
    %262 = vmatmul.f32.gmra.mxu0 %v151
    %v263 = vpop.f32.mrf.mxu0
    %v264 = vadd.f32 %v69, %v263
    %265 = vmatmul.f32.gmra.mxu0 %v154
    %v266 = vpop.f32.mrf.mxu0
    %v267 = vadd.f32 %v69, %v266
    %268 = vmatmul.f32.gmra.mxu0 %v157
    %v269 = vpop.f32.mrf.mxu0
    %v270 = vadd.f32 %v69, %v269
    %271 = vmatmul.f32.gmra.mxu0 %v160
    %v272 = vpop.f32.mrf.mxu0
    %v273 = vadd.f32 %v69, %v272
    %274 = vmatmul.f32.gmra.mxu0 %v163
    %v275 = vpop.f32.mrf.mxu0
    %v276 = vadd.f32 %v69, %v275
    %277 = vmatmul.f32.gmra.mxu0 %v166
    %v278 = vpop.f32.mrf.mxu0
    %v279 = vadd.f32 %v69, %v278
    %280 = vdwg.mxu0
    %vm281 = vcmp.gt.f32.partialorder %v186, 0.0
    %vm282 = vcmp.gt.f32.partialorder %v189, 0.0
    %vm283 = vcmp.gt.f32.partialorder %v192, 0.0
    %vm284 = vcmp.gt.f32.partialorder %v195, 0.0
    %vm285 = vcmp.gt.f32.partialorder %v198, 0.0
    %vm286 = vcmp.gt.f32.partialorder %v201, 0.0
    %vm287 = vcmp.gt.f32.partialorder %v204, 0.0
    %vm288 = vcmp.gt.f32.partialorder %v207, 0.0
    %vm289 = vcmp.gt.f32.partialorder %v210, 0.0
    %vm290 = vcmp.gt.f32.partialorder %v213, 0.0
    %vm291 = vcmp.gt.f32.partialorder %v216, 0.0
    %vm292 = vcmp.gt.f32.partialorder %v219, 0.0
    %vm293 = vcmp.gt.f32.partialorder %v222, 0.0
    %vm294 = vcmp.gt.f32.partialorder %v225, 0.0
    %vm295 = vcmp.gt.f32.partialorder %v228, 0.0
    %vm296 = vcmp.gt.f32.partialorder %v231, 0.0
    %vm297 = vcmp.gt.f32.partialorder %v234, 0.0
    %vm298 = vcmp.gt.f32.partialorder %v237, 0.0
    %vm299 = vcmp.gt.f32.partialorder %v240, 0.0
    %vm300 = vcmp.gt.f32.partialorder %v243, 0.0
    %vm301 = vcmp.gt.f32.partialorder %v246, 0.0
    %vm302 = vcmp.gt.f32.partialorder %v249, 0.0
    %vm303 = vcmp.gt.f32.partialorder %v252, 0.0
    %vm304 = vcmp.gt.f32.partialorder %v255, 0.0
    %vm305 = vcmp.gt.f32.partialorder %v258, 0.0
    %vm306 = vcmp.gt.f32.partialorder %v261, 0.0
    %vm307 = vcmp.gt.f32.partialorder %v264, 0.0
    %vm308 = vcmp.gt.f32.partialorder %v267, 0.0
    %vm309 = vcmp.gt.f32.partialorder %v270, 0.0
    %vm310 = vcmp.gt.f32.partialorder %v273, 0.0
    %vm311 = vcmp.gt.f32.partialorder %v276, 0.0
    %vm312 = vcmp.gt.f32.partialorder %v279, 0.0
    %v313 = vmin.f32 %v186, 0.0
    %v314 = vmin.f32 %v189, 0.0
    %v315 = vmin.f32 %v192, 0.0
    %v316 = vmin.f32 %v195, 0.0
    %v317 = vmin.f32 %v198, 0.0
    %v318 = vmin.f32 %v201, 0.0
    %v319 = vmin.f32 %v204, 0.0
    %v320 = vmin.f32 %v207, 0.0
    %v321 = vmin.f32 %v210, 0.0
    %v322 = vmin.f32 %v213, 0.0
    %v323 = vmin.f32 %v216, 0.0
    %v324 = vmin.f32 %v219, 0.0
    %v325 = vmin.f32 %v222, 0.0
    %v326 = vmin.f32 %v225, 0.0
    %v327 = vmin.f32 %v228, 0.0
    %v328 = vmin.f32 %v231, 0.0
    %v329 = vmin.f32 %v234, 0.0
    %v330 = vmin.f32 %v237, 0.0
    %v331 = vmin.f32 %v240, 0.0
    %v332 = vmin.f32 %v243, 0.0
    %v333 = vmin.f32 %v246, 0.0
    %v334 = vmin.f32 %v249, 0.0
    %v335 = vmin.f32 %v252, 0.0
    %v336 = vmin.f32 %v255, 0.0
    %v337 = vmin.f32 %v258, 0.0
    %v338 = vmin.f32 %v261, 0.0
    %v339 = vmin.f32 %v264, 0.0
    %v340 = vmin.f32 %v267, 0.0
    %v341 = vmin.f32 %v270, 0.0
    %v342 = vmin.f32 %v273, 0.0
    %v343 = vmin.f32 %v276, 0.0
    %v344 = vmin.f32 %v279, 0.0
    %v345 = vmul.f32 %v313, 1.442695
    %v346 = vpow.pop %v345
    %v347 = vmul.f32 %v314, 1.442695
    %v348 = vpow.pop %v347
    %v349 = vmul.f32 %v315, 1.442695
    %v350 = vpow.pop %v349
    %v351 = vmul.f32 %v316, 1.442695
    %v352 = vpow.pop %v351
    %v353 = vmul.f32 %v317, 1.442695
    %v354 = vpow.pop %v353
    %v355 = vmul.f32 %v318, 1.442695
    %v356 = vpow.pop %v355
    %v357 = vmul.f32 %v319, 1.442695
    %v358 = vpow.pop %v357
    %v359 = vmul.f32 %v320, 1.442695
    %v360 = vpow.pop %v359
    %v361 = vmul.f32 %v321, 1.442695
    %v362 = vpow.pop %v361
    %v363 = vmul.f32 %v322, 1.442695
    %v364 = vpow.pop %v363
    %v365 = vmul.f32 %v323, 1.442695
    %v366 = vpow.pop %v365
    %v367 = vmul.f32 %v324, 1.442695
    %v368 = vpow.pop %v367
    %v369 = vmul.f32 %v325, 1.442695
    %v370 = vpow.pop %v369
    %v371 = vmul.f32 %v326, 1.442695
    %v372 = vpow.pop %v371
    %v373 = vmul.f32 %v327, 1.442695
    %v374 = vpow.pop %v373
    %v375 = vmul.f32 %v328, 1.442695
    %v376 = vpow.pop %v375
    %v377 = vmul.f32 %v329, 1.442695
    %v378 = vpow.pop %v377
    %v379 = vmul.f32 %v330, 1.442695
    %v380 = vpow.pop %v379
    %v381 = vmul.f32 %v331, 1.442695
    %v382 = vpow.pop %v381
    %v383 = vmul.f32 %v332, 1.442695
    %v384 = vpow.pop %v383
    %v385 = vmul.f32 %v333, 1.442695
    %v386 = vpow.pop %v385
    %v387 = vmul.f32 %v334, 1.442695
    %v388 = vpow.pop %v387
    %v389 = vmul.f32 %v335, 1.442695
    %v390 = vpow.pop %v389
    %v391 = vmul.f32 %v336, 1.442695
    %v392 = vpow.pop %v391
    %v393 = vmul.f32 %v337, 1.442695
    %v394 = vpow.pop %v393
    %v395 = vmul.f32 %v338, 1.442695
    %v396 = vpow.pop %v395
    %v397 = vmul.f32 %v339, 1.442695
    %v398 = vpow.pop %v397
    %v399 = vmul.f32 %v340, 1.442695
    %v400 = vpow.pop %v399
    %v401 = vmul.f32 %v341, 1.442695
    %v402 = vpow.pop %v401
    %v403 = vmul.f32 %v342, 1.442695
    %v404 = vpow.pop %v403
    %v405 = vmul.f32 %v343, 1.442695
    %v406 = vpow.pop %v405
    %v407 = vmul.f32 %v344, 1.442695
    %v408 = vpow.pop %v407
    %v409 = vsub.f32 %v346, 1.0
    %v410 = vsub.f32 %v348, 1.0
    %v411 = vsub.f32 %v350, 1.0
    %v412 = vsub.f32 %v352, 1.0
    %v413 = vsub.f32 %v354, 1.0
    %v414 = vsub.f32 %v356, 1.0
    %v415 = vsub.f32 %v358, 1.0
    %v416 = vsub.f32 %v360, 1.0
    %v417 = vsub.f32 %v362, 1.0
    %v418 = vsub.f32 %v364, 1.0
    %v419 = vsub.f32 %v366, 1.0
    %v420 = vsub.f32 %v368, 1.0
    %v421 = vsub.f32 %v370, 1.0
    %v422 = vsub.f32 %v372, 1.0
    %v423 = vsub.f32 %v374, 1.0
    %v424 = vsub.f32 %v376, 1.0
    %v425 = vsub.f32 %v378, 1.0
    %v426 = vsub.f32 %v380, 1.0
    %v427 = vsub.f32 %v382, 1.0
    %v428 = vsub.f32 %v384, 1.0
    %v429 = vsub.f32 %v386, 1.0
    %v430 = vsub.f32 %v388, 1.0
    %v431 = vsub.f32 %v390, 1.0
    %v432 = vsub.f32 %v392, 1.0
    %v433 = vsub.f32 %v394, 1.0
    %v434 = vsub.f32 %v396, 1.0
    %v435 = vsub.f32 %v398, 1.0
    %v436 = vsub.f32 %v400, 1.0
    %v437 = vsub.f32 %v402, 1.0
    %v438 = vsub.f32 %v404, 1.0
    %v439 = vsub.f32 %v406, 1.0
    %v440 = vsub.f32 %v408, 1.0
    %v441 = vsel %vm281, %v186, %v409
    %v442 = vsel %vm282, %v189, %v410
    %v443 = vsel %vm283, %v192, %v411
    %v444 = vsel %vm284, %v195, %v412
    %v445 = vsel %vm285, %v198, %v413
    %v446 = vsel %vm286, %v201, %v414
    %v447 = vsel %vm287, %v204, %v415
    %v448 = vsel %vm288, %v207, %v416
    %v449 = vsel %vm289, %v210, %v417
    %v450 = vsel %vm290, %v213, %v418
    %v451 = vsel %vm291, %v216, %v419
    %v452 = vsel %vm292, %v219, %v420
    %v453 = vsel %vm293, %v222, %v421
    %v454 = vsel %vm294, %v225, %v422
    %v455 = vsel %vm295, %v228, %v423
    %v456 = vsel %vm296, %v231, %v424
    %v457 = vsel %vm297, %v234, %v425
    %v458 = vsel %vm298, %v237, %v426
    %v459 = vsel %vm299, %v240, %v427
    %v460 = vsel %vm300, %v243, %v428
    %v461 = vsel %vm301, %v246, %v429
    %v462 = vsel %vm302, %v249, %v430
    %v463 = vsel %vm303, %v252, %v431
    %v464 = vsel %vm304, %v255, %v432
    %v465 = vsel %vm305, %v258, %v433
    %v466 = vsel %vm306, %v261, %v434
    %v467 = vsel %vm307, %v264, %v435
    %v468 = vsel %vm308, %v267, %v436
    %v469 = vsel %vm309, %v270, %v437
    %v470 = vsel %vm310, %v273, %v438
    %v471 = vsel %vm311, %v276, %v439
    %v472 = vsel %vm312, %v279, %v440
    %v473 = vld [vmem:[%s6] sm:$0xff]
    %v474 = vld [vmem:[%s6 + $0x8] sm:$0xff]
    %v475 = vld [vmem:[%s6 + $0x10] sm:$0xff]
    %v476 = vld [vmem:[%s6 + $0x18] sm:$0xff]
    %v477 = vld [vmem:[%s6 + $0x20] sm:$0xff]
    %v478 = vld [vmem:[%s6 + $0x28] sm:$0xff]
    %v479 = vld [vmem:[%s6 + $0x30] sm:$0xff]
    %v480 = vld [vmem:[%s6 + $0x38] sm:$0xff]
    %v481 = vld [vmem:[%s6 + $0x40] sm:$0xff]
    %v482 = vld [vmem:[%s6 + $0x48] sm:$0xff]
    %v483 = vld [vmem:[%s6 + $0x50] sm:$0xff]
    %v484 = vld [vmem:[%s6 + $0x58] sm:$0xff]
    %v485 = vld [vmem:[%s6 + $0x60] sm:$0xff]
    %v486 = vld [vmem:[%s6 + $0x68] sm:$0xff]
    %v487 = vld [vmem:[%s6 + $0x70] sm:$0xff]
    %v488 = vld [vmem:[%s6 + $0x78] sm:$0xff]
    %v489 = vld [vmem:[%s7] sm:$0x1]
    %v491 = vperm.slane %v489, 0
    %493 = vmatpush.msra.mxu0 %v488
    %494 = vmatpush.msra.mxu0 %v487
    %495 = vmatpush.msra.mxu0 %v486
    %496 = vmatpush.msra.mxu0 %v485
    %497 = vmatpush.msra.mxu0 %v484
    %498 = vmatpush.msra.mxu0 %v483
    %499 = vmatpush.msra.mxu0 %v482
    %500 = vmatpush.msra.mxu0 %v481
    %501 = vmatpush.msra.mxu0 %v480
    %502 = vmatpush.msra.mxu0 %v479
    %503 = vmatpush.msra.mxu0 %v478
    %504 = vmatpush.msra.mxu0 %v477
    %505 = vmatpush.msra.mxu0 %v476
    %506 = vmatpush.msra.mxu0 %v475
    %507 = vmatpush.msra.mxu0 %v474
    %508 = vmatpush.msra.mxu0 %v473
    %509 = vmatmul.f32.gmra.mxu0 %v441
    %v510 = vpop.f32.mrf.mxu0
    %v511 = vadd.f32 %v491, %v510
    %512 = vmatmul.f32.gmra.mxu0 %v442
    %v513 = vpop.f32.mrf.mxu0
    %v514 = vadd.f32 %v491, %v513
    %515 = vmatmul.f32.gmra.mxu0 %v443
    %v516 = vpop.f32.mrf.mxu0
    %v517 = vadd.f32 %v491, %v516
    %518 = vmatmul.f32.gmra.mxu0 %v444
    %v519 = vpop.f32.mrf.mxu0
    %v520 = vadd.f32 %v491, %v519
    %521 = vmatmul.f32.gmra.mxu0 %v445
    %v522 = vpop.f32.mrf.mxu0
    %v523 = vadd.f32 %v491, %v522
    %524 = vmatmul.f32.gmra.mxu0 %v446
    %v525 = vpop.f32.mrf.mxu0
    %v526 = vadd.f32 %v491, %v525
    %527 = vmatmul.f32.gmra.mxu0 %v447
    %v528 = vpop.f32.mrf.mxu0
    %v529 = vadd.f32 %v491, %v528
    %530 = vmatmul.f32.gmra.mxu0 %v448
    %v531 = vpop.f32.mrf.mxu0
    %v532 = vadd.f32 %v491, %v531
    %533 = vmatmul.f32.gmra.mxu0 %v449
    %v534 = vpop.f32.mrf.mxu0
    %v535 = vadd.f32 %v491, %v534
    %536 = vmatmul.f32.gmra.mxu0 %v450
    %v537 = vpop.f32.mrf.mxu0
    %v538 = vadd.f32 %v491, %v537
    %539 = vmatmul.f32.gmra.mxu0 %v451
    %v540 = vpop.f32.mrf.mxu0
    %v541 = vadd.f32 %v491, %v540
    %542 = vmatmul.f32.gmra.mxu0 %v452
    %v543 = vpop.f32.mrf.mxu0
    %v544 = vadd.f32 %v491, %v543
    %545 = vmatmul.f32.gmra.mxu0 %v453
    %v546 = vpop.f32.mrf.mxu0
    %v547 = vadd.f32 %v491, %v546
    %548 = vmatmul.f32.gmra.mxu0 %v454
    %v549 = vpop.f32.mrf.mxu0
    %v550 = vadd.f32 %v491, %v549
    %551 = vmatmul.f32.gmra.mxu0 %v455
    %v552 = vpop.f32.mrf.mxu0
    %v553 = vadd.f32 %v491, %v552
    %554 = vmatmul.f32.gmra.mxu0 %v456
    %v555 = vpop.f32.mrf.mxu0
    %v556 = vadd.f32 %v491, %v555
    %557 = vmatmul.f32.gmra.mxu0 %v457
    %v558 = vpop.f32.mrf.mxu0
    %v559 = vadd.f32 %v491, %v558
    %560 = vmatmul.f32.gmra.mxu0 %v458
    %v561 = vpop.f32.mrf.mxu0
    %v562 = vadd.f32 %v491, %v561
    %563 = vmatmul.f32.gmra.mxu0 %v459
    %v564 = vpop.f32.mrf.mxu0
    %v565 = vadd.f32 %v491, %v564
    %566 = vmatmul.f32.gmra.mxu0 %v460
    %v567 = vpop.f32.mrf.mxu0
    %v568 = vadd.f32 %v491, %v567
    %569 = vmatmul.f32.gmra.mxu0 %v461
    %v570 = vpop.f32.mrf.mxu0
    %v571 = vadd.f32 %v491, %v570
    %572 = vmatmul.f32.gmra.mxu0 %v462
    %v573 = vpop.f32.mrf.mxu0
    %v574 = vadd.f32 %v491, %v573
    %575 = vmatmul.f32.gmra.mxu0 %v463
    %v576 = vpop.f32.mrf.mxu0
    %v577 = vadd.f32 %v491, %v576
    %578 = vmatmul.f32.gmra.mxu0 %v464
    %v579 = vpop.f32.mrf.mxu0
    %v580 = vadd.f32 %v491, %v579
    %581 = vmatmul.f32.gmra.mxu0 %v465
    %v582 = vpop.f32.mrf.mxu0
    %v583 = vadd.f32 %v491, %v582
    %584 = vmatmul.f32.gmra.mxu0 %v466
    %v585 = vpop.f32.mrf.mxu0
    %v586 = vadd.f32 %v491, %v585
    %587 = vmatmul.f32.gmra.mxu0 %v467
    %v588 = vpop.f32.mrf.mxu0
    %v589 = vadd.f32 %v491, %v588
    %590 = vmatmul.f32.gmra.mxu0 %v468
    %v591 = vpop.f32.mrf.mxu0
    %v592 = vadd.f32 %v491, %v591
    %593 = vmatmul.f32.gmra.mxu0 %v469
    %v594 = vpop.f32.mrf.mxu0
    %v595 = vadd.f32 %v491, %v594
    %596 = vmatmul.f32.gmra.mxu0 %v470
    %v597 = vpop.f32.mrf.mxu0
    %v598 = vadd.f32 %v491, %v597
    %599 = vmatmul.f32.gmra.mxu0 %v471
    %v600 = vpop.f32.mrf.mxu0
    %v601 = vadd.f32 %v491, %v600
    %602 = vmatmul.f32.gmra.mxu0 %v472
    %v603 = vpop.f32.mrf.mxu0
    %v604 = vadd.f32 %v491, %v603
    %605 = vdwg.mxu0
    %v606 = vmul.f32 %v511, %v511
    %v607 = vmul.f32 %v514, %v514
    %v608 = vmul.f32 %v517, %v517
    %v609 = vmul.f32 %v520, %v520
    %v610 = vmul.f32 %v523, %v523
    %v611 = vmul.f32 %v526, %v526
    %v612 = vmul.f32 %v529, %v529
    %v613 = vmul.f32 %v532, %v532
    %v614 = vmul.f32 %v535, %v535
    %v615 = vmul.f32 %v538, %v538
    %v616 = vmul.f32 %v541, %v541
    %v617 = vmul.f32 %v544, %v544
    %v618 = vmul.f32 %v547, %v547
    %v619 = vmul.f32 %v550, %v550
    %v620 = vmul.f32 %v553, %v553
    %v621 = vmul.f32 %v556, %v556
    %v622 = vmul.f32 %v559, %v559
    %v623 = vmul.f32 %v562, %v562
    %v624 = vmul.f32 %v565, %v565
    %v625 = vmul.f32 %v568, %v568
    %v626 = vmul.f32 %v571, %v571
    %v627 = vmul.f32 %v574, %v574
    %v628 = vmul.f32 %v577, %v577
    %v629 = vmul.f32 %v580, %v580
    %v630 = vmul.f32 %v583, %v583
    %v631 = vmul.f32 %v586, %v586
    %v632 = vmul.f32 %v589, %v589
    %v633 = vmul.f32 %v592, %v592
    %v634 = vmul.f32 %v595, %v595
    %v635 = vmul.f32 %v598, %v598
    %v636 = vmul.f32 %v601, %v601
    %v637 = vmul.f32 %v604, %v604
    %638 = vadd.xlane.f32.xlu0 %v606
    %v639 = vpop.xlane.xlu0 %638
    %640 = vadd.xlane.f32.xlu0 %v607
    %v641 = vpop.xlane.xlu0 %640
    %642 = vadd.xlane.f32.xlu0 %v608
    %v643 = vpop.xlane.xlu0 %642
    %644 = vadd.xlane.f32.xlu0 %v609
    %v645 = vpop.xlane.xlu0 %644
    %646 = vadd.xlane.f32.xlu0 %v610
    %v647 = vpop.xlane.xlu0 %646
    %648 = vadd.xlane.f32.xlu0 %v611
    %v649 = vpop.xlane.xlu0 %648
    %650 = vadd.xlane.f32.xlu0 %v612
    %v651 = vpop.xlane.xlu0 %650
    %652 = vadd.xlane.f32.xlu0 %v613
    %v653 = vpop.xlane.xlu0 %652
    %654 = vadd.xlane.f32.xlu0 %v614
    %v655 = vpop.xlane.xlu0 %654
    %656 = vadd.xlane.f32.xlu0 %v615
    %v657 = vpop.xlane.xlu0 %656
    %658 = vadd.xlane.f32.xlu0 %v616
    %v659 = vpop.xlane.xlu0 %658
    %660 = vadd.xlane.f32.xlu0 %v617
    %v661 = vpop.xlane.xlu0 %660
    %662 = vadd.xlane.f32.xlu0 %v618
    %v663 = vpop.xlane.xlu0 %662
    %664 = vadd.xlane.f32.xlu0 %v619
    %v665 = vpop.xlane.xlu0 %664
    %666 = vadd.xlane.f32.xlu0 %v620
    %v667 = vpop.xlane.xlu0 %666
    %668 = vadd.xlane.f32.xlu0 %v621
    %v669 = vpop.xlane.xlu0 %668
    %670 = vadd.xlane.f32.xlu0 %v622
    %v671 = vpop.xlane.xlu0 %670
    %672 = vadd.xlane.f32.xlu0 %v623
    %v673 = vpop.xlane.xlu0 %672
    %674 = vadd.xlane.f32.xlu0 %v624
    %v675 = vpop.xlane.xlu0 %674
    %676 = vadd.xlane.f32.xlu0 %v625
    %v677 = vpop.xlane.xlu0 %676
    %678 = vadd.xlane.f32.xlu0 %v626
    %v679 = vpop.xlane.xlu0 %678
    %680 = vadd.xlane.f32.xlu0 %v627
    %v681 = vpop.xlane.xlu0 %680
    %682 = vadd.xlane.f32.xlu0 %v628
    %v683 = vpop.xlane.xlu0 %682
    %684 = vadd.xlane.f32.xlu0 %v629
    %v685 = vpop.xlane.xlu0 %684
    %686 = vadd.xlane.f32.xlu0 %v630
    %v687 = vpop.xlane.xlu0 %686
    %688 = vadd.xlane.f32.xlu0 %v631
    %v689 = vpop.xlane.xlu0 %688
    %690 = vadd.xlane.f32.xlu0 %v632
    %v691 = vpop.xlane.xlu0 %690
    %692 = vadd.xlane.f32.xlu0 %v633
    %v693 = vpop.xlane.xlu0 %692
    %694 = vadd.xlane.f32.xlu0 %v634
    %v695 = vpop.xlane.xlu0 %694
    %696 = vadd.xlane.f32.xlu0 %v635
    %v697 = vpop.xlane.xlu0 %696
    %698 = vadd.xlane.f32.xlu0 %v636
    %v699 = vpop.xlane.xlu0 %698
    %700 = vadd.xlane.f32.xlu0 %v637
    %v701 = vpop.xlane.xlu0 %700
    %v702 = vadd.f32 %v639, 1e-12
    %v703 = vadd.f32 %v641, 1e-12
    %v704 = vadd.f32 %v643, 1e-12
    %v705 = vadd.f32 %v645, 1e-12
    %v706 = vadd.f32 %v647, 1e-12
    %v707 = vadd.f32 %v649, 1e-12
    %v708 = vadd.f32 %v651, 1e-12
    %v709 = vadd.f32 %v653, 1e-12
    %v710 = vadd.f32 %v655, 1e-12
    %v711 = vadd.f32 %v657, 1e-12
    %v712 = vadd.f32 %v659, 1e-12
    %v713 = vadd.f32 %v661, 1e-12
    %v714 = vadd.f32 %v663, 1e-12
    %v715 = vadd.f32 %v665, 1e-12
    %v716 = vadd.f32 %v667, 1e-12
    %v717 = vadd.f32 %v669, 1e-12
    %v718 = vadd.f32 %v671, 1e-12
    %v719 = vadd.f32 %v673, 1e-12
    %v720 = vadd.f32 %v675, 1e-12
    %v721 = vadd.f32 %v677, 1e-12
    %v722 = vadd.f32 %v679, 1e-12
    %v723 = vadd.f32 %v681, 1e-12
    %v724 = vadd.f32 %v683, 1e-12
    %v725 = vadd.f32 %v685, 1e-12
    %v726 = vadd.f32 %v687, 1e-12
    %v727 = vadd.f32 %v689, 1e-12
    %v728 = vadd.f32 %v691, 1e-12
    %v729 = vadd.f32 %v693, 1e-12
    %v730 = vadd.f32 %v695, 1e-12
    %v731 = vadd.f32 %v697, 1e-12
    %v732 = vadd.f32 %v699, 1e-12
    %v733 = vadd.f32 %v701, 1e-12
    %v734 = vrsqrt.pop %v702
    %v735 = vmul.f32 %v734, %v702
    %v736 = vmul.f32 %v735, %v734
    %v737 = vmul.f32 0.5, %v736
    %v738 = vsub.f32 1.5, %v737
    %v739 = vmul.f32 %v734, %v738
    %vm740 = vweird.f32 %v702
    %vm741 = vweird.f32 %v734
    %vm742 = vmor %vm740, %vm741
    %v743 = vsel %vm742, %v734, %v739
    %v744 = vrsqrt.pop %v703
    %v745 = vmul.f32 %v744, %v703
    %v746 = vmul.f32 %v745, %v744
    %v747 = vmul.f32 0.5, %v746
    %v748 = vsub.f32 1.5, %v747
    %v749 = vmul.f32 %v744, %v748
    %vm750 = vweird.f32 %v703
    %vm751 = vweird.f32 %v744
    %vm752 = vmor %vm750, %vm751
    %v753 = vsel %vm752, %v744, %v749
    %v754 = vrsqrt.pop %v704
    %v755 = vmul.f32 %v754, %v704
    %v756 = vmul.f32 %v755, %v754
    %v757 = vmul.f32 0.5, %v756
    %v758 = vsub.f32 1.5, %v757
    %v759 = vmul.f32 %v754, %v758
    %vm760 = vweird.f32 %v704
    %vm761 = vweird.f32 %v754
    %vm762 = vmor %vm760, %vm761
    %v763 = vsel %vm762, %v754, %v759
    %v764 = vrsqrt.pop %v705
    %v765 = vmul.f32 %v764, %v705
    %v766 = vmul.f32 %v765, %v764
    %v767 = vmul.f32 0.5, %v766
    %v768 = vsub.f32 1.5, %v767
    %v769 = vmul.f32 %v764, %v768
    %vm770 = vweird.f32 %v705
    %vm771 = vweird.f32 %v764
    %vm772 = vmor %vm770, %vm771
    %v773 = vsel %vm772, %v764, %v769
    %v774 = vrsqrt.pop %v706
    %v775 = vmul.f32 %v774, %v706
    %v776 = vmul.f32 %v775, %v774
    %v777 = vmul.f32 0.5, %v776
    %v778 = vsub.f32 1.5, %v777
    %v779 = vmul.f32 %v774, %v778
    %vm780 = vweird.f32 %v706
    %vm781 = vweird.f32 %v774
    %vm782 = vmor %vm780, %vm781
    %v783 = vsel %vm782, %v774, %v779
    %v784 = vrsqrt.pop %v707
    %v785 = vmul.f32 %v784, %v707
    %v786 = vmul.f32 %v785, %v784
    %v787 = vmul.f32 0.5, %v786
    %v788 = vsub.f32 1.5, %v787
    %v789 = vmul.f32 %v784, %v788
    %vm790 = vweird.f32 %v707
    %vm791 = vweird.f32 %v784
    %vm792 = vmor %vm790, %vm791
    %v793 = vsel %vm792, %v784, %v789
    %v794 = vrsqrt.pop %v708
    %v795 = vmul.f32 %v794, %v708
    %v796 = vmul.f32 %v795, %v794
    %v797 = vmul.f32 0.5, %v796
    %v798 = vsub.f32 1.5, %v797
    %v799 = vmul.f32 %v794, %v798
    %vm800 = vweird.f32 %v708
    %vm801 = vweird.f32 %v794
    %vm802 = vmor %vm800, %vm801
    %v803 = vsel %vm802, %v794, %v799
    %v804 = vrsqrt.pop %v709
    %v805 = vmul.f32 %v804, %v709
    %v806 = vmul.f32 %v805, %v804
    %v807 = vmul.f32 0.5, %v806
    %v808 = vsub.f32 1.5, %v807
    %v809 = vmul.f32 %v804, %v808
    %vm810 = vweird.f32 %v709
    %vm811 = vweird.f32 %v804
    %vm812 = vmor %vm810, %vm811
    %v813 = vsel %vm812, %v804, %v809
    %v814 = vrsqrt.pop %v710
    %v815 = vmul.f32 %v814, %v710
    %v816 = vmul.f32 %v815, %v814
    %v817 = vmul.f32 0.5, %v816
    %v818 = vsub.f32 1.5, %v817
    %v819 = vmul.f32 %v814, %v818
    %vm820 = vweird.f32 %v710
    %vm821 = vweird.f32 %v814
    %vm822 = vmor %vm820, %vm821
    %v823 = vsel %vm822, %v814, %v819
    %v824 = vrsqrt.pop %v711
    %v825 = vmul.f32 %v824, %v711
    %v826 = vmul.f32 %v825, %v824
    %v827 = vmul.f32 0.5, %v826
    %v828 = vsub.f32 1.5, %v827
    %v829 = vmul.f32 %v824, %v828
    %vm830 = vweird.f32 %v711
    %vm831 = vweird.f32 %v824
    %vm832 = vmor %vm830, %vm831
    %v833 = vsel %vm832, %v824, %v829
    %v834 = vrsqrt.pop %v712
    %v835 = vmul.f32 %v834, %v712
    %v836 = vmul.f32 %v835, %v834
    %v837 = vmul.f32 0.5, %v836
    %v838 = vsub.f32 1.5, %v837
    %v839 = vmul.f32 %v834, %v838
    %vm840 = vweird.f32 %v712
    %vm841 = vweird.f32 %v834
    %vm842 = vmor %vm840, %vm841
    %v843 = vsel %vm842, %v834, %v839
    %v844 = vrsqrt.pop %v713
    %v845 = vmul.f32 %v844, %v713
    %v846 = vmul.f32 %v845, %v844
    %v847 = vmul.f32 0.5, %v846
    %v848 = vsub.f32 1.5, %v847
    %v849 = vmul.f32 %v844, %v848
    %vm850 = vweird.f32 %v713
    %vm851 = vweird.f32 %v844
    %vm852 = vmor %vm850, %vm851
    %v853 = vsel %vm852, %v844, %v849
    %v854 = vrsqrt.pop %v714
    %v855 = vmul.f32 %v854, %v714
    %v856 = vmul.f32 %v855, %v854
    %v857 = vmul.f32 0.5, %v856
    %v858 = vsub.f32 1.5, %v857
    %v859 = vmul.f32 %v854, %v858
    %vm860 = vweird.f32 %v714
    %vm861 = vweird.f32 %v854
    %vm862 = vmor %vm860, %vm861
    %v863 = vsel %vm862, %v854, %v859
    %v864 = vrsqrt.pop %v715
    %v865 = vmul.f32 %v864, %v715
    %v866 = vmul.f32 %v865, %v864
    %v867 = vmul.f32 0.5, %v866
    %v868 = vsub.f32 1.5, %v867
    %v869 = vmul.f32 %v864, %v868
    %vm870 = vweird.f32 %v715
    %vm871 = vweird.f32 %v864
    %vm872 = vmor %vm870, %vm871
    %v873 = vsel %vm872, %v864, %v869
    %v874 = vrsqrt.pop %v716
    %v875 = vmul.f32 %v874, %v716
    %v876 = vmul.f32 %v875, %v874
    %v877 = vmul.f32 0.5, %v876
    %v878 = vsub.f32 1.5, %v877
    %v879 = vmul.f32 %v874, %v878
    %vm880 = vweird.f32 %v716
    %vm881 = vweird.f32 %v874
    %vm882 = vmor %vm880, %vm881
    %v883 = vsel %vm882, %v874, %v879
    %v884 = vrsqrt.pop %v717
    %v885 = vmul.f32 %v884, %v717
    %v886 = vmul.f32 %v885, %v884
    %v887 = vmul.f32 0.5, %v886
    %v888 = vsub.f32 1.5, %v887
    %v889 = vmul.f32 %v884, %v888
    %vm890 = vweird.f32 %v717
    %vm891 = vweird.f32 %v884
    %vm892 = vmor %vm890, %vm891
    %v893 = vsel %vm892, %v884, %v889
    %v894 = vrsqrt.pop %v718
    %v895 = vmul.f32 %v894, %v718
    %v896 = vmul.f32 %v895, %v894
    %v897 = vmul.f32 0.5, %v896
    %v898 = vsub.f32 1.5, %v897
    %v899 = vmul.f32 %v894, %v898
    %vm900 = vweird.f32 %v718
    %vm901 = vweird.f32 %v894
    %vm902 = vmor %vm900, %vm901
    %v903 = vsel %vm902, %v894, %v899
    %v904 = vrsqrt.pop %v719
    %v905 = vmul.f32 %v904, %v719
    %v906 = vmul.f32 %v905, %v904
    %v907 = vmul.f32 0.5, %v906
    %v908 = vsub.f32 1.5, %v907
    %v909 = vmul.f32 %v904, %v908
    %vm910 = vweird.f32 %v719
    %vm911 = vweird.f32 %v904
    %vm912 = vmor %vm910, %vm911
    %v913 = vsel %vm912, %v904, %v909
    %v914 = vrsqrt.pop %v720
    %v915 = vmul.f32 %v914, %v720
    %v916 = vmul.f32 %v915, %v914
    %v917 = vmul.f32 0.5, %v916
    %v918 = vsub.f32 1.5, %v917
    %v919 = vmul.f32 %v914, %v918
    %vm920 = vweird.f32 %v720
    %vm921 = vweird.f32 %v914
    %vm922 = vmor %vm920, %vm921
    %v923 = vsel %vm922, %v914, %v919
    %v924 = vrsqrt.pop %v721
    %v925 = vmul.f32 %v924, %v721
    %v926 = vmul.f32 %v925, %v924
    %v927 = vmul.f32 0.5, %v926
    %v928 = vsub.f32 1.5, %v927
    %v929 = vmul.f32 %v924, %v928
    %vm930 = vweird.f32 %v721
    %vm931 = vweird.f32 %v924
    %vm932 = vmor %vm930, %vm931
    %v933 = vsel %vm932, %v924, %v929
    %v934 = vrsqrt.pop %v722
    %v935 = vmul.f32 %v934, %v722
    %v936 = vmul.f32 %v935, %v934
    %v937 = vmul.f32 0.5, %v936
    %v938 = vsub.f32 1.5, %v937
    %v939 = vmul.f32 %v934, %v938
    %vm940 = vweird.f32 %v722
    %vm941 = vweird.f32 %v934
    %vm942 = vmor %vm940, %vm941
    %v943 = vsel %vm942, %v934, %v939
    %v944 = vrsqrt.pop %v723
    %v945 = vmul.f32 %v944, %v723
    %v946 = vmul.f32 %v945, %v944
    %v947 = vmul.f32 0.5, %v946
    %v948 = vsub.f32 1.5, %v947
    %v949 = vmul.f32 %v944, %v948
    %vm950 = vweird.f32 %v723
    %vm951 = vweird.f32 %v944
    %vm952 = vmor %vm950, %vm951
    %v953 = vsel %vm952, %v944, %v949
    %v954 = vrsqrt.pop %v724
    %v955 = vmul.f32 %v954, %v724
    %v956 = vmul.f32 %v955, %v954
    %v957 = vmul.f32 0.5, %v956
    %v958 = vsub.f32 1.5, %v957
    %v959 = vmul.f32 %v954, %v958
    %vm960 = vweird.f32 %v724
    %vm961 = vweird.f32 %v954
    %vm962 = vmor %vm960, %vm961
    %v963 = vsel %vm962, %v954, %v959
    %v964 = vrsqrt.pop %v725
    %v965 = vmul.f32 %v964, %v725
    %v966 = vmul.f32 %v965, %v964
    %v967 = vmul.f32 0.5, %v966
    %v968 = vsub.f32 1.5, %v967
    %v969 = vmul.f32 %v964, %v968
    %vm970 = vweird.f32 %v725
    %vm971 = vweird.f32 %v964
    %vm972 = vmor %vm970, %vm971
    %v973 = vsel %vm972, %v964, %v969
    %v974 = vrsqrt.pop %v726
    %v975 = vmul.f32 %v974, %v726
    %v976 = vmul.f32 %v975, %v974
    %v977 = vmul.f32 0.5, %v976
    %v978 = vsub.f32 1.5, %v977
    %v979 = vmul.f32 %v974, %v978
    %vm980 = vweird.f32 %v726
    %vm981 = vweird.f32 %v974
    %vm982 = vmor %vm980, %vm981
    %v983 = vsel %vm982, %v974, %v979
    %v984 = vrsqrt.pop %v727
    %v985 = vmul.f32 %v984, %v727
    %v986 = vmul.f32 %v985, %v984
    %v987 = vmul.f32 0.5, %v986
    %v988 = vsub.f32 1.5, %v987
    %v989 = vmul.f32 %v984, %v988
    %vm990 = vweird.f32 %v727
    %vm991 = vweird.f32 %v984
    %vm992 = vmor %vm990, %vm991
    %v993 = vsel %vm992, %v984, %v989
    %v994 = vrsqrt.pop %v728
    %v995 = vmul.f32 %v994, %v728
    %v996 = vmul.f32 %v995, %v994
    %v997 = vmul.f32 0.5, %v996
    %v998 = vsub.f32 1.5, %v997
    %v999 = vmul.f32 %v994, %v998
    %vm1000 = vweird.f32 %v728
    %vm1001 = vweird.f32 %v994
    %vm1002 = vmor %vm1000, %vm1001
    %v1003 = vsel %vm1002, %v994, %v999
    %v1004 = vrsqrt.pop %v729
    %v1005 = vmul.f32 %v1004, %v729
    %v1006 = vmul.f32 %v1005, %v1004
    %v1007 = vmul.f32 0.5, %v1006
    %v1008 = vsub.f32 1.5, %v1007
    %v1009 = vmul.f32 %v1004, %v1008
    %vm1010 = vweird.f32 %v729
    %vm1011 = vweird.f32 %v1004
    %vm1012 = vmor %vm1010, %vm1011
    %v1013 = vsel %vm1012, %v1004, %v1009
    %v1014 = vrsqrt.pop %v730
    %v1015 = vmul.f32 %v1014, %v730
    %v1016 = vmul.f32 %v1015, %v1014
    %v1017 = vmul.f32 0.5, %v1016
    %v1018 = vsub.f32 1.5, %v1017
    %v1019 = vmul.f32 %v1014, %v1018
    %vm1020 = vweird.f32 %v730
    %vm1021 = vweird.f32 %v1014
    %vm1022 = vmor %vm1020, %vm1021
    %v1023 = vsel %vm1022, %v1014, %v1019
    %v1024 = vrsqrt.pop %v731
    %v1025 = vmul.f32 %v1024, %v731
    %v1026 = vmul.f32 %v1025, %v1024
    %v1027 = vmul.f32 0.5, %v1026
    %v1028 = vsub.f32 1.5, %v1027
    %v1029 = vmul.f32 %v1024, %v1028
    %vm1030 = vweird.f32 %v731
    %vm1031 = vweird.f32 %v1024
    %vm1032 = vmor %vm1030, %vm1031
    %v1033 = vsel %vm1032, %v1024, %v1029
    %v1034 = vrsqrt.pop %v732
    %v1035 = vmul.f32 %v1034, %v732
    %v1036 = vmul.f32 %v1035, %v1034
    %v1037 = vmul.f32 0.5, %v1036
    %v1038 = vsub.f32 1.5, %v1037
    %v1039 = vmul.f32 %v1034, %v1038
    %vm1040 = vweird.f32 %v732
    %vm1041 = vweird.f32 %v1034
    %vm1042 = vmor %vm1040, %vm1041
    %v1043 = vsel %vm1042, %v1034, %v1039
    %v1044 = vrsqrt.pop %v733
    %v1045 = vmul.f32 %v1044, %v733
    %v1046 = vmul.f32 %v1045, %v1044
    %v1047 = vmul.f32 0.5, %v1046
    %v1048 = vsub.f32 1.5, %v1047
    %v1049 = vmul.f32 %v1044, %v1048
    %vm1050 = vweird.f32 %v733
    %vm1051 = vweird.f32 %v1044
    %vm1052 = vmor %vm1050, %vm1051
    %v1053 = vsel %vm1052, %v1044, %v1049
    %v1054 = vmul.f32 %v511, %v743
    %v1055 = vmul.f32 %v514, %v753
    %v1056 = vmul.f32 %v517, %v763
    %v1057 = vmul.f32 %v520, %v773
    %v1058 = vmul.f32 %v523, %v783
    %v1059 = vmul.f32 %v526, %v793
    %v1060 = vmul.f32 %v529, %v803
    %v1061 = vmul.f32 %v532, %v813
    %v1062 = vmul.f32 %v535, %v823
    %v1063 = vmul.f32 %v538, %v833
    %v1064 = vmul.f32 %v541, %v843
    %v1065 = vmul.f32 %v544, %v853
    %v1066 = vmul.f32 %v547, %v863
    %v1067 = vmul.f32 %v550, %v873
    %v1068 = vmul.f32 %v553, %v883
    %v1069 = vmul.f32 %v556, %v893
    %v1070 = vmul.f32 %v559, %v903
    %v1071 = vmul.f32 %v562, %v913
    %v1072 = vmul.f32 %v565, %v923
    %v1073 = vmul.f32 %v568, %v933
    %v1074 = vmul.f32 %v571, %v943
    %v1075 = vmul.f32 %v574, %v953
    %v1076 = vmul.f32 %v577, %v963
    %v1077 = vmul.f32 %v580, %v973
    %v1078 = vmul.f32 %v583, %v983
    %v1079 = vmul.f32 %v586, %v993
    %v1080 = vmul.f32 %v589, %v1003
    %v1081 = vmul.f32 %v592, %v1013
    %v1082 = vmul.f32 %v595, %v1023
    %v1083 = vmul.f32 %v598, %v1033
    %v1084 = vmul.f32 %v601, %v1043
    %v1085 = vmul.f32 %v604, %v1053
    %v1086 = vpack.c.bf16 %v1054, %v1054
    %v1087 = vpack.c.bf16 %v1055, %v1055
    %v1088 = vpack.c.bf16 %v1056, %v1056
    %v1089 = vpack.c.bf16 %v1057, %v1057
    %v1090 = vpack.c.bf16 %v1058, %v1058
    %v1091 = vpack.c.bf16 %v1059, %v1059
    %v1092 = vpack.c.bf16 %v1060, %v1060
    %v1093 = vpack.c.bf16 %v1061, %v1061
    %v1094 = vpack.c.bf16 %v1062, %v1062
    %v1095 = vpack.c.bf16 %v1063, %v1063
    %v1096 = vpack.c.bf16 %v1064, %v1064
    %v1097 = vpack.c.bf16 %v1065, %v1065
    %v1098 = vpack.c.bf16 %v1066, %v1066
    %v1099 = vpack.c.bf16 %v1067, %v1067
    %v1100 = vpack.c.bf16 %v1068, %v1068
    %v1101 = vpack.c.bf16 %v1069, %v1069
    %v1102 = vpack.c.bf16 %v1070, %v1070
    %v1103 = vpack.c.bf16 %v1071, %v1071
    %v1104 = vpack.c.bf16 %v1072, %v1072
    %v1105 = vpack.c.bf16 %v1073, %v1073
    %v1106 = vpack.c.bf16 %v1074, %v1074
    %v1107 = vpack.c.bf16 %v1075, %v1075
    %v1108 = vpack.c.bf16 %v1076, %v1076
    %v1109 = vpack.c.bf16 %v1077, %v1077
    %v1110 = vpack.c.bf16 %v1078, %v1078
    %v1111 = vpack.c.bf16 %v1079, %v1079
    %v1112 = vpack.c.bf16 %v1080, %v1080
    %v1113 = vpack.c.bf16 %v1081, %v1081
    %v1114 = vpack.c.bf16 %v1082, %v1082
    %v1115 = vpack.c.bf16 %v1083, %v1083
    %v1116 = vpack.c.bf16 %v1084, %v1084
    %v1117 = vpack.c.bf16 %v1085, %v1085
    %v1126 = vunpack.c.l.b16 %v1086
    %v1127 = vunpack.c.l.b16 %v1087
    %v1128 = vunpack.c.l.b16 %v1088
    %v1129 = vunpack.c.l.b16 %v1089
    %v1130 = vunpack.c.l.b16 %v1090
    %v1131 = vunpack.c.l.b16 %v1091
    %v1132 = vunpack.c.l.b16 %v1092
    %v1133 = vunpack.c.l.b16 %v1093
    %v1134 = vpack.c.b16 %v1127, %v1126
    %v1135 = vpack.c.b16 %v1129, %v1128
    %v1136 = vpack.c.b16 %v1131, %v1130
    %v1137 = vpack.c.b16 %v1133, %v1132
    %v1166 = vunpack.c.l.b16 %v1094
    %v1167 = vunpack.c.l.b16 %v1095
    %v1168 = vunpack.c.l.b16 %v1096
    %v1169 = vunpack.c.l.b16 %v1097
    %v1170 = vunpack.c.l.b16 %v1098
    %v1171 = vunpack.c.l.b16 %v1099
    %v1172 = vunpack.c.l.b16 %v1100
    %v1173 = vunpack.c.l.b16 %v1101
    %v1174 = vunpack.c.l.b16 %v1102
    %v1175 = vunpack.c.l.b16 %v1103
    %v1176 = vunpack.c.l.b16 %v1104
    %v1177 = vunpack.c.l.b16 %v1105
    %v1178 = vunpack.c.l.b16 %v1106
    %v1179 = vunpack.c.l.b16 %v1107
    %v1180 = vunpack.c.l.b16 %v1108
    %v1181 = vunpack.c.l.b16 %v1109
    %v1182 = vunpack.c.l.b16 %v1110
    %v1183 = vunpack.c.l.b16 %v1111
    %v1184 = vunpack.c.l.b16 %v1112
    %v1185 = vunpack.c.l.b16 %v1113
    %v1186 = vunpack.c.l.b16 %v1114
    %v1187 = vunpack.c.l.b16 %v1115
    %v1188 = vunpack.c.l.b16 %v1116
    %v1189 = vunpack.c.l.b16 %v1117
    %v1190 = vpack.c.b16 %v1167, %v1166
    %v1191 = vpack.c.b16 %v1169, %v1168
    %v1192 = vpack.c.b16 %v1171, %v1170
    %v1193 = vpack.c.b16 %v1173, %v1172
    %v1194 = vpack.c.b16 %v1175, %v1174
    %v1195 = vpack.c.b16 %v1177, %v1176
    %v1196 = vpack.c.b16 %v1179, %v1178
    %v1197 = vpack.c.b16 %v1181, %v1180
    %v1198 = vpack.c.b16 %v1183, %v1182
    %v1199 = vpack.c.b16 %v1185, %v1184
    %v1200 = vpack.c.b16 %v1187, %v1186
    %v1201 = vpack.c.b16 %v1189, %v1188
    %1214 = vmatpush.bf16.xpose.msra.mxu0 %v1197
    %1215 = vmatpush.bf16.xpose.msra.mxu0 %v1196
    %1216 = vmatpush.bf16.xpose.msra.mxu0 %v1195
    %1217 = vmatpush.bf16.xpose.msra.mxu0 %v1194
    %1218 = vmatpush.bf16.xpose.msra.mxu0 %v1193
    %1219 = vmatpush.bf16.xpose.msra.mxu0 %v1192
    %1220 = vmatpush.bf16.xpose.msra.mxu0 %v1191
    %1221 = vmatpush.bf16.xpose.msra.mxu0 %v1190
    %1222 = vmatmul.bf16.gmra.mxu0 %v1134
    %v1223 = vpop.f32.mrf.mxu0
    %v1224 = vadd.f32 0.0, %v1223
    %v1225 = vpop.f32.mrf.mxu0
    %v1226 = vadd.f32 0.0, %v1225
    %1227 = vmatmul.bf16.gmra.mxu0 %v1135
    %v1228 = vpop.f32.mrf.mxu0
    %v1229 = vadd.f32 0.0, %v1228
    %v1230 = vpop.f32.mrf.mxu0
    %v1231 = vadd.f32 0.0, %v1230
    %1232 = vmatmul.bf16.gmra.mxu0 %v1136
    %v1233 = vpop.f32.mrf.mxu0
    %v1234 = vadd.f32 0.0, %v1233
    %v1235 = vpop.f32.mrf.mxu0
    %v1236 = vadd.f32 0.0, %v1235
    %1237 = vmatmul.bf16.gmra.mxu0 %v1137
    %v1238 = vpop.f32.mrf.mxu0
    %v1239 = vadd.f32 0.0, %v1238
    %v1240 = vpop.f32.mrf.mxu0
    %v1241 = vadd.f32 0.0, %v1240
    %1242 = vdwg.mxu0
    %1243 = vmatpush.bf16.xpose.msra.mxu0 0
    %1244 = vmatpush.bf16.xpose.msra.mxu0 0
    %1245 = vmatpush.bf16.xpose.msra.mxu0 0
    %1246 = vmatpush.bf16.xpose.msra.mxu0 0
    %1247 = vmatpush.bf16.xpose.msra.mxu0 %v1201
    %1248 = vmatpush.bf16.xpose.msra.mxu0 %v1200
    %1249 = vmatpush.bf16.xpose.msra.mxu0 %v1199
    %1250 = vmatpush.bf16.xpose.msra.mxu0 %v1198
    %1251 = vmatmul.bf16.gmra.mxu0 %v1134
    %v1252 = vpop.f32.mrf.mxu0
    %v1253 = vadd.f32 0.0, %v1252
    %v1254 = vpop.f32.mrf.mxu0
    %v1255 = vadd.f32 0.0, %v1254
    %1256 = vmatmul.bf16.gmra.mxu0 %v1135
    %v1257 = vpop.f32.mrf.mxu0
    %v1258 = vadd.f32 0.0, %v1257
    %v1259 = vpop.f32.mrf.mxu0
    %v1260 = vadd.f32 0.0, %v1259
    %1261 = vmatmul.bf16.gmra.mxu0 %v1136
    %v1262 = vpop.f32.mrf.mxu0
    %v1263 = vadd.f32 0.0, %v1262
    %v1264 = vpop.f32.mrf.mxu0
    %v1265 = vadd.f32 0.0, %v1264
    %1266 = vmatmul.bf16.gmra.mxu0 %v1137
    %v1267 = vpop.f32.mrf.mxu0
    %v1268 = vadd.f32 0.0, %v1267
    %v1269 = vpop.f32.mrf.mxu0
    %v1270 = vadd.f32 0.0, %v1269
    %1271 = vdwg.mxu0
    %v1272 = vmul.f32 %v1224, 1.25
    %v1273 = vmul.f32 %v1253, 1.25
    %v1274 = vmul.f32 %v1226, 1.25
    %v1275 = vmul.f32 %v1255, 1.25
    %v1276 = vmul.f32 %v1229, 1.25
    %v1277 = vmul.f32 %v1258, 1.25
    %v1278 = vmul.f32 %v1231, 1.25
    %v1279 = vmul.f32 %v1260, 1.25
    %v1280 = vmul.f32 %v1234, 1.25
    %v1281 = vmul.f32 %v1263, 1.25
    %v1282 = vmul.f32 %v1236, 1.25
    %v1283 = vmul.f32 %v1265, 1.25
    %v1284 = vmul.f32 %v1239, 1.25
    %v1285 = vmul.f32 %v1268, 1.25
    %v1286 = vmul.f32 %v1241, 1.25
    %v1287 = vmul.f32 %v1270, 1.25
    %v1288 = vmul.f32 %v1272, 1.442695
    %v1289 = vpow.pop %v1288
    %v1290 = vmul.f32 %v1273, 1.442695
    %v1291 = vpow.pop %v1290
    %v1292 = vmul.f32 %v1274, 1.442695
    %v1293 = vpow.pop %v1292
    %v1294 = vmul.f32 %v1275, 1.442695
    %v1295 = vpow.pop %v1294
    %v1296 = vmul.f32 %v1276, 1.442695
    %v1297 = vpow.pop %v1296
    %v1298 = vmul.f32 %v1277, 1.442695
    %v1299 = vpow.pop %v1298
    %v1300 = vmul.f32 %v1278, 1.442695
    %v1301 = vpow.pop %v1300
    %v1302 = vmul.f32 %v1279, 1.442695
    %v1303 = vpow.pop %v1302
    %v1304 = vmul.f32 %v1280, 1.442695
    %v1305 = vpow.pop %v1304
    %v1306 = vmul.f32 %v1281, 1.442695
    %v1307 = vpow.pop %v1306
    %v1308 = vmul.f32 %v1282, 1.442695
    %v1309 = vpow.pop %v1308
    %v1310 = vmul.f32 %v1283, 1.442695
    %v1311 = vpow.pop %v1310
    %v1312 = vmul.f32 %v1284, 1.442695
    %v1313 = vpow.pop %v1312
    %v1314 = vmul.f32 %v1285, 1.442695
    %v1315 = vpow.pop %v1314
    %v1316 = vmul.f32 %v1286, 1.442695
    %v1317 = vpow.pop %v1316
    %v1318 = vmul.f32 %v1287, 1.442695
    %v1319 = vpow.pop %v1318
    %v1320 = vld [vmem:[%s2] sm:$0xf]
    %v1321 = vld [vmem:[%s2 + $0x4] sm:$0xf]
    %v1322 = vld [vmem:[%s2 + $0x8] sm:$0xf]
    %v1323 = vld [vmem:[%s2 + $0xc] sm:$0xf]
    %v1324 = vld [vmem:[%s2 + $0x10] sm:$0xf]
    %v1325 = vld [vmem:[%s2 + $0x14] sm:$0xf]
    %v1326 = vld [vmem:[%s2 + $0x18] sm:$0xf]
    %v1327 = vld [vmem:[%s2 + $0x1c] sm:$0xf]
    %v1328 = vunpack.c.l.bf16 %v1320
    %v1329 = vunpack.c.l.bf16 %v1321
    %v1330 = vunpack.c.l.bf16 %v1322
    %v1331 = vunpack.c.l.bf16 %v1323
    %v1332 = vunpack.c.l.bf16 %v1324
    %v1333 = vunpack.c.l.bf16 %v1325
    %v1334 = vunpack.c.l.bf16 %v1326
    %v1335 = vunpack.c.l.bf16 %v1327
    %v1336 = vld [vmem:[%s3] sm:$0xf]
    %v1337 = vld [vmem:[%s3 + $0x4] sm:$0xf]
    %v1338 = vld [vmem:[%s3 + $0x8] sm:$0xf]
    %v1339 = vld [vmem:[%s3 + $0xc] sm:$0xf]
    %v1340 = vld [vmem:[%s3 + $0x10] sm:$0xf]
    %v1341 = vld [vmem:[%s3 + $0x14] sm:$0xf]
    %v1342 = vld [vmem:[%s3 + $0x18] sm:$0xf]
    %v1343 = vld [vmem:[%s3 + $0x1c] sm:$0xf]
    %v1344 = vunpack.c.l.bf16 %v1336
    %v1345 = vunpack.c.l.bf16 %v1337
    %v1346 = vunpack.c.l.bf16 %v1338
    %v1347 = vunpack.c.l.bf16 %v1339
    %v1348 = vunpack.c.l.bf16 %v1340
    %v1349 = vunpack.c.l.bf16 %v1341
    %v1350 = vunpack.c.l.bf16 %v1342
    %v1351 = vunpack.c.l.bf16 %v1343
    %v1352 = vmul.f32 %v1289, %v1328
    %v1353 = vmul.f32 %v1293, %v1329
    %v1354 = vmul.f32 %v1297, %v1330
    %v1355 = vmul.f32 %v1301, %v1331
    %v1356 = vmul.f32 %v1305, %v1332
    %v1357 = vmul.f32 %v1309, %v1333
    %v1358 = vmul.f32 %v1313, %v1334
    %v1359 = vmul.f32 %v1317, %v1335
    %vm1360 = vcmask 523264
    %v1361 = vsel %vm1360, %v1352, 0.0
    %1362 = vadd.xlane.f32.xlu0 %v1361
    %v1363 = vpop.xlane.xlu0 %1362
    %v1364 = vsel %vm1360, %v1353, 0.0
    %1365 = vadd.xlane.f32.xlu0 %v1364
    %v1366 = vpop.xlane.xlu0 %1365
    %v1367 = vsel %vm1360, %v1354, 0.0
    %1368 = vadd.xlane.f32.xlu0 %v1367
    %v1369 = vpop.xlane.xlu0 %1368
    %v1370 = vsel %vm1360, %v1355, 0.0
    %1371 = vadd.xlane.f32.xlu0 %v1370
    %v1372 = vpop.xlane.xlu0 %1371
    %v1373 = vsel %vm1360, %v1356, 0.0
    %1374 = vadd.xlane.f32.xlu0 %v1373
    %v1375 = vpop.xlane.xlu0 %1374
    %v1376 = vsel %vm1360, %v1357, 0.0
    %1377 = vadd.xlane.f32.xlu0 %v1376
    %v1378 = vpop.xlane.xlu0 %1377
    %v1379 = vsel %vm1360, %v1358, 0.0
    %1380 = vadd.xlane.f32.xlu0 %v1379
    %v1381 = vpop.xlane.xlu0 %1380
    %v1382 = vsel %vm1360, %v1359, 0.0
    %1383 = vadd.xlane.f32.xlu0 %v1382
    %v1384 = vpop.xlane.xlu0 %1383
    %v1385 = vsel %vm1360, %v1289, 0.0
    %1386 = vadd.xlane.f32.xlu0 %v1385
    %v1387 = vpop.xlane.xlu0 %1386
    %v1388 = vsel %vm1360, %v1293, 0.0
    %1389 = vadd.xlane.f32.xlu0 %v1388
    %v1390 = vpop.xlane.xlu0 %1389
    %v1391 = vsel %vm1360, %v1297, 0.0
    %1392 = vadd.xlane.f32.xlu0 %v1391
    %v1393 = vpop.xlane.xlu0 %1392
    %v1394 = vsel %vm1360, %v1301, 0.0
    %1395 = vadd.xlane.f32.xlu0 %v1394
    %v1396 = vpop.xlane.xlu0 %1395
    %v1397 = vsel %vm1360, %v1305, 0.0
    %1398 = vadd.xlane.f32.xlu0 %v1397
    %v1399 = vpop.xlane.xlu0 %1398
    %v1400 = vsel %vm1360, %v1309, 0.0
    %1401 = vadd.xlane.f32.xlu0 %v1400
    %v1402 = vpop.xlane.xlu0 %1401
    %v1403 = vsel %vm1360, %v1313, 0.0
    %1404 = vadd.xlane.f32.xlu0 %v1403
    %v1405 = vpop.xlane.xlu0 %1404
    %v1406 = vsel %vm1360, %v1317, 0.0
    %1407 = vadd.xlane.f32.xlu0 %v1406
    %v1408 = vpop.xlane.xlu0 %1407
    %v1409 = vmul.f32 %v1289, %v1344
    %v1410 = vmul.f32 %v1293, %v1345
    %v1411 = vmul.f32 %v1297, %v1346
    %v1412 = vmul.f32 %v1301, %v1347
    %v1413 = vmul.f32 %v1305, %v1348
    %v1414 = vmul.f32 %v1309, %v1349
    %v1415 = vmul.f32 %v1313, %v1350
    %v1416 = vmul.f32 %v1317, %v1351
    %v1417 = vsel %vm1360, %v1409, 0.0
    %v1418 = vsel %vm1360, %v1410, 0.0
    %v1419 = vadd.f32 %v1417, %v1418
    %v1420 = vsel %vm1360, %v1411, 0.0
    %v1421 = vadd.f32 %v1419, %v1420
    %v1422 = vsel %vm1360, %v1412, 0.0
    %v1423 = vadd.f32 %v1421, %v1422
    %v1424 = vsel %vm1360, %v1413, 0.0
    %v1425 = vadd.f32 %v1423, %v1424
    %v1426 = vsel %vm1360, %v1414, 0.0
    %v1427 = vadd.f32 %v1425, %v1426
    %v1428 = vsel %vm1360, %v1415, 0.0
    %v1429 = vadd.f32 %v1427, %v1428
    %v1430 = vsel %vm1360, %v1416, 0.0
    %v1431 = vadd.f32 %v1429, %v1430
    %v1432 = vrot.slane %v1431, 4
    %v1433 = vadd.f32 %v1431, %v1432
    %v1434 = vrot.slane %v1433, 2
    %v1435 = vadd.f32 %v1433, %v1434
    %v1436 = vrot.slane %v1435, 1
    %v1437 = vadd.f32 %v1435, %v1436
    %v1438 = vadd.f32 %v1385, %v1388
    %v1439 = vadd.f32 %v1438, %v1391
    %v1440 = vadd.f32 %v1439, %v1394
    %v1441 = vadd.f32 %v1440, %v1397
    %v1442 = vadd.f32 %v1441, %v1400
    %v1443 = vadd.f32 %v1442, %v1403
    %v1444 = vadd.f32 %v1443, %v1406
    %v1445 = vrot.slane %v1444, 4
    %v1446 = vadd.f32 %v1444, %v1445
    %v1447 = vrot.slane %v1446, 2
    %v1448 = vadd.f32 %v1446, %v1447
    %v1449 = vrot.slane %v1448, 1
    %v1450 = vadd.f32 %v1448, %v1449
    %v1451 = vadd.f32 %v1387, 1e-08
    %v1452 = vadd.f32 %v1390, 1e-08
    %v1453 = vadd.f32 %v1393, 1e-08
    %v1454 = vadd.f32 %v1396, 1e-08
    %v1455 = vadd.f32 %v1399, 1e-08
    %v1456 = vadd.f32 %v1402, 1e-08
    %v1457 = vadd.f32 %v1405, 1e-08
    %v1458 = vadd.f32 %v1408, 1e-08
    %v1459 = vrcp.pop %v1451
    %v1460 = vmul.f32 %v1451, %v1459
    %v1461 = vsub.f32 1.0, %v1460
    %v1462 = vmul.f32 %v1459, %v1461
    %v1463 = vadd.f32 %v1459, %v1462
    %vm1464 = vweird.f32 %v1451
    %vm1465 = vweird.f32 %v1459
    %vm1466 = vmor %vm1464, %vm1465
    %v1467 = vsel %vm1466, %v1459, %v1463
    %v1468 = vand.u32 2147483647, %v1451
    %vm1469 = vcmp.eq.f32.partialorder %v1468, 8.507059e+37
    %v1470 = vand.u32 %v1451, 2147483648
    %v1471 = vor.u32 1.1754944e-38, %v1470
    %v1472 = vsel %vm1469, %v1471, %v1467
    %v1473 = vmul.f32 %v1363, %v1472
    %v1474 = vrcp.pop %v1452
    %v1475 = vmul.f32 %v1452, %v1474
    %v1476 = vsub.f32 1.0, %v1475
    %v1477 = vmul.f32 %v1474, %v1476
    %v1478 = vadd.f32 %v1474, %v1477
    %vm1479 = vweird.f32 %v1452
    %vm1480 = vweird.f32 %v1474
    %vm1481 = vmor %vm1479, %vm1480
    %v1482 = vsel %vm1481, %v1474, %v1478
    %v1483 = vand.u32 2147483647, %v1452
    %vm1484 = vcmp.eq.f32.partialorder %v1483, 8.507059e+37
    %v1485 = vand.u32 %v1452, 2147483648
    %v1486 = vor.u32 1.1754944e-38, %v1485
    %v1487 = vsel %vm1484, %v1486, %v1482
    %v1488 = vmul.f32 %v1366, %v1487
    %v1489 = vrcp.pop %v1453
    %v1490 = vmul.f32 %v1453, %v1489
    %v1491 = vsub.f32 1.0, %v1490
    %v1492 = vmul.f32 %v1489, %v1491
    %v1493 = vadd.f32 %v1489, %v1492
    %vm1494 = vweird.f32 %v1453
    %vm1495 = vweird.f32 %v1489
    %vm1496 = vmor %vm1494, %vm1495
    %v1497 = vsel %vm1496, %v1489, %v1493
    %v1498 = vand.u32 2147483647, %v1453
    %vm1499 = vcmp.eq.f32.partialorder %v1498, 8.507059e+37
    %v1500 = vand.u32 %v1453, 2147483648
    %v1501 = vor.u32 1.1754944e-38, %v1500
    %v1502 = vsel %vm1499, %v1501, %v1497
    %v1503 = vmul.f32 %v1369, %v1502
    %v1504 = vrcp.pop %v1454
    %v1505 = vmul.f32 %v1454, %v1504
    %v1506 = vsub.f32 1.0, %v1505
    %v1507 = vmul.f32 %v1504, %v1506
    %v1508 = vadd.f32 %v1504, %v1507
    %vm1509 = vweird.f32 %v1454
    %vm1510 = vweird.f32 %v1504
    %vm1511 = vmor %vm1509, %vm1510
    %v1512 = vsel %vm1511, %v1504, %v1508
    %v1513 = vand.u32 2147483647, %v1454
    %vm1514 = vcmp.eq.f32.partialorder %v1513, 8.507059e+37
    %v1515 = vand.u32 %v1454, 2147483648
    %v1516 = vor.u32 1.1754944e-38, %v1515
    %v1517 = vsel %vm1514, %v1516, %v1512
    %v1518 = vmul.f32 %v1372, %v1517
    %v1519 = vrcp.pop %v1455
    %v1520 = vmul.f32 %v1455, %v1519
    %v1521 = vsub.f32 1.0, %v1520
    %v1522 = vmul.f32 %v1519, %v1521
    %v1523 = vadd.f32 %v1519, %v1522
    %vm1524 = vweird.f32 %v1455
    %vm1525 = vweird.f32 %v1519
    %vm1526 = vmor %vm1524, %vm1525
    %v1527 = vsel %vm1526, %v1519, %v1523
    %v1528 = vand.u32 2147483647, %v1455
    %vm1529 = vcmp.eq.f32.partialorder %v1528, 8.507059e+37
    %v1530 = vand.u32 %v1455, 2147483648
    %v1531 = vor.u32 1.1754944e-38, %v1530
    %v1532 = vsel %vm1529, %v1531, %v1527
    %v1533 = vmul.f32 %v1375, %v1532
    %v1534 = vrcp.pop %v1456
    %v1535 = vmul.f32 %v1456, %v1534
    %v1536 = vsub.f32 1.0, %v1535
    %v1537 = vmul.f32 %v1534, %v1536
    %v1538 = vadd.f32 %v1534, %v1537
    %vm1539 = vweird.f32 %v1456
    %vm1540 = vweird.f32 %v1534
    %vm1541 = vmor %vm1539, %vm1540
    %v1542 = vsel %vm1541, %v1534, %v1538
    %v1543 = vand.u32 2147483647, %v1456
    %vm1544 = vcmp.eq.f32.partialorder %v1543, 8.507059e+37
    %v1545 = vand.u32 %v1456, 2147483648
    %v1546 = vor.u32 1.1754944e-38, %v1545
    %v1547 = vsel %vm1544, %v1546, %v1542
    %v1548 = vmul.f32 %v1378, %v1547
    %v1549 = vrcp.pop %v1457
    %v1550 = vmul.f32 %v1457, %v1549
    %v1551 = vsub.f32 1.0, %v1550
    %v1552 = vmul.f32 %v1549, %v1551
    %v1553 = vadd.f32 %v1549, %v1552
    %vm1554 = vweird.f32 %v1457
    %vm1555 = vweird.f32 %v1549
    %vm1556 = vmor %vm1554, %vm1555
    %v1557 = vsel %vm1556, %v1549, %v1553
    %v1558 = vand.u32 2147483647, %v1457
    %vm1559 = vcmp.eq.f32.partialorder %v1558, 8.507059e+37
    %v1560 = vand.u32 %v1457, 2147483648
    %v1561 = vor.u32 1.1754944e-38, %v1560
    %v1562 = vsel %vm1559, %v1561, %v1557
    %v1563 = vmul.f32 %v1381, %v1562
    %v1564 = vrcp.pop %v1458
    %v1565 = vmul.f32 %v1458, %v1564
    %v1566 = vsub.f32 1.0, %v1565
    %v1567 = vmul.f32 %v1564, %v1566
    %v1568 = vadd.f32 %v1564, %v1567
    %vm1569 = vweird.f32 %v1458
    %vm1570 = vweird.f32 %v1564
    %vm1571 = vmor %vm1569, %vm1570
    %v1572 = vsel %vm1571, %v1564, %v1568
    %v1573 = vand.u32 2147483647, %v1458
    %vm1574 = vcmp.eq.f32.partialorder %v1573, 8.507059e+37
    %v1575 = vand.u32 %v1458, 2147483648
    %v1576 = vor.u32 1.1754944e-38, %v1575
    %v1577 = vsel %vm1574, %v1576, %v1572
    %v1578 = vmul.f32 %v1384, %v1577
    %v1579 = vlog2.pop %v1473
    %v1580 = vmul.f32 %v1579, 0.6931472
    %v1581 = vlog2.pop %v1488
    %v1582 = vmul.f32 %v1581, 0.6931472
    %v1583 = vlog2.pop %v1503
    %v1584 = vmul.f32 %v1583, 0.6931472
    %v1585 = vlog2.pop %v1518
    %v1586 = vmul.f32 %v1585, 0.6931472
    %v1587 = vlog2.pop %v1533
    %v1588 = vmul.f32 %v1587, 0.6931472
    %v1589 = vlog2.pop %v1548
    %v1590 = vmul.f32 %v1589, 0.6931472
    %v1591 = vlog2.pop %v1563
    %v1592 = vmul.f32 %v1591, 0.6931472
    %v1593 = vlog2.pop %v1578
    %v1594 = vmul.f32 %v1593, 0.6931472
    %v1595 = vadd.f32 %v1580, %v1582
    %v1596 = vadd.f32 %v1595, %v1584
    %v1597 = vadd.f32 %v1596, %v1586
    %v1598 = vadd.f32 %v1597, %v1588
    %v1599 = vadd.f32 %v1598, %v1590
    %v1600 = vadd.f32 %v1599, %v1592
    %v1601 = vadd.f32 %v1600, %v1594
    %v1602 = vrot.slane %v1601, 4
    %v1603 = vadd.f32 %v1601, %v1602
    %v1604 = vrot.slane %v1603, 2
    %v1605 = vadd.f32 %v1603, %v1604
    %v1606 = vrot.slane %v1605, 1
    %v1607 = vadd.f32 %v1605, %v1606
    %v1608 = vsub.f32 0.0, %v1607
    %v1609 = vmul.f32 %v1608, 0.015625
    %v1610 = vadd.f32 %v1450, 1e-08
    %v1611 = vrcp.pop %v1610
    %v1612 = vmul.f32 %v1610, %v1611
    %v1613 = vsub.f32 1.0, %v1612
    %v1614 = vmul.f32 %v1611, %v1613
    %v1615 = vadd.f32 %v1611, %v1614
    %vm1616 = vweird.f32 %v1610
    %vm1617 = vweird.f32 %v1611
    %vm1618 = vmor %vm1616, %vm1617
    %v1619 = vsel %vm1618, %v1611, %v1615
    %v1620 = vand.u32 2147483647, %v1610
    %vm1621 = vcmp.eq.f32.partialorder %v1620, 8.507059e+37
    %v1622 = vand.u32 %v1610, 2147483648
    %v1623 = vor.u32 1.1754944e-38, %v1622
    %v1624 = vsel %vm1621, %v1623, %v1619
    %v1625 = vmul.f32 %v1437, %v1624
    %v1626 = vlog2.pop %v1625
    %v1627 = vmul.f32 %v1626, 0.6931472
    %v1628 = vsel %vm1360, %v1627, 0.0
    %1629 = vadd.xlane.f32.xlu0 %v1628
    %v1630 = vpop.xlane.xlu0 %1629
    %v1631 = vsub.f32 0.0, %v1630
    %v1632 = vmul.f32 %v1631, 0.015625
    %v1633 = vmul.f32 %v1609, 0.5
    %v1634 = vmul.f32 %v1632, 0.5
    %v1635 = vadd.f32 %v1633, %v1634
    %v1636 = vmul.f32 %v1635, 0.5
    %v1637 = vadd.f32 %v1636, 0.0
    %1646 = vrot.lane.b32.xlu0 %v1328, 64
    %v1647 = vpop.permute.xlu0 %1646
    %1648 = vrot.lane.b32.xlu0 %v1329, 64
    %v1649 = vpop.permute.xlu0 %1648
    %1650 = vrot.lane.b32.xlu0 %v1330, 64
    %v1651 = vpop.permute.xlu0 %1650
    %1652 = vrot.lane.b32.xlu0 %v1331, 64
    %v1653 = vpop.permute.xlu0 %1652
    %1654 = vrot.lane.b32.xlu0 %v1332, 64
    %v1655 = vpop.permute.xlu0 %1654
    %1656 = vrot.lane.b32.xlu0 %v1333, 64
    %v1657 = vpop.permute.xlu0 %1656
    %1658 = vrot.lane.b32.xlu0 %v1334, 64
    %v1659 = vpop.permute.xlu0 %1658
    %1660 = vrot.lane.b32.xlu0 %v1335, 64
    %v1661 = vpop.permute.xlu0 %1660
    %v1670 = vmul.f32 %v1289, %v1647
    %v1671 = vmul.f32 %v1293, %v1649
    %v1672 = vmul.f32 %v1297, %v1651
    %v1673 = vmul.f32 %v1301, %v1653
    %v1674 = vmul.f32 %v1305, %v1655
    %v1675 = vmul.f32 %v1309, %v1657
    %v1676 = vmul.f32 %v1313, %v1659
    %v1677 = vmul.f32 %v1317, %v1661
    %1686 = vrot.lane.b32.xlu0 %v1670, 64
    %v1687 = vpop.permute.xlu0 %1686
    %1688 = vrot.lane.b32.xlu0 %v1671, 64
    %v1689 = vpop.permute.xlu0 %1688
    %1690 = vrot.lane.b32.xlu0 %v1672, 64
    %v1691 = vpop.permute.xlu0 %1690
    %1692 = vrot.lane.b32.xlu0 %v1673, 64
    %v1693 = vpop.permute.xlu0 %1692
    %1694 = vrot.lane.b32.xlu0 %v1674, 64
    %v1695 = vpop.permute.xlu0 %1694
    %1696 = vrot.lane.b32.xlu0 %v1675, 64
    %v1697 = vpop.permute.xlu0 %1696
    %1698 = vrot.lane.b32.xlu0 %v1676, 64
    %v1699 = vpop.permute.xlu0 %1698
    %1700 = vrot.lane.b32.xlu0 %v1677, 64
    %v1701 = vpop.permute.xlu0 %1700
    %v1710 = vsel %vm1360, %v1687, 0.0
    %1711 = vadd.xlane.f32.xlu0 %v1710
    %v1712 = vpop.xlane.xlu0 %1711
    %v1713 = vsel %vm1360, %v1689, 0.0
    %1714 = vadd.xlane.f32.xlu0 %v1713
    %v1715 = vpop.xlane.xlu0 %1714
    %v1716 = vsel %vm1360, %v1691, 0.0
    %1717 = vadd.xlane.f32.xlu0 %v1716
    %v1718 = vpop.xlane.xlu0 %1717
    %v1719 = vsel %vm1360, %v1693, 0.0
    %1720 = vadd.xlane.f32.xlu0 %v1719
    %v1721 = vpop.xlane.xlu0 %1720
    %v1722 = vsel %vm1360, %v1695, 0.0
    %1723 = vadd.xlane.f32.xlu0 %v1722
    %v1724 = vpop.xlane.xlu0 %1723
    %v1725 = vsel %vm1360, %v1697, 0.0
    %1726 = vadd.xlane.f32.xlu0 %v1725
    %v1727 = vpop.xlane.xlu0 %1726
    %v1728 = vsel %vm1360, %v1699, 0.0
    %1729 = vadd.xlane.f32.xlu0 %v1728
    %v1730 = vpop.xlane.xlu0 %1729
    %v1731 = vsel %vm1360, %v1701, 0.0
    %1732 = vadd.xlane.f32.xlu0 %v1731
    %v1733 = vpop.xlane.xlu0 %1732
    %1742 = vrot.lane.b32.xlu0 %v1289, 64
    %v1743 = vpop.permute.xlu0 %1742
    %1744 = vrot.lane.b32.xlu0 %v1293, 64
    %v1745 = vpop.permute.xlu0 %1744
    %1746 = vrot.lane.b32.xlu0 %v1297, 64
    %v1747 = vpop.permute.xlu0 %1746
    %1748 = vrot.lane.b32.xlu0 %v1301, 64
    %v1749 = vpop.permute.xlu0 %1748
    %1750 = vrot.lane.b32.xlu0 %v1305, 64
    %v1751 = vpop.permute.xlu0 %1750
    %1752 = vrot.lane.b32.xlu0 %v1309, 64
    %v1753 = vpop.permute.xlu0 %1752
    %1754 = vrot.lane.b32.xlu0 %v1313, 64
    %v1755 = vpop.permute.xlu0 %1754
    %1756 = vrot.lane.b32.xlu0 %v1317, 64
    %v1757 = vpop.permute.xlu0 %1756
    %v1766 = vsel %vm1360, %v1743, 0.0
    %1767 = vadd.xlane.f32.xlu0 %v1766
    %v1768 = vpop.xlane.xlu0 %1767
    %v1769 = vsel %vm1360, %v1745, 0.0
    %1770 = vadd.xlane.f32.xlu0 %v1769
    %v1771 = vpop.xlane.xlu0 %1770
    %v1772 = vsel %vm1360, %v1747, 0.0
    %1773 = vadd.xlane.f32.xlu0 %v1772
    %v1774 = vpop.xlane.xlu0 %1773
    %v1775 = vsel %vm1360, %v1749, 0.0
    %1776 = vadd.xlane.f32.xlu0 %v1775
    %v1777 = vpop.xlane.xlu0 %1776
    %v1778 = vsel %vm1360, %v1751, 0.0
    %1779 = vadd.xlane.f32.xlu0 %v1778
    %v1780 = vpop.xlane.xlu0 %1779
    %v1781 = vsel %vm1360, %v1753, 0.0
    %1782 = vadd.xlane.f32.xlu0 %v1781
    %v1783 = vpop.xlane.xlu0 %1782
    %v1784 = vsel %vm1360, %v1755, 0.0
    %1785 = vadd.xlane.f32.xlu0 %v1784
    %v1786 = vpop.xlane.xlu0 %1785
    %v1787 = vsel %vm1360, %v1757, 0.0
    %1788 = vadd.xlane.f32.xlu0 %v1787
    %v1789 = vpop.xlane.xlu0 %1788
    %1798 = vrot.lane.b32.xlu0 %v1344, 64
    %v1799 = vpop.permute.xlu0 %1798
    %1800 = vrot.lane.b32.xlu0 %v1345, 64
    %v1801 = vpop.permute.xlu0 %1800
    %1802 = vrot.lane.b32.xlu0 %v1346, 64
    %v1803 = vpop.permute.xlu0 %1802
    %1804 = vrot.lane.b32.xlu0 %v1347, 64
    %v1805 = vpop.permute.xlu0 %1804
    %1806 = vrot.lane.b32.xlu0 %v1348, 64
    %v1807 = vpop.permute.xlu0 %1806
    %1808 = vrot.lane.b32.xlu0 %v1349, 64
    %v1809 = vpop.permute.xlu0 %1808
    %1810 = vrot.lane.b32.xlu0 %v1350, 64
    %v1811 = vpop.permute.xlu0 %1810
    %1812 = vrot.lane.b32.xlu0 %v1351, 64
    %v1813 = vpop.permute.xlu0 %1812
    %v1822 = vmul.f32 %v1289, %v1799
    %v1823 = vmul.f32 %v1293, %v1801
    %v1824 = vmul.f32 %v1297, %v1803
    %v1825 = vmul.f32 %v1301, %v1805
    %v1826 = vmul.f32 %v1305, %v1807
    %v1827 = vmul.f32 %v1309, %v1809
    %v1828 = vmul.f32 %v1313, %v1811
    %v1829 = vmul.f32 %v1317, %v1813
    %vm1830 = vcmask 1048064
    %v1831 = vsel %vm1830, %v1822, 0.0
    %v1832 = vsel %vm1830, %v1823, 0.0
    %v1833 = vadd.f32 %v1831, %v1832
    %v1834 = vsel %vm1830, %v1824, 0.0
    %v1835 = vadd.f32 %v1833, %v1834
    %v1836 = vsel %vm1830, %v1825, 0.0
    %v1837 = vadd.f32 %v1835, %v1836
    %v1838 = vsel %vm1830, %v1826, 0.0
    %v1839 = vadd.f32 %v1837, %v1838
    %v1840 = vsel %vm1830, %v1827, 0.0
    %v1841 = vadd.f32 %v1839, %v1840
    %v1842 = vsel %vm1830, %v1828, 0.0
    %v1843 = vadd.f32 %v1841, %v1842
    %v1844 = vsel %vm1830, %v1829, 0.0
    %v1845 = vadd.f32 %v1843, %v1844
    %v1846 = vrot.slane %v1845, 4
    %v1847 = vadd.f32 %v1845, %v1846
    %v1848 = vrot.slane %v1847, 2
    %v1849 = vadd.f32 %v1847, %v1848
    %v1850 = vrot.slane %v1849, 1
    %v1851 = vadd.f32 %v1849, %v1850
    %v1852 = vsel %vm1830, %v1289, 0.0
    %v1853 = vsel %vm1830, %v1293, 0.0
    %v1854 = vadd.f32 %v1852, %v1853
    %v1855 = vsel %vm1830, %v1297, 0.0
    %v1856 = vadd.f32 %v1854, %v1855
    %v1857 = vsel %vm1830, %v1301, 0.0
    %v1858 = vadd.f32 %v1856, %v1857
    %v1859 = vsel %vm1830, %v1305, 0.0
    %v1860 = vadd.f32 %v1858, %v1859
    %v1861 = vsel %vm1830, %v1309, 0.0
    %v1862 = vadd.f32 %v1860, %v1861
    %v1863 = vsel %vm1830, %v1313, 0.0
    %v1864 = vadd.f32 %v1862, %v1863
    %v1865 = vsel %vm1830, %v1317, 0.0
    %v1866 = vadd.f32 %v1864, %v1865
    %v1867 = vrot.slane %v1866, 4
    %v1868 = vadd.f32 %v1866, %v1867
    %v1869 = vrot.slane %v1868, 2
    %v1870 = vadd.f32 %v1868, %v1869
    %v1871 = vrot.slane %v1870, 1
    %v1872 = vadd.f32 %v1870, %v1871
    %v1873 = vadd.f32 %v1768, 1e-08
    %v1874 = vadd.f32 %v1771, 1e-08
    %v1875 = vadd.f32 %v1774, 1e-08
    %v1876 = vadd.f32 %v1777, 1e-08
    %v1877 = vadd.f32 %v1780, 1e-08
    %v1878 = vadd.f32 %v1783, 1e-08
    %v1879 = vadd.f32 %v1786, 1e-08
    %v1880 = vadd.f32 %v1789, 1e-08
    %v1881 = vrcp.pop %v1873
    %v1882 = vmul.f32 %v1873, %v1881
    %v1883 = vsub.f32 1.0, %v1882
    %v1884 = vmul.f32 %v1881, %v1883
    %v1885 = vadd.f32 %v1881, %v1884
    %vm1886 = vweird.f32 %v1873
    %vm1887 = vweird.f32 %v1881
    %vm1888 = vmor %vm1886, %vm1887
    %v1889 = vsel %vm1888, %v1881, %v1885
    %v1890 = vand.u32 2147483647, %v1873
    %vm1891 = vcmp.eq.f32.partialorder %v1890, 8.507059e+37
    %v1892 = vand.u32 %v1873, 2147483648
    %v1893 = vor.u32 1.1754944e-38, %v1892
    %v1894 = vsel %vm1891, %v1893, %v1889
    %v1895 = vmul.f32 %v1712, %v1894
    %v1896 = vrcp.pop %v1874
    %v1897 = vmul.f32 %v1874, %v1896
    %v1898 = vsub.f32 1.0, %v1897
    %v1899 = vmul.f32 %v1896, %v1898
    %v1900 = vadd.f32 %v1896, %v1899
    %vm1901 = vweird.f32 %v1874
    %vm1902 = vweird.f32 %v1896
    %vm1903 = vmor %vm1901, %vm1902
    %v1904 = vsel %vm1903, %v1896, %v1900
    %v1905 = vand.u32 2147483647, %v1874
    %vm1906 = vcmp.eq.f32.partialorder %v1905, 8.507059e+37
    %v1907 = vand.u32 %v1874, 2147483648
    %v1908 = vor.u32 1.1754944e-38, %v1907
    %v1909 = vsel %vm1906, %v1908, %v1904
    %v1910 = vmul.f32 %v1715, %v1909
    %v1911 = vrcp.pop %v1875
    %v1912 = vmul.f32 %v1875, %v1911
    %v1913 = vsub.f32 1.0, %v1912
    %v1914 = vmul.f32 %v1911, %v1913
    %v1915 = vadd.f32 %v1911, %v1914
    %vm1916 = vweird.f32 %v1875
    %vm1917 = vweird.f32 %v1911
    %vm1918 = vmor %vm1916, %vm1917
    %v1919 = vsel %vm1918, %v1911, %v1915
    %v1920 = vand.u32 2147483647, %v1875
    %vm1921 = vcmp.eq.f32.partialorder %v1920, 8.507059e+37
    %v1922 = vand.u32 %v1875, 2147483648
    %v1923 = vor.u32 1.1754944e-38, %v1922
    %v1924 = vsel %vm1921, %v1923, %v1919
    %v1925 = vmul.f32 %v1718, %v1924
    %v1926 = vrcp.pop %v1876
    %v1927 = vmul.f32 %v1876, %v1926
    %v1928 = vsub.f32 1.0, %v1927
    %v1929 = vmul.f32 %v1926, %v1928
    %v1930 = vadd.f32 %v1926, %v1929
    %vm1931 = vweird.f32 %v1876
    %vm1932 = vweird.f32 %v1926
    %vm1933 = vmor %vm1931, %vm1932
    %v1934 = vsel %vm1933, %v1926, %v1930
    %v1935 = vand.u32 2147483647, %v1876
    %vm1936 = vcmp.eq.f32.partialorder %v1935, 8.507059e+37
    %v1937 = vand.u32 %v1876, 2147483648
    %v1938 = vor.u32 1.1754944e-38, %v1937
    %v1939 = vsel %vm1936, %v1938, %v1934
    %v1940 = vmul.f32 %v1721, %v1939
    %v1941 = vrcp.pop %v1877
    %v1942 = vmul.f32 %v1877, %v1941
    %v1943 = vsub.f32 1.0, %v1942
    %v1944 = vmul.f32 %v1941, %v1943
    %v1945 = vadd.f32 %v1941, %v1944
    %vm1946 = vweird.f32 %v1877
    %vm1947 = vweird.f32 %v1941
    %vm1948 = vmor %vm1946, %vm1947
    %v1949 = vsel %vm1948, %v1941, %v1945
    %v1950 = vand.u32 2147483647, %v1877
    %vm1951 = vcmp.eq.f32.partialorder %v1950, 8.507059e+37
    %v1952 = vand.u32 %v1877, 2147483648
    %v1953 = vor.u32 1.1754944e-38, %v1952
    %v1954 = vsel %vm1951, %v1953, %v1949
    %v1955 = vmul.f32 %v1724, %v1954
    %v1956 = vrcp.pop %v1878
    %v1957 = vmul.f32 %v1878, %v1956
    %v1958 = vsub.f32 1.0, %v1957
    %v1959 = vmul.f32 %v1956, %v1958
    %v1960 = vadd.f32 %v1956, %v1959
    %vm1961 = vweird.f32 %v1878
    %vm1962 = vweird.f32 %v1956
    %vm1963 = vmor %vm1961, %vm1962
    %v1964 = vsel %vm1963, %v1956, %v1960
    %v1965 = vand.u32 2147483647, %v1878
    %vm1966 = vcmp.eq.f32.partialorder %v1965, 8.507059e+37
    %v1967 = vand.u32 %v1878, 2147483648
    %v1968 = vor.u32 1.1754944e-38, %v1967
    %v1969 = vsel %vm1966, %v1968, %v1964
    %v1970 = vmul.f32 %v1727, %v1969
    %v1971 = vrcp.pop %v1879
    %v1972 = vmul.f32 %v1879, %v1971
    %v1973 = vsub.f32 1.0, %v1972
    %v1974 = vmul.f32 %v1971, %v1973
    %v1975 = vadd.f32 %v1971, %v1974
    %vm1976 = vweird.f32 %v1879
    %vm1977 = vweird.f32 %v1971
    %vm1978 = vmor %vm1976, %vm1977
    %v1979 = vsel %vm1978, %v1971, %v1975
    %v1980 = vand.u32 2147483647, %v1879
    %vm1981 = vcmp.eq.f32.partialorder %v1980, 8.507059e+37
    %v1982 = vand.u32 %v1879, 2147483648
    %v1983 = vor.u32 1.1754944e-38, %v1982
    %v1984 = vsel %vm1981, %v1983, %v1979
    %v1985 = vmul.f32 %v1730, %v1984
    %v1986 = vrcp.pop %v1880
    %v1987 = vmul.f32 %v1880, %v1986
    %v1988 = vsub.f32 1.0, %v1987
    %v1989 = vmul.f32 %v1986, %v1988
    %v1990 = vadd.f32 %v1986, %v1989
    %vm1991 = vweird.f32 %v1880
    %vm1992 = vweird.f32 %v1986
    %vm1993 = vmor %vm1991, %vm1992
    %v1994 = vsel %vm1993, %v1986, %v1990
    %v1995 = vand.u32 2147483647, %v1880
    %vm1996 = vcmp.eq.f32.partialorder %v1995, 8.507059e+37
    %v1997 = vand.u32 %v1880, 2147483648
    %v1998 = vor.u32 1.1754944e-38, %v1997
    %v1999 = vsel %vm1996, %v1998, %v1994
    %v2000 = vmul.f32 %v1733, %v1999
    %v2001 = vlog2.pop %v1895
    %v2002 = vmul.f32 %v2001, 0.6931472
    %v2003 = vlog2.pop %v1910
    %v2004 = vmul.f32 %v2003, 0.6931472
    %v2005 = vlog2.pop %v1925
    %v2006 = vmul.f32 %v2005, 0.6931472
    %v2007 = vlog2.pop %v1940
    %v2008 = vmul.f32 %v2007, 0.6931472
    %v2009 = vlog2.pop %v1955
    %v2010 = vmul.f32 %v2009, 0.6931472
    %v2011 = vlog2.pop %v1970
    %v2012 = vmul.f32 %v2011, 0.6931472
    %v2013 = vlog2.pop %v1985
    %v2014 = vmul.f32 %v2013, 0.6931472
    %v2015 = vlog2.pop %v2000
    %v2016 = vmul.f32 %v2015, 0.6931472
    %v2017 = vadd.f32 %v2002, %v2004
    %v2018 = vadd.f32 %v2017, %v2006
    %v2019 = vadd.f32 %v2018, %v2008
    %v2020 = vadd.f32 %v2019, %v2010
    %v2021 = vadd.f32 %v2020, %v2012
    %v2022 = vadd.f32 %v2021, %v2014
    %v2023 = vadd.f32 %v2022, %v2016
    %v2024 = vrot.slane %v2023, 4
    %v2025 = vadd.f32 %v2023, %v2024
    %v2026 = vrot.slane %v2025, 2
    %v2027 = vadd.f32 %v2025, %v2026
    %v2028 = vrot.slane %v2027, 1
    %v2029 = vadd.f32 %v2027, %v2028
    %v2030 = vsub.f32 0.0, %v2029
    %v2031 = vmul.f32 %v2030, 0.015625
    %v2032 = vadd.f32 %v1872, 1e-08
    %v2033 = vrcp.pop %v2032
    %v2034 = vmul.f32 %v2032, %v2033
    %v2035 = vsub.f32 1.0, %v2034
    %v2036 = vmul.f32 %v2033, %v2035
    %v2037 = vadd.f32 %v2033, %v2036
    %vm2038 = vweird.f32 %v2032
    %vm2039 = vweird.f32 %v2033
    %vm2040 = vmor %vm2038, %vm2039
    %v2041 = vsel %vm2040, %v2033, %v2037
    %v2042 = vand.u32 2147483647, %v2032
    %vm2043 = vcmp.eq.f32.partialorder %v2042, 8.507059e+37
    %v2044 = vand.u32 %v2032, 2147483648
    %v2045 = vor.u32 1.1754944e-38, %v2044
    %v2046 = vsel %vm2043, %v2045, %v2041
    %v2047 = vmul.f32 %v1851, %v2046
    %v2048 = vlog2.pop %v2047
    %v2049 = vmul.f32 %v2048, 0.6931472
    %2051 = vrot.lane.b32.xlu0 %v2049, 64
    %v2052 = vpop.permute.xlu0 %2051
    %v2054 = vsel %vm1360, %v2052, 0.0
    %2055 = vadd.xlane.f32.xlu0 %v2054
    %v2056 = vpop.xlane.xlu0 %2055
    %v2057 = vsub.f32 0.0, %v2056
    %v2058 = vmul.f32 %v2057, 0.015625
    %v2059 = vmul.f32 %v2031, 0.5
    %v2060 = vmul.f32 %v2058, 0.5
    %v2061 = vadd.f32 %v2059, %v2060
    %v2062 = vmul.f32 %v2061, 0.5
    %v2063 = vadd.f32 %v1637, %v2062
    %v2064 = vmul.f32 %v1291, %v1328
    %v2065 = vmul.f32 %v1295, %v1329
    %v2066 = vmul.f32 %v1299, %v1330
    %v2067 = vmul.f32 %v1303, %v1331
    %v2068 = vmul.f32 %v1307, %v1332
    %v2069 = vmul.f32 %v1311, %v1333
    %v2070 = vmul.f32 %v1315, %v1334
    %v2071 = vmul.f32 %v1319, %v1335
    %v2072 = vsel %vm1360, %v2064, 0.0
    %2073 = vadd.xlane.f32.xlu0 %v2072
    %v2074 = vpop.xlane.xlu0 %2073
    %v2075 = vsel %vm1360, %v2065, 0.0
    %2076 = vadd.xlane.f32.xlu0 %v2075
    %v2077 = vpop.xlane.xlu0 %2076
    %v2078 = vsel %vm1360, %v2066, 0.0
    %2079 = vadd.xlane.f32.xlu0 %v2078
    %v2080 = vpop.xlane.xlu0 %2079
    %v2081 = vsel %vm1360, %v2067, 0.0
    %2082 = vadd.xlane.f32.xlu0 %v2081
    %v2083 = vpop.xlane.xlu0 %2082
    %v2084 = vsel %vm1360, %v2068, 0.0
    %2085 = vadd.xlane.f32.xlu0 %v2084
    %v2086 = vpop.xlane.xlu0 %2085
    %v2087 = vsel %vm1360, %v2069, 0.0
    %2088 = vadd.xlane.f32.xlu0 %v2087
    %v2089 = vpop.xlane.xlu0 %2088
    %v2090 = vsel %vm1360, %v2070, 0.0
    %2091 = vadd.xlane.f32.xlu0 %v2090
    %v2092 = vpop.xlane.xlu0 %2091
    %v2093 = vsel %vm1360, %v2071, 0.0
    %2094 = vadd.xlane.f32.xlu0 %v2093
    %v2095 = vpop.xlane.xlu0 %2094
    %v2096 = vsel %vm1360, %v1291, 0.0
    %2097 = vadd.xlane.f32.xlu0 %v2096
    %v2098 = vpop.xlane.xlu0 %2097
    %v2099 = vsel %vm1360, %v1295, 0.0
    %2100 = vadd.xlane.f32.xlu0 %v2099
    %v2101 = vpop.xlane.xlu0 %2100
    %v2102 = vsel %vm1360, %v1299, 0.0
    %2103 = vadd.xlane.f32.xlu0 %v2102
    %v2104 = vpop.xlane.xlu0 %2103
    %v2105 = vsel %vm1360, %v1303, 0.0
    %2106 = vadd.xlane.f32.xlu0 %v2105
    %v2107 = vpop.xlane.xlu0 %2106
    %v2108 = vsel %vm1360, %v1307, 0.0
    %2109 = vadd.xlane.f32.xlu0 %v2108
    %v2110 = vpop.xlane.xlu0 %2109
    %v2111 = vsel %vm1360, %v1311, 0.0
    %2112 = vadd.xlane.f32.xlu0 %v2111
    %v2113 = vpop.xlane.xlu0 %2112
    %v2114 = vsel %vm1360, %v1315, 0.0
    %2115 = vadd.xlane.f32.xlu0 %v2114
    %v2116 = vpop.xlane.xlu0 %2115
    %v2117 = vsel %vm1360, %v1319, 0.0
    %2118 = vadd.xlane.f32.xlu0 %v2117
    %v2119 = vpop.xlane.xlu0 %2118
    %v2120 = vmul.f32 %v1291, %v1344
    %v2121 = vmul.f32 %v1295, %v1345
    %v2122 = vmul.f32 %v1299, %v1346
    %v2123 = vmul.f32 %v1303, %v1347
    %v2124 = vmul.f32 %v1307, %v1348
    %v2125 = vmul.f32 %v1311, %v1349
    %v2126 = vmul.f32 %v1315, %v1350
    %v2127 = vmul.f32 %v1319, %v1351
    %v2128 = vsel %vm1360, %v2120, 0.0
    %v2129 = vsel %vm1360, %v2121, 0.0
    %v2130 = vadd.f32 %v2128, %v2129
    %v2131 = vsel %vm1360, %v2122, 0.0
    %v2132 = vadd.f32 %v2130, %v2131
    %v2133 = vsel %vm1360, %v2123, 0.0
    %v2134 = vadd.f32 %v2132, %v2133
    %v2135 = vsel %vm1360, %v2124, 0.0
    %v2136 = vadd.f32 %v2134, %v2135
    %v2137 = vsel %vm1360, %v2125, 0.0
    %v2138 = vadd.f32 %v2136, %v2137
    %v2139 = vsel %vm1360, %v2126, 0.0
    %v2140 = vadd.f32 %v2138, %v2139
    %v2141 = vsel %vm1360, %v2127, 0.0
    %v2142 = vadd.f32 %v2140, %v2141
    %v2143 = vrot.slane %v2142, 4
    %v2144 = vadd.f32 %v2142, %v2143
    %v2145 = vrot.slane %v2144, 2
    %v2146 = vadd.f32 %v2144, %v2145
    %v2147 = vrot.slane %v2146, 1
    %v2148 = vadd.f32 %v2146, %v2147
    %v2149 = vadd.f32 %v2096, %v2099
    %v2150 = vadd.f32 %v2149, %v2102
    %v2151 = vadd.f32 %v2150, %v2105
    %v2152 = vadd.f32 %v2151, %v2108
    %v2153 = vadd.f32 %v2152, %v2111
    %v2154 = vadd.f32 %v2153, %v2114
    %v2155 = vadd.f32 %v2154, %v2117
    %v2156 = vrot.slane %v2155, 4
    %v2157 = vadd.f32 %v2155, %v2156
    %v2158 = vrot.slane %v2157, 2
    %v2159 = vadd.f32 %v2157, %v2158
    %v2160 = vrot.slane %v2159, 1
    %v2161 = vadd.f32 %v2159, %v2160
    %v2162 = vadd.f32 %v2098, 1e-08
    %v2163 = vadd.f32 %v2101, 1e-08
    %v2164 = vadd.f32 %v2104, 1e-08
    %v2165 = vadd.f32 %v2107, 1e-08
    %v2166 = vadd.f32 %v2110, 1e-08
    %v2167 = vadd.f32 %v2113, 1e-08
    %v2168 = vadd.f32 %v2116, 1e-08
    %v2169 = vadd.f32 %v2119, 1e-08
    %v2170 = vrcp.pop %v2162
    %v2171 = vmul.f32 %v2162, %v2170
    %v2172 = vsub.f32 1.0, %v2171
    %v2173 = vmul.f32 %v2170, %v2172
    %v2174 = vadd.f32 %v2170, %v2173
    %vm2175 = vweird.f32 %v2162
    %vm2176 = vweird.f32 %v2170
    %vm2177 = vmor %vm2175, %vm2176
    %v2178 = vsel %vm2177, %v2170, %v2174
    %v2179 = vand.u32 2147483647, %v2162
    %vm2180 = vcmp.eq.f32.partialorder %v2179, 8.507059e+37
    %v2181 = vand.u32 %v2162, 2147483648
    %v2182 = vor.u32 1.1754944e-38, %v2181
    %v2183 = vsel %vm2180, %v2182, %v2178
    %v2184 = vmul.f32 %v2074, %v2183
    %v2185 = vrcp.pop %v2163
    %v2186 = vmul.f32 %v2163, %v2185
    %v2187 = vsub.f32 1.0, %v2186
    %v2188 = vmul.f32 %v2185, %v2187
    %v2189 = vadd.f32 %v2185, %v2188
    %vm2190 = vweird.f32 %v2163
    %vm2191 = vweird.f32 %v2185
    %vm2192 = vmor %vm2190, %vm2191
    %v2193 = vsel %vm2192, %v2185, %v2189
    %v2194 = vand.u32 2147483647, %v2163
    %vm2195 = vcmp.eq.f32.partialorder %v2194, 8.507059e+37
    %v2196 = vand.u32 %v2163, 2147483648
    %v2197 = vor.u32 1.1754944e-38, %v2196
    %v2198 = vsel %vm2195, %v2197, %v2193
    %v2199 = vmul.f32 %v2077, %v2198
    %v2200 = vrcp.pop %v2164
    %v2201 = vmul.f32 %v2164, %v2200
    %v2202 = vsub.f32 1.0, %v2201
    %v2203 = vmul.f32 %v2200, %v2202
    %v2204 = vadd.f32 %v2200, %v2203
    %vm2205 = vweird.f32 %v2164
    %vm2206 = vweird.f32 %v2200
    %vm2207 = vmor %vm2205, %vm2206
    %v2208 = vsel %vm2207, %v2200, %v2204
    %v2209 = vand.u32 2147483647, %v2164
    %vm2210 = vcmp.eq.f32.partialorder %v2209, 8.507059e+37
    %v2211 = vand.u32 %v2164, 2147483648
    %v2212 = vor.u32 1.1754944e-38, %v2211
    %v2213 = vsel %vm2210, %v2212, %v2208
    %v2214 = vmul.f32 %v2080, %v2213
    %v2215 = vrcp.pop %v2165
    %v2216 = vmul.f32 %v2165, %v2215
    %v2217 = vsub.f32 1.0, %v2216
    %v2218 = vmul.f32 %v2215, %v2217
    %v2219 = vadd.f32 %v2215, %v2218
    %vm2220 = vweird.f32 %v2165
    %vm2221 = vweird.f32 %v2215
    %vm2222 = vmor %vm2220, %vm2221
    %v2223 = vsel %vm2222, %v2215, %v2219
    %v2224 = vand.u32 2147483647, %v2165
    %vm2225 = vcmp.eq.f32.partialorder %v2224, 8.507059e+37
    %v2226 = vand.u32 %v2165, 2147483648
    %v2227 = vor.u32 1.1754944e-38, %v2226
    %v2228 = vsel %vm2225, %v2227, %v2223
    %v2229 = vmul.f32 %v2083, %v2228
    %v2230 = vrcp.pop %v2166
    %v2231 = vmul.f32 %v2166, %v2230
    %v2232 = vsub.f32 1.0, %v2231
    %v2233 = vmul.f32 %v2230, %v2232
    %v2234 = vadd.f32 %v2230, %v2233
    %vm2235 = vweird.f32 %v2166
    %vm2236 = vweird.f32 %v2230
    %vm2237 = vmor %vm2235, %vm2236
    %v2238 = vsel %vm2237, %v2230, %v2234
    %v2239 = vand.u32 2147483647, %v2166
    %vm2240 = vcmp.eq.f32.partialorder %v2239, 8.507059e+37
    %v2241 = vand.u32 %v2166, 2147483648
    %v2242 = vor.u32 1.1754944e-38, %v2241
    %v2243 = vsel %vm2240, %v2242, %v2238
    %v2244 = vmul.f32 %v2086, %v2243
    %v2245 = vrcp.pop %v2167
    %v2246 = vmul.f32 %v2167, %v2245
    %v2247 = vsub.f32 1.0, %v2246
    %v2248 = vmul.f32 %v2245, %v2247
    %v2249 = vadd.f32 %v2245, %v2248
    %vm2250 = vweird.f32 %v2167
    %vm2251 = vweird.f32 %v2245
    %vm2252 = vmor %vm2250, %vm2251
    %v2253 = vsel %vm2252, %v2245, %v2249
    %v2254 = vand.u32 2147483647, %v2167
    %vm2255 = vcmp.eq.f32.partialorder %v2254, 8.507059e+37
    %v2256 = vand.u32 %v2167, 2147483648
    %v2257 = vor.u32 1.1754944e-38, %v2256
    %v2258 = vsel %vm2255, %v2257, %v2253
    %v2259 = vmul.f32 %v2089, %v2258
    %v2260 = vrcp.pop %v2168
    %v2261 = vmul.f32 %v2168, %v2260
    %v2262 = vsub.f32 1.0, %v2261
    %v2263 = vmul.f32 %v2260, %v2262
    %v2264 = vadd.f32 %v2260, %v2263
    %vm2265 = vweird.f32 %v2168
    %vm2266 = vweird.f32 %v2260
    %vm2267 = vmor %vm2265, %vm2266
    %v2268 = vsel %vm2267, %v2260, %v2264
    %v2269 = vand.u32 2147483647, %v2168
    %vm2270 = vcmp.eq.f32.partialorder %v2269, 8.507059e+37
    %v2271 = vand.u32 %v2168, 2147483648
    %v2272 = vor.u32 1.1754944e-38, %v2271
    %v2273 = vsel %vm2270, %v2272, %v2268
    %v2274 = vmul.f32 %v2092, %v2273
    %v2275 = vrcp.pop %v2169
    %v2276 = vmul.f32 %v2169, %v2275
    %v2277 = vsub.f32 1.0, %v2276
    %v2278 = vmul.f32 %v2275, %v2277
    %v2279 = vadd.f32 %v2275, %v2278
    %vm2280 = vweird.f32 %v2169
    %vm2281 = vweird.f32 %v2275
    %vm2282 = vmor %vm2280, %vm2281
    %v2283 = vsel %vm2282, %v2275, %v2279
    %v2284 = vand.u32 2147483647, %v2169
    %vm2285 = vcmp.eq.f32.partialorder %v2284, 8.507059e+37
    %v2286 = vand.u32 %v2169, 2147483648
    %v2287 = vor.u32 1.1754944e-38, %v2286
    %v2288 = vsel %vm2285, %v2287, %v2283
    %v2289 = vmul.f32 %v2095, %v2288
    %v2290 = vlog2.pop %v2184
    %v2291 = vmul.f32 %v2290, 0.6931472
    %v2292 = vlog2.pop %v2199
    %v2293 = vmul.f32 %v2292, 0.6931472
    %v2294 = vlog2.pop %v2214
    %v2295 = vmul.f32 %v2294, 0.6931472
    %v2296 = vlog2.pop %v2229
    %v2297 = vmul.f32 %v2296, 0.6931472
    %v2298 = vlog2.pop %v2244
    %v2299 = vmul.f32 %v2298, 0.6931472
    %v2300 = vlog2.pop %v2259
    %v2301 = vmul.f32 %v2300, 0.6931472
    %v2302 = vlog2.pop %v2274
    %v2303 = vmul.f32 %v2302, 0.6931472
    %v2304 = vlog2.pop %v2289
    %v2305 = vmul.f32 %v2304, 0.6931472
    %v2306 = vadd.f32 %v2291, %v2293
    %v2307 = vadd.f32 %v2306, %v2295
    %v2308 = vadd.f32 %v2307, %v2297
    %v2309 = vadd.f32 %v2308, %v2299
    %v2310 = vadd.f32 %v2309, %v2301
    %v2311 = vadd.f32 %v2310, %v2303
    %v2312 = vadd.f32 %v2311, %v2305
    %v2313 = vrot.slane %v2312, 4
    %v2314 = vadd.f32 %v2312, %v2313
    %v2315 = vrot.slane %v2314, 2
    %v2316 = vadd.f32 %v2314, %v2315
    %v2317 = vrot.slane %v2316, 1
    %v2318 = vadd.f32 %v2316, %v2317
    %v2319 = vsub.f32 0.0, %v2318
    %v2320 = vmul.f32 %v2319, 0.015625
    %v2321 = vadd.f32 %v2161, 1e-08
    %v2322 = vrcp.pop %v2321
    %v2323 = vmul.f32 %v2321, %v2322
    %v2324 = vsub.f32 1.0, %v2323
    %v2325 = vmul.f32 %v2322, %v2324
    %v2326 = vadd.f32 %v2322, %v2325
    %vm2327 = vweird.f32 %v2321
    %vm2328 = vweird.f32 %v2322
    %vm2329 = vmor %vm2327, %vm2328
    %v2330 = vsel %vm2329, %v2322, %v2326
    %v2331 = vand.u32 2147483647, %v2321
    %vm2332 = vcmp.eq.f32.partialorder %v2331, 8.507059e+37
    %v2333 = vand.u32 %v2321, 2147483648
    %v2334 = vor.u32 1.1754944e-38, %v2333
    %v2335 = vsel %vm2332, %v2334, %v2330
    %v2336 = vmul.f32 %v2148, %v2335
    %v2337 = vlog2.pop %v2336
    %v2338 = vmul.f32 %v2337, 0.6931472
    %v2339 = vsel %vm1360, %v2338, 0.0
    %2340 = vadd.xlane.f32.xlu0 %v2339
    %v2341 = vpop.xlane.xlu0 %2340
    %v2342 = vsub.f32 0.0, %v2341
    %v2343 = vmul.f32 %v2342, 0.015625
    %v2344 = vmul.f32 %v2320, 0.5
    %v2345 = vmul.f32 %v2343, 0.5
    %v2346 = vadd.f32 %v2344, %v2345
    %v2347 = vadd.f32 %v2063, %v2346
    %vm2348 = vcmask 0
    %2349 = vst.msk [vmem:[#allocation2] sm:$0x1] %vm2348, %v2347
    // Predicated region
    $region34: #{heco_forward.7} parent=1 // pred_check
      _
    $region35: #{heco_forward.7} parent=1 // pred_check_branch
      %2351 = sbr.rel (0) target = $region37
    $region36: #{heco_forward.7} parent=1 // pred_region
      %2353 = vsyncadd [#allocation3], 0
      %s2355 = sshll.u32 [#allocation2], 4
      %s2356 = int_to_ptr.vmem [resolvable:$true] %s2355
      %s2357 = sshll.u32 %s8, 4
      %s2358 = int_to_ptr.hbm [resolvable:$true] %s2357
      %2360 = dma.vmem_to_hbm [thread:$0]  %s2356, 16, %s2358, [#allocation3]
    $region37: #{heco_forward.7} parent=1 // pred_fallthru
      _
    // Predicated region
    $region38: #{heco_forward.7} parent=1 // pred_check
      _
    $region39: #{heco_forward.7} parent=1 // pred_check_branch
      %2362 = sbr.rel (0) target = $region41
    $region40: #{heco_forward.7} parent=1 // pred_region
      %2364 = dma.done [#allocation3], 16
    $region41: #{heco_forward.7} parent=1 // pred_fallthru
      _
    %2365 = vsyncpa [#allocation3], 1

</llo_original>
